<compile_context>
chip_gen: v7x
topology: tpu7x:2x2x1
jax: 0.10.0
libtpu: 0.0.40
codegen_flags: <defaults>
</compile_context>

<pallas_src>
import functools

import jax
import jax.numpy as jnp
from jax.experimental import pallas as pl
from jax.experimental.pallas import tpu as pltpu


def _gcn_fused_kernel(x_ref, at_ref, w_ref, b_ref, o_ref, h_ref, *,
                      support_len, order, bn, lcp):
    """One grid step processes `bn` (padded) batch elements.

    x_ref : (V, bn*lcp)      channel-minor features, lane = i*lcp + l*C + c (zero padded)
    at_ref: (S, V, V)        pre-transposed adjacencies A^T          (grid-invariant)
    w_ref : (K*lcp, lco)     block-diag expanded, row-padded weight  (grid-invariant)
    b_ref : (1, lco)         expanded bias                           (grid-invariant)
    o_ref : (bn, V, lco)     output block, lane = o*L + l
    h_ref : (bn, V, K*lcp)   VMEM staging for all K diffusion terms  (scratch)
    """
    cdt = x_ref.dtype

    # Term k = 0 (identity): copy each batch element's chunk into its staging slot.
    # All lane offsets here and below are multiples of lcp (a multiple of 128) => aligned.
    for i in range(bn):
        h_ref[i, :, 0:lcp] = x_ref[:, i * lcp:(i + 1) * lcp]

    # Diffusion chains, one support at a time (only one (V, bn*lcp) chain value live).
    for s in range(support_len):
        t = x_ref[...]
        for j in range(order):
            t = jnp.dot(at_ref[s], t, preferred_element_type=jnp.float32).astype(cdt)
            k = 1 + s * order + j
            for i in range(bn):
                h_ref[i, :, k * lcp:(k + 1) * lcp] = t[:, i * lcp:(i + 1) * lcp]

    # Channel mix: ONE coalesced (V, K*lcp) @ (K*lcp, lco) MXU dot per batch element and a
    # single lane-dense store per output tile (no read-modify-write accumulation).
    for i in range(bn):
        o_ref[i] = (
            jnp.dot(h_ref[i], w_ref[...], preferred_element_type=jnp.float32)
            + b_ref[...]
        ).astype(o_ref.dtype)


def _default_compute_dtype():
    """bf16 on v6e/v7x (fast MXU bf16, half VMEM), f32 elsewhere (v5e: no bf16 VPU)."""
    try:
        kind = jax.devices()[0].device_kind.lower()
    except Exception:
        return jnp.float32
    if "v6" in kind or "v7" in kind:
        return jnp.bfloat16
    return jnp.float32


def _vmem_capacity_bytes():
    try:
        return int(pltpu.get_tpu_info().vmem_capacity_bytes)
    except Exception:
        return 64 * 2**20   # conservative fallback (v7x per-TensorCore VMEM)


def gcn_forward(x, supports, w, b, *, order=2, compute_dtype=None):
    """Pallas implementation of GWNet gcn.forward (eval-mode dropout).

    x        : (N, C, V, L) float32   (PyTorch NCHW: nodes=V, time=L)
    supports : list of (V, V) float32 adjacency matrices
    w        : (c_out, K*C) float32   (squeezed 1x1 Conv2d weight, K = order*len(supports)+1)
    b        : (c_out,)     float32
    returns  : (N, c_out, V, L) float32
    """
    N, C, V, L = x.shape
    S = len(supports)
    K = S * order + 1
    c_out = w.shape[0]
    lc = L * C
    lco = c_out * L
    lcp = max(128, ((lc + 127) // 128) * 128)   # per-batch lane chunk, 128-aligned

    if compute_dtype is None:
        compute_dtype = _default_compute_dtype()
    itemsize = jnp.dtype(compute_dtype).itemsize

    # ---- batch-fold (bn) selection: lane-width + VMEM driven, generation-aware. -------
    vmem_cap = _vmem_capacity_bytes()
    budget = vmem_cap - 16 * 2**20              # headroom for Mosaic internals

    resident = (S * V * V * itemsize            # A^T         (single-buffered)
                + K * lcp * lco * itemsize      # w_exp       (single-buffered)
                + lco * 4)                      # bias        (single-buffered)

    def step_bytes(cand):
        xb = V * cand * lcp * itemsize          # per-step x block   (double-buffered)
        ob = cand * V * lco * 4                 # per-step out block (double-buffered)
        hb = cand * V * K * lcp * itemsize      # staging scratch    (single)
        return resident + 2 * xb + 2 * ob + hb

    bn_cap = max(1, 2048 // lcp)                # target <= ~2048 lanes per grid step
    if N >= 2:
        bn_cap = min(bn_cap, max(1, (N + 1) // 2))   # keep >= 2 grid steps (v7x: 2 TCs)
    bn_cap = min(bn_cap, N)
    bn = 1
    for cand in range(1, bn_cap + 1):
        if step_bytes(cand) <= budget:
            bn = cand
    nb = -(-N // bn)                            # pad N instead of requiring N % bn == 0
    n_pad = nb * bn

    vmem_limit = int(min(vmem_cap - 8 * 2**20,
                         max(step_bytes(bn) + (6 << 20), 16 << 20)))

    # ---- host-side relayout (XLA glue). ------------------------------------------------
    # x_t[g, v, i*lcp + l*C + c] = x[g*bn + i, c, v, l]  (zero-padded in batch and lanes)
    x4 = x.transpose(0, 2, 3, 1).reshape(N, V, lc)
    x4 = jnp.zeros((n_pad, V, lcp), x.dtype).at[:N, :, :lc].set(x4)
    x_t = (x4.reshape(nb, bn, V, lcp)
              .transpose(0, 2, 1, 3)
              .reshape(nb, V, bn * lcp)
              .astype(compute_dtype))

    a_t = jnp.stack([jnp.transpose(a) for a in supports]).astype(compute_dtype)  # (S,V,V)

    # Block-diagonal (over l) expansion of the 1x1 conv, rows zero-padded to lcp:
    #   w_exp[k*lcp + l'*C + c, o*L + l] = (l' == l) * w[o, k*C + c]
    w3 = w.reshape(c_out, K, C)
    eye_l = jnp.eye(L, dtype=w.dtype)
    w_core = (eye_l[None, :, None, None, :]
              * w3.transpose(1, 2, 0)[:, None, :, :, None]).reshape(K, lc, lco)
    w_exp = (jnp.zeros((K, lcp, lco), w.dtype).at[:, :lc, :].set(w_core)
             .reshape(K * lcp, lco).astype(compute_dtype))
    b_row = jnp.repeat(b, L)[None, :].astype(jnp.float32)                        # (1, lco)

    kern = functools.partial(_gcn_fused_kernel, support_len=S, order=order,
                             bn=bn, lcp=lcp)

    def build(buffer_invariants):
        inv = {"pipeline_mode": pl.Buffered(1)} if buffer_invariants else {}
        return pl.pallas_call(
            kern,
            out_shape=jax.ShapeDtypeStruct((nb, bn, V, lco), jnp.float32),
            grid=(nb,),
            in_specs=[
                pl.BlockSpec((None, V, bn * lcp), lambda i: (i, 0, 0)),
                pl.BlockSpec((S, V, V), lambda i: (0, 0, 0), **inv),
                pl.BlockSpec((K * lcp, lco), lambda i: (0, 0), **inv),
                pl.BlockSpec((1, lco), lambda i: (0, 0), **inv),
            ],
            out_specs=pl.BlockSpec((None, bn, V, lco), lambda i: (i, 0, 0, 0)),
            scratch_shapes=[pltpu.VMEM((bn, V, K * lcp), compute_dtype)],
            compiler_params=pltpu.CompilerParams(
                dimension_semantics=("parallel",),
                vmem_limit_bytes=vmem_limit,
            ),
        )

    try:
        y = build(True)(x_t, a_t, w_exp, b_row)
    except Exception:
        # Fallback if this JAX build rejects single-buffered (Buffered(1)) invariants.
        y = build(False)(x_t, a_t, w_exp, b_row)

    # TODO(synk): dropout implemented as identity (inference semantics); training-mode
    # stochastic dropout of the PyTorch module is not reproduced here.
    # y[g, i, v, o*L + l] == out[g*bn + i, o, v, l]; drop batch padding, transpose middle dims.
    y = y.reshape(n_pad, V, lco)[:N].reshape(N, V, c_out, L)
    return jnp.transpose(y, (0, 2, 1, 3))


def gcn_reference(x, supports, w, b, order=2):
    """Pure-JAX reference matching the PyTorch forward (eval-mode dropout)."""
    out = [x]
    for a in supports:
        x1 = jnp.einsum("ncvl,vw->ncwl", x, a)
        out.append(x1)
        for _ in range(2, order + 1):
            x2 = jnp.einsum("ncvl,vw->ncwl", x1, a)
            out.append(x2)
            x1 = x2
    h = jnp.concatenate(out, axis=1)
    return jnp.einsum("ncvl,oc->novl", h, w) + b[None, :, None, None]


if __name__ == "__main__":
    # Small shapes consistent with the module: batch=2, c_in=4, nodes=16, seq=8,
    # support_len=3, order=2  ->  mlp in-channels = (2*3+1)*4 = 28, c_out=32.
    N, C_IN, V, L = 2, 4, 16, 8
    SUPPORT_LEN, ORDER = 3, 2
    C_OUT = 32
    K = SUPPORT_LEN * ORDER + 1

    key = jax.random.PRNGKey(0)
    kx, kw, kb, *ksup = jax.random.split(key, 3 + SUPPORT_LEN)

    x = jax.random.normal(kx, (N, C_IN, V, L), dtype=jnp.float32)
    supports = [jax.random.uniform(ks, (V, V), dtype=jnp.float32) / V for ks in ksup]
    w = jax.random.normal(kw, (C_OUT, K * C_IN), dtype=jnp.float32) * 0.1
    b = jax.random.normal(kb, (C_OUT,), dtype=jnp.float32) * 0.1

    # f32 compute for an exact check (bf16 is auto-selected on v6e/v7x by default).
    out = gcn_forward(x, supports, w, b, order=ORDER, compute_dtype=jnp.float32)
    out = jax.block_until_ready(out)

    ref = gcn_reference(x, supports, w, b, order=ORDER)
    assert out.shape == (N, C_OUT, V, L), out.shape
    err = float(jnp.max(jnp.abs(out - ref)))
    assert jnp.allclose(out, ref, atol=2e-4, rtol=2e-4), err
    print("KERNEL_OK")
</pallas_src>

<mosaic_0001>
module attributes {stable_mosaic.version = 11 : i64} {
  func.func @_gcn_fused_kernel(%arg0: i32, %arg1: memref<1x16x128xf32, #tpu.memory_space<vmem>>, %arg2: memref<3x16x16xf32, #tpu.memory_space<vmem>>, %arg3: memref<896x256xf32, #tpu.memory_space<vmem>>, %arg4: memref<1x256xf32, #tpu.memory_space<vmem>>, %arg5: memref<1x1x16x256xf32, #tpu.memory_space<vmem>>, %arg6: memref<1x16x896xf32, #tpu.memory_space<vmem>>) attributes {dimension_semantics = [#tpu.dimension_semantics<parallel>], iteration_bounds = array<i64: 2>, scalar_prefetch = 0 : i64, scratch_operands = 1 : i64, tpu.core_type = #tpu.core_type<tc>, window_params = [{transform_indices = @transform_0, window_bounds = array<i64: 1, 16, 128>}, {pipeline_mode = #tpu.pipeline_mode<synchronous>, transform_indices = @transform_1, window_bounds = array<i64: 3, 16, 16>}, {pipeline_mode = #tpu.pipeline_mode<synchronous>, transform_indices = @transform_2, window_bounds = array<i64: 896, 256>}, {pipeline_mode = #tpu.pipeline_mode<synchronous>, transform_indices = @transform_3, window_bounds = array<i64: 1, 256>}, {transform_indices = @transform_4, window_bounds = array<i64: 1, 1, 16, 256>}]} {
    %c0 = arith.constant 0 : index
    %c0_0 = arith.constant 0 : index
    %c0_1 = arith.constant 0 : index
    %0 = vector.load %arg1[%c0, %c0_0, %c0_1] : memref<1x16x128xf32, #tpu.memory_space<vmem>>, vector<1x16x128xf32>
    %1 = vector.shape_cast %0 : vector<1x16x128xf32> to vector<16x128xf32>
    %c0_2 = arith.constant 0 : index
    %c0_3 = arith.constant 0 : index
    %c0_4 = arith.constant 0 : index
    %2 = vector.load %arg6[%c0_2, %c0_3, %c0_4] : memref<1x16x896xf32, #tpu.memory_space<vmem>>, vector<1x16x128xf32>
    %3 = vector.shape_cast %2 : vector<1x16x128xf32> to vector<16x128xf32>
    %4 = vector.shape_cast %1 : vector<16x128xf32> to vector<1x16x128xf32>
    tpu.vector_store %arg6[%c0_2, %c0_3, %c0_4], %4 {strides = array<i32>} : memref<1x16x896xf32, #tpu.memory_space<vmem>>, vector<1x16x128xf32>,
    %c0_5 = arith.constant 0 : index
    %c0_6 = arith.constant 0 : index
    %c0_7 = arith.constant 0 : index
    %5 = vector.load %arg1[%c0_5, %c0_6, %c0_7] : memref<1x16x128xf32, #tpu.memory_space<vmem>>, vector<1x16x128xf32>
    %6 = vector.shape_cast %5 : vector<1x16x128xf32> to vector<16x128xf32>
    %c0_8 = arith.constant 0 : index
    %c0_9 = arith.constant 0 : index
    %c0_10 = arith.constant 0 : index
    %7 = vector.load %arg2[%c0_8, %c0_9, %c0_10] : memref<3x16x16xf32, #tpu.memory_space<vmem>>, vector<1x16x16xf32>
    %8 = vector.shape_cast %7 : vector<1x16x16xf32> to vector<16x16xf32>
    %cst = arith.constant dense<0.000000e+00> : vector<16x128xf32>
    %9 = tpu.matmul %8, %6, %cst {dimension_numbers = #tpu.dot_dimension_numbers<[1], [0], [0], [1], [0, 0, 1, 1], [], []>} : vector<16x16xf32>, vector<16x128xf32>, vector<16x128xf32> -> vector<16x128xf32>
    %c0_11 = arith.constant 0 : index
    %c0_12 = arith.constant 0 : index
    %c128 = arith.constant 128 : index
    %10 = vector.load %arg6[%c0_11, %c0_12, %c128] : memref<1x16x896xf32, #tpu.memory_space<vmem>>, vector<1x16x128xf32>
    %11 = vector.shape_cast %10 : vector<1x16x128xf32> to vector<16x128xf32>
    %12 = vector.shape_cast %9 : vector<16x128xf32> to vector<1x16x128xf32>
    tpu.vector_store %arg6[%c0_11, %c0_12, %c128], %12 {strides = array<i32>} : memref<1x16x896xf32, #tpu.memory_space<vmem>>, vector<1x16x128xf32>,
    %c0_13 = arith.constant 0 : index
    %c0_14 = arith.constant 0 : index
    %c0_15 = arith.constant 0 : index
    %13 = vector.load %arg2[%c0_13, %c0_14, %c0_15] : memref<3x16x16xf32, #tpu.memory_space<vmem>>, vector<1x16x16xf32>
    %14 = vector.shape_cast %13 : vector<1x16x16xf32> to vector<16x16xf32>
    %cst_16 = arith.constant dense<0.000000e+00> : vector<16x128xf32>
    %15 = tpu.matmul %14, %9, %cst_16 {dimension_numbers = #tpu.dot_dimension_numbers<[1], [0], [0], [1], [0, 0, 1, 1], [], []>} : vector<16x16xf32>, vector<16x128xf32>, vector<16x128xf32> -> vector<16x128xf32>
    %c0_17 = arith.constant 0 : index
    %c0_18 = arith.constant 0 : index
    %c256 = arith.constant 256 : index
    %16 = vector.load %arg6[%c0_17, %c0_18, %c256] : memref<1x16x896xf32, #tpu.memory_space<vmem>>, vector<1x16x128xf32>
    %17 = vector.shape_cast %16 : vector<1x16x128xf32> to vector<16x128xf32>
    %18 = vector.shape_cast %15 : vector<16x128xf32> to vector<1x16x128xf32>
    tpu.vector_store %arg6[%c0_17, %c0_18, %c256], %18 {strides = array<i32>} : memref<1x16x896xf32, #tpu.memory_space<vmem>>, vector<1x16x128xf32>,
    %c0_19 = arith.constant 0 : index
    %c0_20 = arith.constant 0 : index
    %c0_21 = arith.constant 0 : index
    %19 = vector.load %arg1[%c0_19, %c0_20, %c0_21] : memref<1x16x128xf32, #tpu.memory_space<vmem>>, vector<1x16x128xf32>
    %20 = vector.shape_cast %19 : vector<1x16x128xf32> to vector<16x128xf32>
    %c1 = arith.constant 1 : index
    %c0_22 = arith.constant 0 : index
    %c0_23 = arith.constant 0 : index
    %21 = vector.load %arg2[%c1, %c0_22, %c0_23] : memref<3x16x16xf32, #tpu.memory_space<vmem>>, vector<1x16x16xf32>
    %22 = vector.shape_cast %21 : vector<1x16x16xf32> to vector<16x16xf32>
    %cst_24 = arith.constant dense<0.000000e+00> : vector<16x128xf32>
    %23 = tpu.matmul %22, %20, %cst_24 {dimension_numbers = #tpu.dot_dimension_numbers<[1], [0], [0], [1], [0, 0, 1, 1], [], []>} : vector<16x16xf32>, vector<16x128xf32>, vector<16x128xf32> -> vector<16x128xf32>
    %c0_25 = arith.constant 0 : index
    %c0_26 = arith.constant 0 : index
    %c384 = arith.constant 384 : index
    %24 = vector.load %arg6[%c0_25, %c0_26, %c384] : memref<1x16x896xf32, #tpu.memory_space<vmem>>, vector<1x16x128xf32>
    %25 = vector.shape_cast %24 : vector<1x16x128xf32> to vector<16x128xf32>
    %26 = vector.shape_cast %23 : vector<16x128xf32> to vector<1x16x128xf32>
    tpu.vector_store %arg6[%c0_25, %c0_26, %c384], %26 {strides = array<i32>} : memref<1x16x896xf32, #tpu.memory_space<vmem>>, vector<1x16x128xf32>,
    %c1_27 = arith.constant 1 : index
    %c0_28 = arith.constant 0 : index
    %c0_29 = arith.constant 0 : index
    %27 = vector.load %arg2[%c1_27, %c0_28, %c0_29] : memref<3x16x16xf32, #tpu.memory_space<vmem>>, vector<1x16x16xf32>
    %28 = vector.shape_cast %27 : vector<1x16x16xf32> to vector<16x16xf32>
    %cst_30 = arith.constant dense<0.000000e+00> : vector<16x128xf32>
    %29 = tpu.matmul %28, %23, %cst_30 {dimension_numbers = #tpu.dot_dimension_numbers<[1], [0], [0], [1], [0, 0, 1, 1], [], []>} : vector<16x16xf32>, vector<16x128xf32>, vector<16x128xf32> -> vector<16x128xf32>
    %c0_31 = arith.constant 0 : index
    %c0_32 = arith.constant 0 : index
    %c512 = arith.constant 512 : index
    %30 = vector.load %arg6[%c0_31, %c0_32, %c512] : memref<1x16x896xf32, #tpu.memory_space<vmem>>, vector<1x16x128xf32>
    %31 = vector.shape_cast %30 : vector<1x16x128xf32> to vector<16x128xf32>
    %32 = vector.shape_cast %29 : vector<16x128xf32> to vector<1x16x128xf32>
    tpu.vector_store %arg6[%c0_31, %c0_32, %c512], %32 {strides = array<i32>} : memref<1x16x896xf32, #tpu.memory_space<vmem>>, vector<1x16x128xf32>,
    %c0_33 = arith.constant 0 : index
    %c0_34 = arith.constant 0 : index
    %c0_35 = arith.constant 0 : index
    %33 = vector.load %arg1[%c0_33, %c0_34, %c0_35] : memref<1x16x128xf32, #tpu.memory_space<vmem>>, vector<1x16x128xf32>
    %34 = vector.shape_cast %33 : vector<1x16x128xf32> to vector<16x128xf32>
    %c2 = arith.constant 2 : index
    %c0_36 = arith.constant 0 : index
    %c0_37 = arith.constant 0 : index
    %35 = vector.load %arg2[%c2, %c0_36, %c0_37] : memref<3x16x16xf32, #tpu.memory_space<vmem>>, vector<1x16x16xf32>
    %36 = vector.shape_cast %35 : vector<1x16x16xf32> to vector<16x16xf32>
    %cst_38 = arith.constant dense<0.000000e+00> : vector<16x128xf32>
    %37 = tpu.matmul %36, %34, %cst_38 {dimension_numbers = #tpu.dot_dimension_numbers<[1], [0], [0], [1], [0, 0, 1, 1], [], []>} : vector<16x16xf32>, vector<16x128xf32>, vector<16x128xf32> -> vector<16x128xf32>
    %c0_39 = arith.constant 0 : index
    %c0_40 = arith.constant 0 : index
    %c640 = arith.constant 640 : index
    %38 = vector.load %arg6[%c0_39, %c0_40, %c640] : memref<1x16x896xf32, #tpu.memory_space<vmem>>, vector<1x16x128xf32>
    %39 = vector.shape_cast %38 : vector<1x16x128xf32> to vector<16x128xf32>
    %40 = vector.shape_cast %37 : vector<16x128xf32> to vector<1x16x128xf32>
    tpu.vector_store %arg6[%c0_39, %c0_40, %c640], %40 {strides = array<i32>} : memref<1x16x896xf32, #tpu.memory_space<vmem>>, vector<1x16x128xf32>,
    %c2_41 = arith.constant 2 : index
    %c0_42 = arith.constant 0 : index
    %c0_43 = arith.constant 0 : index
    %41 = vector.load %arg2[%c2_41, %c0_42, %c0_43] : memref<3x16x16xf32, #tpu.memory_space<vmem>>, vector<1x16x16xf32>
    %42 = vector.shape_cast %41 : vector<1x16x16xf32> to vector<16x16xf32>
    %cst_44 = arith.constant dense<0.000000e+00> : vector<16x128xf32>
    %43 = tpu.matmul %42, %37, %cst_44 {dimension_numbers = #tpu.dot_dimension_numbers<[1], [0], [0], [1], [0, 0, 1, 1], [], []>} : vector<16x16xf32>, vector<16x128xf32>, vector<16x128xf32> -> vector<16x128xf32>
    %c0_45 = arith.constant 0 : index
    %c0_46 = arith.constant 0 : index
    %c768 = arith.constant 768 : index
    %44 = vector.load %arg6[%c0_45, %c0_46, %c768] : memref<1x16x896xf32, #tpu.memory_space<vmem>>, vector<1x16x128xf32>
    %45 = vector.shape_cast %44 : vector<1x16x128xf32> to vector<16x128xf32>
    %46 = vector.shape_cast %43 : vector<16x128xf32> to vector<1x16x128xf32>
    tpu.vector_store %arg6[%c0_45, %c0_46, %c768], %46 {strides = array<i32>} : memref<1x16x896xf32, #tpu.memory_space<vmem>>, vector<1x16x128xf32>,
    %c0_47 = arith.constant 0 : index
    %c0_48 = arith.constant 0 : index
    %c0_49 = arith.constant 0 : index
    %47 = vector.load %arg6[%c0_47, %c0_48, %c0_49] : memref<1x16x896xf32, #tpu.memory_space<vmem>>, vector<1x16x896xf32>
    %48 = vector.shape_cast %47 : vector<1x16x896xf32> to vector<16x896xf32>
    %c0_50 = arith.constant 0 : index
    %c0_51 = arith.constant 0 : index
    %49 = vector.load %arg3[%c0_50, %c0_51] : memref<896x256xf32, #tpu.memory_space<vmem>>, vector<896x256xf32>
    %cst_52 = arith.constant dense<0.000000e+00> : vector<16x256xf32>
    %50 = tpu.matmul %48, %49, %cst_52 {dimension_numbers = #tpu.dot_dimension_numbers<[1], [0], [0], [1], [0, 0, 1, 1], [], []>} : vector<16x896xf32>, vector<896x256xf32>, vector<16x256xf32> -> vector<16x256xf32>
    %c0_53 = arith.constant 0 : index
    %c0_54 = arith.constant 0 : index
    %51 = vector.load %arg4[%c0_53, %c0_54] : memref<1x256xf32, #tpu.memory_space<vmem>>, vector<1x256xf32>
    %52 = vector.broadcast %51 : vector<1x256xf32> to vector<16x256xf32>
    %53 = arith.addf %50, %52 : vector<16x256xf32>
    %c0_55 = arith.constant 0 : index
    %c0_56 = arith.constant 0 : index
    %c0_57 = arith.constant 0 : index
    %c0_58 = arith.constant 0 : index
    %54 = vector.load %arg5[%c0_55, %c0_56, %c0_57, %c0_58] : memref<1x1x16x256xf32, #tpu.memory_space<vmem>>, vector<1x1x16x256xf32>
    %55 = vector.shape_cast %54 : vector<1x1x16x256xf32> to vector<16x256xf32>
    %56 = vector.shape_cast %53 : vector<16x256xf32> to vector<1x1x16x256xf32>
    tpu.vector_store %arg5[%c0_55, %c0_56, %c0_57, %c0_58], %56 {strides = array<i32>} : memref<1x1x16x256xf32, #tpu.memory_space<vmem>>, vector<1x1x16x256xf32>,
    return
  }
  func.func @transform_0(%arg0: i32) -> (i32, i32, i32) {
    %c0_i32 = arith.constant 0 : i32
    %c0_i32_0 = arith.constant 0 : i32
    %c0_i32_1 = arith.constant 0 : i32
    return %arg0, %c0_i32, %c0_i32_0 : i32, i32, i32
  }
  func.func @transform_1(%arg0: i32) -> (i32, i32, i32) {
    %c0_i32 = arith.constant 0 : i32
    %c0_i32_0 = arith.constant 0 : i32
    %c0_i32_1 = arith.constant 0 : i32
    %c0_i32_2 = arith.constant 0 : i32
    return %c0_i32, %c0_i32_0, %c0_i32_1 : i32, i32, i32
  }
  func.func @transform_2(%arg0: i32) -> (i32, i32) {
    %c0_i32 = arith.constant 0 : i32
    %c0_i32_0 = arith.constant 0 : i32
    %c0_i32_1 = arith.constant 0 : i32
    return %c0_i32, %c0_i32_0 : i32, i32
  }
  func.func @transform_3(%arg0: i32) -> (i32, i32) {
    %c0_i32 = arith.constant 0 : i32
    %c0_i32_0 = arith.constant 0 : i32
    %c0_i32_1 = arith.constant 0 : i32
    return %c0_i32, %c0_i32_0 : i32, i32
  }
  func.func @transform_4(%arg0: i32) -> (i32, i32, i32, i32) {
    %c0_i32 = arith.constant 0 : i32
    %c0_i32_0 = arith.constant 0 : i32
    %c0_i32_1 = arith.constant 0 : i32
    %c0_i32_2 = arith.constant 0 : i32
    return %arg0, %c0_i32, %c0_i32_0, %c0_i32_1 : i32, i32, i32, i32
  }
}

module attributes {stable_mosaic.version = 11 : i64} {
  func.func @_gcn_fused_kernel(%arg0: i32, %arg1: memref<1x16x128xf32, #tpu.memory_space<vmem>>, %arg2: memref<3x16x16xf32, #tpu.memory_space<vmem>>, %arg3: memref<896x256xf32, #tpu.memory_space<vmem>>, %arg4: memref<1x256xf32, #tpu.memory_space<vmem>>, %arg5: memref<1x1x16x256xf32, #tpu.memory_space<vmem>>, %arg6: memref<1x16x896xf32, #tpu.memory_space<vmem>>) attributes {dimension_semantics = [#tpu.dimension_semantics<parallel>], iteration_bounds = array<i64: 2>, scalar_prefetch = 0 : i64, scratch_operands = 1 : i64, tpu.core_type = #tpu.core_type<tc>, window_params = [{transform_indices = @transform_0, window_bounds = array<i64: 1, 16, 128>}, {pipeline_mode = #tpu.pipeline_mode<synchronous>, transform_indices = @transform_1, window_bounds = array<i64: 3, 16, 16>}, {pipeline_mode = #tpu.pipeline_mode<synchronous>, transform_indices = @transform_2, window_bounds = array<i64: 896, 256>}, {pipeline_mode = #tpu.pipeline_mode<synchronous>, transform_indices = @transform_3, window_bounds = array<i64: 1, 256>}, {transform_indices = @transform_4, window_bounds = array<i64: 1, 1, 16, 256>}]} {
    %c0 = arith.constant 0 : index
    %c0_0 = arith.constant 0 : index
    %c0_1 = arith.constant 0 : index
    %0 = vector.load %arg1[%c0, %c0_0, %c0_1] : memref<1x16x128xf32, #tpu.memory_space<vmem>>, vector<1x16x128xf32>
    %1 = vector.shape_cast %0 : vector<1x16x128xf32> to vector<16x128xf32>
    %c0_2 = arith.constant 0 : index
    %c0_3 = arith.constant 0 : index
    %c0_4 = arith.constant 0 : index
    %2 = vector.load %arg6[%c0_2, %c0_3, %c0_4] : memref<1x16x896xf32, #tpu.memory_space<vmem>>, vector<1x16x128xf32>
    %3 = vector.shape_cast %2 : vector<1x16x128xf32> to vector<16x128xf32>
    %4 = vector.shape_cast %1 : vector<16x128xf32> to vector<1x16x128xf32>
    tpu.vector_store %arg6[%c0_2, %c0_3, %c0_4], %4 {strides = array<i32>} : memref<1x16x896xf32, #tpu.memory_space<vmem>>, vector<1x16x128xf32>,
    %c0_5 = arith.constant 0 : index
    %c0_6 = arith.constant 0 : index
    %c0_7 = arith.constant 0 : index
    %5 = vector.load %arg1[%c0_5, %c0_6, %c0_7] : memref<1x16x128xf32, #tpu.memory_space<vmem>>, vector<1x16x128xf32>
    %6 = vector.shape_cast %5 : vector<1x16x128xf32> to vector<16x128xf32>
    %c0_8 = arith.constant 0 : index
    %c0_9 = arith.constant 0 : index
    %c0_10 = arith.constant 0 : index
    %7 = vector.load %arg2[%c0_8, %c0_9, %c0_10] : memref<3x16x16xf32, #tpu.memory_space<vmem>>, vector<1x16x16xf32>
    %8 = vector.shape_cast %7 : vector<1x16x16xf32> to vector<16x16xf32>
    %cst = arith.constant dense<0.000000e+00> : vector<16x128xf32>
    %9 = tpu.matmul %8, %6, %cst {dimension_numbers = #tpu.dot_dimension_numbers<[1], [0], [0], [1], [0, 0, 1, 1], [], []>} : vector<16x16xf32>, vector<16x128xf32>, vector<16x128xf32> -> vector<16x128xf32>
    %c0_11 = arith.constant 0 : index
    %c0_12 = arith.constant 0 : index
    %c128 = arith.constant 128 : index
    %10 = vector.load %arg6[%c0_11, %c0_12, %c128] : memref<1x16x896xf32, #tpu.memory_space<vmem>>, vector<1x16x128xf32>
    %11 = vector.shape_cast %10 : vector<1x16x128xf32> to vector<16x128xf32>
    %12 = vector.shape_cast %9 : vector<16x128xf32> to vector<1x16x128xf32>
    tpu.vector_store %arg6[%c0_11, %c0_12, %c128], %12 {strides = array<i32>} : memref<1x16x896xf32, #tpu.memory_space<vmem>>, vector<1x16x128xf32>,
    %c0_13 = arith.constant 0 : index
    %c0_14 = arith.constant 0 : index
    %c0_15 = arith.constant 0 : index
    %13 = vector.load %arg2[%c0_13, %c0_14, %c0_15] : memref<3x16x16xf32, #tpu.memory_space<vmem>>, vector<1x16x16xf32>
    %14 = vector.shape_cast %13 : vector<1x16x16xf32> to vector<16x16xf32>
    %cst_16 = arith.constant dense<0.000000e+00> : vector<16x128xf32>
    %15 = tpu.matmul %14, %9, %cst_16 {dimension_numbers = #tpu.dot_dimension_numbers<[1], [0], [0], [1], [0, 0, 1, 1], [], []>} : vector<16x16xf32>, vector<16x128xf32>, vector<16x128xf32> -> vector<16x128xf32>
    %c0_17 = arith.constant 0 : index
    %c0_18 = arith.constant 0 : index
    %c256 = arith.constant 256 : index
    %16 = vector.load %arg6[%c0_17, %c0_18, %c256] : memref<1x16x896xf32, #tpu.memory_space<vmem>>, vector<1x16x128xf32>
    %17 = vector.shape_cast %16 : vector<1x16x128xf32> to vector<16x128xf32>
    %18 = vector.shape_cast %15 : vector<16x128xf32> to vector<1x16x128xf32>
    tpu.vector_store %arg6[%c0_17, %c0_18, %c256], %18 {strides = array<i32>} : memref<1x16x896xf32, #tpu.memory_space<vmem>>, vector<1x16x128xf32>,
    %c0_19 = arith.constant 0 : index
    %c0_20 = arith.constant 0 : index
    %c0_21 = arith.constant 0 : index
    %19 = vector.load %arg1[%c0_19, %c0_20, %c0_21] : memref<1x16x128xf32, #tpu.memory_space<vmem>>, vector<1x16x128xf32>
    %20 = vector.shape_cast %19 : vector<1x16x128xf32> to vector<16x128xf32>
    %c1 = arith.constant 1 : index
    %c0_22 = arith.constant 0 : index
    %c0_23 = arith.constant 0 : index
    %21 = vector.load %arg2[%c1, %c0_22, %c0_23] : memref<3x16x16xf32, #tpu.memory_space<vmem>>, vector<1x16x16xf32>
    %22 = vector.shape_cast %21 : vector<1x16x16xf32> to vector<16x16xf32>
    %cst_24 = arith.constant dense<0.000000e+00> : vector<16x128xf32>
    %23 = tpu.matmul %22, %20, %cst_24 {dimension_numbers = #tpu.dot_dimension_numbers<[1], [0], [0], [1], [0, 0, 1, 1], [], []>} : vector<16x16xf32>, vector<16x128xf32>, vector<16x128xf32> -> vector<16x128xf32>
    %c0_25 = arith.constant 0 : index
    %c0_26 = arith.constant 0 : index
    %c384 = arith.constant 384 : index
    %24 = vector.load %arg6[%c0_25, %c0_26, %c384] : memref<1x16x896xf32, #tpu.memory_space<vmem>>, vector<1x16x128xf32>
    %25 = vector.shape_cast %24 : vector<1x16x128xf32> to vector<16x128xf32>
    %26 = vector.shape_cast %23 : vector<16x128xf32> to vector<1x16x128xf32>
    tpu.vector_store %arg6[%c0_25, %c0_26, %c384], %26 {strides = array<i32>} : memref<1x16x896xf32, #tpu.memory_space<vmem>>, vector<1x16x128xf32>,
    %c1_27 = arith.constant 1 : index
    %c0_28 = arith.constant 0 : index
    %c0_29 = arith.constant 0 : index
    %27 = vector.load %arg2[%c1_27, %c0_28, %c0_29] : memref<3x16x16xf32, #tpu.memory_space<vmem>>, vector<1x16x16xf32>
    %28 = vector.shape_cast %27 : vector<1x16x16xf32> to vector<16x16xf32>
    %cst_30 = arith.constant dense<0.000000e+00> : vector<16x128xf32>
    %29 = tpu.matmul %28, %23, %cst_30 {dimension_numbers = #tpu.dot_dimension_numbers<[1], [0], [0], [1], [0, 0, 1, 1], [], []>} : vector<16x16xf32>, vector<16x128xf32>, vector<16x128xf32> -> vector<16x128xf32>
    %c0_31 = arith.constant 0 : index
    %c0_32 = arith.constant 0 : index
    %c512 = arith.constant 512 : index
    %30 = vector.load %arg6[%c0_31, %c0_32, %c512] : memref<1x16x896xf32, #tpu.memory_space<vmem>>, vector<1x16x128xf32>
    %31 = vector.shape_cast %30 : vector<1x16x128xf32> to vector<16x128xf32>
    %32 = vector.shape_cast %29 : vector<16x128xf32> to vector<1x16x128xf32>
    tpu.vector_store %arg6[%c0_31, %c0_32, %c512], %32 {strides = array<i32>} : memref<1x16x896xf32, #tpu.memory_space<vmem>>, vector<1x16x128xf32>,
    %c0_33 = arith.constant 0 : index
    %c0_34 = arith.constant 0 : index
    %c0_35 = arith.constant 0 : index
    %33 = vector.load %arg1[%c0_33, %c0_34, %c0_35] : memref<1x16x128xf32, #tpu.memory_space<vmem>>, vector<1x16x128xf32>
    %34 = vector.shape_cast %33 : vector<1x16x128xf32> to vector<16x128xf32>
    %c2 = arith.constant 2 : index
    %c0_36 = arith.constant 0 : index
    %c0_37 = arith.constant 0 : index
    %35 = vector.load %arg2[%c2, %c0_36, %c0_37] : memref<3x16x16xf32, #tpu.memory_space<vmem>>, vector<1x16x16xf32>
    %36 = vector.shape_cast %35 : vector<1x16x16xf32> to vector<16x16xf32>
    %cst_38 = arith.constant dense<0.000000e+00> : vector<16x128xf32>
    %37 = tpu.matmul %36, %34, %cst_38 {dimension_numbers = #tpu.dot_dimension_numbers<[1], [0], [0], [1], [0, 0, 1, 1], [], []>} : vector<16x16xf32>, vector<16x128xf32>, vector<16x128xf32> -> vector<16x128xf32>
    %c0_39 = arith.constant 0 : index
    %c0_40 = arith.constant 0 : index
    %c640 = arith.constant 640 : index
    %38 = vector.load %arg6[%c0_39, %c0_40, %c640] : memref<1x16x896xf32, #tpu.memory_space<vmem>>, vector<1x16x128xf32>
    %39 = vector.shape_cast %38 : vector<1x16x128xf32> to vector<16x128xf32>
    %40 = vector.shape_cast %37 : vector<16x128xf32> to vector<1x16x128xf32>
    tpu.vector_store %arg6[%c0_39, %c0_40, %c640], %40 {strides = array<i32>} : memref<1x16x896xf32, #tpu.memory_space<vmem>>, vector<1x16x128xf32>,
    %c2_41 = arith.constant 2 : index
    %c0_42 = arith.constant 0 : index
    %c0_43 = arith.constant 0 : index
    %41 = vector.load %arg2[%c2_41, %c0_42, %c0_43] : memref<3x16x16xf32, #tpu.memory_space<vmem>>, vector<1x16x16xf32>
    %42 = vector.shape_cast %41 : vector<1x16x16xf32> to vector<16x16xf32>
    %cst_44 = arith.constant dense<0.000000e+00> : vector<16x128xf32>
    %43 = tpu.matmul %42, %37, %cst_44 {dimension_numbers = #tpu.dot_dimension_numbers<[1], [0], [0], [1], [0, 0, 1, 1], [], []>} : vector<16x16xf32>, vector<16x128xf32>, vector<16x128xf32> -> vector<16x128xf32>
    %c0_45 = arith.constant 0 : index
    %c0_46 = arith.constant 0 : index
    %c768 = arith.constant 768 : index
    %44 = vector.load %arg6[%c0_45, %c0_46, %c768] : memref<1x16x896xf32, #tpu.memory_space<vmem>>, vector<1x16x128xf32>
    %45 = vector.shape_cast %44 : vector<1x16x128xf32> to vector<16x128xf32>
    %46 = vector.shape_cast %43 : vector<16x128xf32> to vector<1x16x128xf32>
    tpu.vector_store %arg6[%c0_45, %c0_46, %c768], %46 {strides = array<i32>} : memref<1x16x896xf32, #tpu.memory_space<vmem>>, vector<1x16x128xf32>,
    %c0_47 = arith.constant 0 : index
    %c0_48 = arith.constant 0 : index
    %c0_49 = arith.constant 0 : index
    %47 = vector.load %arg6[%c0_47, %c0_48, %c0_49] : memref<1x16x896xf32, #tpu.memory_space<vmem>>, vector<1x16x896xf32>
    %48 = vector.shape_cast %47 : vector<1x16x896xf32> to vector<16x896xf32>
    %c0_50 = arith.constant 0 : index
    %c0_51 = arith.constant 0 : index
    %49 = vector.load %arg3[%c0_50, %c0_51] : memref<896x256xf32, #tpu.memory_space<vmem>>, vector<896x256xf32>
    %cst_52 = arith.constant dense<0.000000e+00> : vector<16x256xf32>
    %50 = tpu.matmul %48, %49, %cst_52 {dimension_numbers = #tpu.dot_dimension_numbers<[1], [0], [0], [1], [0, 0, 1, 1], [], []>} : vector<16x896xf32>, vector<896x256xf32>, vector<16x256xf32> -> vector<16x256xf32>
    %c0_53 = arith.constant 0 : index
    %c0_54 = arith.constant 0 : index
    %51 = vector.load %arg4[%c0_53, %c0_54] : memref<1x256xf32, #tpu.memory_space<vmem>>, vector<1x256xf32>
    %52 = vector.broadcast %51 : vector<1x256xf32> to vector<16x256xf32>
    %53 = arith.addf %50, %52 : vector<16x256xf32>
    %c0_55 = arith.constant 0 : index
    %c0_56 = arith.constant 0 : index
    %c0_57 = arith.constant 0 : index
    %c0_58 = arith.constant 0 : index
    %54 = vector.load %arg5[%c0_55, %c0_56, %c0_57, %c0_58] : memref<1x1x16x256xf32, #tpu.memory_space<vmem>>, vector<1x1x16x256xf32>
    %55 = vector.shape_cast %54 : vector<1x1x16x256xf32> to vector<16x256xf32>
    %56 = vector.shape_cast %53 : vector<16x256xf32> to vector<1x1x16x256xf32>
    tpu.vector_store %arg5[%c0_55, %c0_56, %c0_57, %c0_58], %56 {strides = array<i32>} : memref<1x1x16x256xf32, #tpu.memory_space<vmem>>, vector<1x1x16x256xf32>,
    return
  }
  func.func @transform_0(%arg0: i32) -> (i32, i32, i32) {
    %c0_i32 = arith.constant 0 : i32
    %c0_i32_0 = arith.constant 0 : i32
    %c0_i32_1 = arith.constant 0 : i32
    return %arg0, %c0_i32, %c0_i32_0 : i32, i32, i32
  }
  func.func @transform_1(%arg0: i32) -> (i32, i32, i32) {
    %c0_i32 = arith.constant 0 : i32
    %c0_i32_0 = arith.constant 0 : i32
    %c0_i32_1 = arith.constant 0 : i32
    %c0_i32_2 = arith.constant 0 : i32
    return %c0_i32, %c0_i32_0, %c0_i32_1 : i32, i32, i32
  }
  func.func @transform_2(%arg0: i32) -> (i32, i32) {
    %c0_i32 = arith.constant 0 : i32
    %c0_i32_0 = arith.constant 0 : i32
    %c0_i32_1 = arith.constant 0 : i32
    return %c0_i32, %c0_i32_0 : i32, i32
  }
  func.func @transform_3(%arg0: i32) -> (i32, i32) {
    %c0_i32 = arith.constant 0 : i32
    %c0_i32_0 = arith.constant 0 : i32
    %c0_i32_1 = arith.constant 0 : i32
    return %c0_i32, %c0_i32_0 : i32, i32
  }
  func.func @transform_4(%arg0: i32) -> (i32, i32, i32, i32) {
    %c0_i32 = arith.constant 0 : i32
    %c0_i32_0 = arith.constant 0 : i32
    %c0_i32_1 = arith.constant 0 : i32
    %c0_i32_2 = arith.constant 0 : i32
    return %arg0, %c0_i32, %c0_i32_0, %c0_i32_1 : i32, i32, i32, i32
  }
}

</mosaic_0001>

<llo_original>
// kernel: tpu_custom_call.1
$region0: #{tpu_custom_call.1}
  #allocation0 [shape = 'u32[]', space=smem, size = 0x4, offset = 0x4, fixed_abs, tag = 'smem constant byte address 0x4 - core index']
  #allocation1 [shape = 'u32[144,128]{1,0:T(1,128)}', space=vmem, size = 0x12000, scoped, tag = 'internal scratch']
  #allocation2 [shape = 'f32[1,16,896]{2,1,0:T(8,128)}', space=vmem, size = 0xe000, scoped, tag = 'scratch operand']
  %s0 = inlined_call_operand.hbm [shape: f32[2,16,128], index: 0, kind: input, shape index: {}]
  %s1 = inlined_call_operand.hbm [shape: f32[3,16,16], index: 1, kind: input, shape index: {}]
  %s2 = inlined_call_operand.hbm [shape: f32[896,256], index: 2, kind: input, shape index: {}]
  %s3 = inlined_call_operand.vmem [shape: f32[1,256], index: 3, kind: input, shape index: {}]
  %s4 = inlined_call_operand.hbm [shape: f32[2,1,16,256], index: 4, kind: output, shape index: {}]
  %s5 = sld [smem:[#allocation0]]
  $region61: #{tpu_custom_call.1} parent=0
    _
  %s7 = ssub.s32 1, %s5
  %s8 = scalar_select 0, %s7, %s5
  $region1: #{tpu_custom_call.1} parent=0
    #allocation3 [shape = 'u8[16384]{0}', space=vmem, size = 0x4000, scoped, tag = 'input window, operand 0']
    #allocation4 [shape = 's32[2]{0}', space=sflag, size = 0x8, scoped, tag = 'scoped memory for tpu_custom_call.1']
    #allocation5 [shape = 's32[2]{0}', space=sflag, size = 0x8, scoped, tag = 'scoped memory for tpu_custom_call.1']
    #allocation6 [shape = 'u8[24576]{0}', space=vmem, size = 0x6000, scoped, tag = 'input window, operand 1, single buffered']
    #allocation7 [shape = 's32[1]{0}', space=sflag, size = 0x4, scoped, tag = 'scoped memory for tpu_custom_call.1']
    #allocation8 [shape = 'u8[917504]{0}', space=vmem, size = 0xe0000, scoped, tag = 'input window, operand 2, single buffered']
    #allocation9 [shape = 'u8[32768]{0}', space=vmem, size = 0x8000, scoped, tag = 'output window, operand 0']
    %9 = vsyncpa [#allocation4], 0
    %s10 = scalar_lea.sflag [#allocation4], 1
    %11 = vsyncpa %s10, 0
    %12 = vsyncpa [#allocation7], 0
    %13 = vsyncpa [#allocation5], 0
    %s14 = scalar_lea.sflag [#allocation5], 1
    %15 = vsyncpa %s14, 0
    loop: start=0, step=1, limit=4
    $region2: #{tpu_custom_call.1} parent=1 // loop_pre_header
      _
    $region3: #{tpu_custom_call.1} parent=1 // loop_header
      %s17 = sphi 0, %s21
      %p18 = scmp.ge.s32.totalorder %s17, 4
      %s27 = sphi 0, %s29
      %s30 = sphi 0, %s27
      %s31 = sphi 0, %s30
      %s47 = sphi 0, %s31
      %s51 = sphi 0, %s51
      %s53 = sphi 0, %s51
      %s54 = sphi 0, %s53
      %s68 = sphi 0, %s54
      %s72 = sphi 0, %s72
      %s74 = sphi 0, %s72
      %s75 = sphi 0, %s74
      %s89 = sphi 0, %s75
      %s93 = sphi 0, %s93
      %s95 = sphi 0, %s93
      %s96 = sphi 0, %s95
      %s110 = sphi 0, %s96
      %s116 = sphi 0, %s118
      %s119 = sphi 0, %s116
      %s120 = sphi 0, %s119
      %s136 = sphi 0, %s120
    $region4: #{tpu_custom_call.1} parent=1 // loop_header_branch
      %20 = sbr.rel (%p18) target = $region8
    $region5: #{tpu_custom_call.1} parent=1 // loop_body
      %s22 = ssub.s32 %s17, 1
      %s23 = ssub.s32 %s17, 2
      %s24 = sadd.s32 %s17, 1
      %s25 = ssub.s32 %s17, %s24
      %p26 = scmp.eq.s32.totalorder %s25, 0
      %s28 = sadd.s32 %s27, 1
      %s29 = scalar_select %p26, %s27, %s28
      %p32 = pneg %p26
      %p33 = scmp.eq.s32.totalorder %s17, 1
      %p34 = por %p32, %p33
      %p35 = scmp.ne.s32.totalorder %s27, %s30
      %p36 = scmp.eq.s32.totalorder %s17, 0
      %p37 = por %p35, %p36
      %p38 = scmp.ne.s32.totalorder %s27, %s30
      %p39 = scmp.eq.s32.totalorder %s22, 1
      %p40 = por %p38, %p39
      %p41 = scmp.ne.s32.totalorder %s30, %s31
      %p42 = scmp.eq.s32.totalorder %s22, 0
      %p43 = por %p41, %p42
      %p44 = scmp.ne.s32.totalorder %s30, %s31
      %p45 = scmp.eq.s32.totalorder %s23, 1
      %p46 = por %p44, %p45
      %p48 = scmp.ne.s32.totalorder %s31, %s47
      %p49 = scmp.eq.s32.totalorder %s23, 0
      %p50 = por %p48, %p49
      %s52 = sadd.s32 %s51, 1
      %p55 = scmp.eq.s32.totalorder %s17, 1
      %p56 = scmp.ne.s32.totalorder %s51, %s53
      %p57 = scmp.eq.s32.totalorder %s17, 0
      %p58 = por %p56, %p57
      %p59 = scmp.ne.s32.totalorder %s51, %s53
      %p60 = scmp.eq.s32.totalorder %s22, 1
      %p61 = por %p59, %p60
      %p62 = scmp.ne.s32.totalorder %s53, %s54
      %p63 = scmp.eq.s32.totalorder %s22, 0
      %p64 = por %p62, %p63
      %p65 = scmp.ne.s32.totalorder %s53, %s54
      %p66 = scmp.eq.s32.totalorder %s23, 1
      %p67 = por %p65, %p66
      %p69 = scmp.ne.s32.totalorder %s54, %s68
      %p70 = scmp.eq.s32.totalorder %s23, 0
      %p71 = por %p69, %p70
      %s73 = sadd.s32 %s72, 1
      %p76 = scmp.eq.s32.totalorder %s17, 1
      %p77 = scmp.ne.s32.totalorder %s72, %s74
      %p78 = scmp.eq.s32.totalorder %s17, 0
      %p79 = por %p77, %p78
      %p80 = scmp.ne.s32.totalorder %s72, %s74
      %p81 = scmp.eq.s32.totalorder %s22, 1
      %p82 = por %p80, %p81
      %p83 = scmp.ne.s32.totalorder %s74, %s75
      %p84 = scmp.eq.s32.totalorder %s22, 0
      %p85 = por %p83, %p84
      %p86 = scmp.ne.s32.totalorder %s74, %s75
      %p87 = scmp.eq.s32.totalorder %s23, 1
      %p88 = por %p86, %p87
      %p90 = scmp.ne.s32.totalorder %s75, %s89
      %p91 = scmp.eq.s32.totalorder %s23, 0
      %p92 = por %p90, %p91
      %s94 = sadd.s32 %s93, 1
      %p97 = scmp.eq.s32.totalorder %s17, 1
      %p98 = scmp.ne.s32.totalorder %s93, %s95
      %p99 = scmp.eq.s32.totalorder %s17, 0
      %p100 = por %p98, %p99
      %p101 = scmp.ne.s32.totalorder %s93, %s95
      %p102 = scmp.eq.s32.totalorder %s22, 1
      %p103 = por %p101, %p102
      %p104 = scmp.ne.s32.totalorder %s95, %s96
      %p105 = scmp.eq.s32.totalorder %s22, 0
      %p106 = por %p104, %p105
      %p107 = scmp.ne.s32.totalorder %s95, %s96
      %p108 = scmp.eq.s32.totalorder %s23, 1
      %p109 = por %p107, %p108
      %p111 = scmp.ne.s32.totalorder %s96, %s110
      %p112 = scmp.eq.s32.totalorder %s23, 0
      %p113 = por %p111, %p112
      %s114 = ssub.s32 %s17, %s24
      %p115 = scmp.eq.s32.totalorder %s114, 0
      %s117 = sadd.s32 %s116, 1
      %s118 = scalar_select %p115, %s116, %s117
      %p121 = pneg %p115
      %p122 = scmp.eq.s32.totalorder %s17, 1
      %p123 = por %p121, %p122
      %p124 = scmp.ne.s32.totalorder %s116, %s119
      %p125 = scmp.eq.s32.totalorder %s17, 0
      %p126 = por %p124, %p125
      %p127 = scmp.ne.s32.totalorder %s116, %s119
      %p128 = scmp.eq.s32.totalorder %s22, 1
      %p129 = por %p127, %p128
      %p130 = scmp.ne.s32.totalorder %s119, %s120
      %p131 = scmp.eq.s32.totalorder %s22, 0
      %p132 = por %p130, %p131
      %p133 = scmp.ne.s32.totalorder %s119, %s120
      %p134 = scmp.eq.s32.totalorder %s23, 1
      %p135 = por %p133, %p134
      %p137 = scmp.ne.s32.totalorder %s120, %s136
      %p138 = scmp.eq.s32.totalorder %s23, 0
      %p139 = por %p137, %p138
      %p140 = scmp.le.s32.totalorder 1, %s17
      %p141 = scmp.lt.s32.totalorder %s17, 3
      %p142 = pnand %p140, %p141
      %p143 = pneg %p142
      // Predicated region
      $region9: #{tpu_custom_call.1} parent=5 // pred_check
        _
      $region10: #{tpu_custom_call.1} parent=5 // pred_check_branch
        %145 = sbr.rel (%p142) target = $region12
      $region11: #{tpu_custom_call.1} parent=5 // pred_region
        %s146 = ssub.s32 %s17, 1
        // Predicated region
        $region13: #{tpu_custom_call.1} parent=11 // pred_check
          %p147 = pneg %p64
        $region14: #{tpu_custom_call.1} parent=11 // pred_check_branch
          %149 = sbr.rel (%p147) target = $region16
        $region15: #{tpu_custom_call.1} parent=11 // pred_region
          %s151 = ssub.s32 768, 768
          %152 = vsyncadd [#allocation7], %s151
          %s153 = sshll.u32 [#allocation6], 4
          %s154 = int_to_ptr.vmem [resolvable:$true] %s153
          %159 = dma.hbm_to_vmem [thread:$0]  %s1, 768, %s154, [#allocation7], 128, 128, 8
        $region16: #{tpu_custom_call.1} parent=11 // pred_fallthru
          _
        // Predicated region
        $region17: #{tpu_custom_call.1} parent=11 // pred_check
          %p160 = pneg %p85
        $region18: #{tpu_custom_call.1} parent=11 // pred_check_branch
          %162 = sbr.rel (%p160) target = $region20
        $region19: #{tpu_custom_call.1} parent=11 // pred_region
          %s164 = ssub.s32 28672, 28672
          %165 = vsyncadd [#allocation7], %s164
          %s166 = sshll.u32 [#allocation8], 4
          %s167 = int_to_ptr.vmem [resolvable:$true] %s166
          %172 = dma.hbm_to_vmem [thread:$0]  %s2, 28672, %s167, [#allocation7], 256, 256, 16
        $region20: #{tpu_custom_call.1} parent=11 // pred_fallthru
          _
        // Predicated region
        $region21: #{tpu_custom_call.1} parent=11 // pred_check
          %p173 = pneg %p106
        $region22: #{tpu_custom_call.1} parent=11 // pred_check_branch
          %175 = sbr.rel (%p173) target = $region24
        $region23: #{tpu_custom_call.1} parent=11 // pred_region
          _
        $region24: #{tpu_custom_call.1} parent=11 // pred_fallthru
          _
      $region12: #{tpu_custom_call.1} parent=5 // pred_fallthru
        _
      %p176 = scmp.lt.s32.totalorder %s17, 2
      // Predicated region
      $region25: #{tpu_custom_call.1} parent=5 // pred_check
        %p177 = pneg %p176
      $region26: #{tpu_custom_call.1} parent=5 // pred_check_branch
        %179 = sbr.rel (%p177) target = $region28
      $region27: #{tpu_custom_call.1} parent=5 // pred_region
        // Predicated region
        $region29: #{tpu_custom_call.1} parent=27 // pred_check
          %p180 = pneg %p37
        $region30: #{tpu_custom_call.1} parent=27 // pred_check_branch
          %182 = sbr.rel (%p180) target = $region32
        $region31: #{tpu_custom_call.1} parent=27 // pred_region
          %s183 = sand.u32 %s27, 1
          %s184 = scalar_lea.sflag [#allocation4], %s183
          %s185 = sand.u32 %s27, 1
          %s186 = smul.addr %s185, 16
          %s187 = scalar_lea.vmem [#allocation3], %s186
          %s189 = ssub.s32 256, 256
          %190 = vsyncadd %s184, %s189
          %s191 = smul.addr %s17, 2
          %s192 = smul.addr %s191, 128
          %s193 = scalar_lea.hbm %s0, %s192
          %s194 = sshll.u32 %s187, 4
          %s195 = int_to_ptr.vmem [resolvable:$true] %s194
          %200 = dma.hbm_to_vmem [thread:$0]  %s193, 256, %s195, %s184, 128, 128, 8
        $region32: #{tpu_custom_call.1} parent=27 // pred_fallthru
          _
      $region28: #{tpu_custom_call.1} parent=5 // pred_fallthru
        _
      %p201 = scmp.le.s32.totalorder 1, %s17
      %p202 = scmp.lt.s32.totalorder %s17, 3
      %p203 = pnand %p201, %p202
      %p204 = pneg %p203
      // Predicated region
      $region33: #{tpu_custom_call.1} parent=5 // pred_check
        _
      $region34: #{tpu_custom_call.1} parent=5 // pred_check_branch
        %206 = sbr.rel (%p203) target = $region36
      $region35: #{tpu_custom_call.1} parent=5 // pred_region
        %s207 = ssub.s32 %s17, 1
        %s208 = sand.u32 %s30, 1
        %s209 = scalar_lea.sflag [#allocation4], %s208
        %s210 = sand.u32 %s30, 1
        %s211 = smul.addr %s210, 16
        %s212 = scalar_lea.vmem [#allocation3], %s211
        // Predicated region
        $region37: #{tpu_custom_call.1} parent=35 // pred_check
          %p213 = pneg %p43
        $region38: #{tpu_custom_call.1} parent=35 // pred_check_branch
          %215 = sbr.rel (%p213) target = $region40
        $region39: #{tpu_custom_call.1} parent=35 // pred_region
          %216 = dma.done %s209, 256
        $region40: #{tpu_custom_call.1} parent=35 // pred_fallthru
          _
        // Predicated region
        $region41: #{tpu_custom_call.1} parent=35 // pred_check
          %p217 = pneg %p64
        $region42: #{tpu_custom_call.1} parent=35 // pred_check_branch
          %219 = sbr.rel (%p217) target = $region44
        $region43: #{tpu_custom_call.1} parent=35 // pred_region
          %220 = dma.done [#allocation7], 768
        $region44: #{tpu_custom_call.1} parent=35 // pred_fallthru
          _
        // Predicated region
        $region45: #{tpu_custom_call.1} parent=35 // pred_check
          %p221 = pneg %p85
        $region46: #{tpu_custom_call.1} parent=35 // pred_check_branch
          %223 = sbr.rel (%p221) target = $region48
        $region47: #{tpu_custom_call.1} parent=35 // pred_region
          %224 = dma.done [#allocation7], 28672
        $region48: #{tpu_custom_call.1} parent=35 // pred_fallthru
          _
        %s225 = sand.u32 %s30, 1
        %s226 = scalar_lea.sflag [#allocation4], %s225
        %s227 = sand.u32 %s30, 1
        %s228 = smul.addr %s227, 16
        %s229 = scalar_lea.vmem [#allocation3], %s228
        %p230 = pneg %p43
        %p231 = pneg %p40
        %p232 = pneg %p64
        %p233 = pneg %p61
        %p234 = pneg %p85
        %p235 = pneg %p82
        %p236 = pneg %p106
        %p237 = pneg %p103
        %p238 = pneg %p132
        %p239 = pneg %p129
        %s240 = sand.u32 %s119, 1
        %s241 = scalar_lea.sflag [#allocation5], %s240
        %s242 = sand.u32 %s119, 1
        %s243 = smul.addr %s242, 32
        %s244 = scalar_lea.vmem [#allocation9], %s243
        %v245 = vld [vmem:[%s212] sm:$0xff]
        %v246 = vld [vmem:[%s212 + $0x8] sm:$0xff]
        %247 = vst [vmem:[#allocation2] sm:$0xff] %v245
        %248 = vst [vmem:[#allocation2 + $0x38] sm:$0xff] %v246
        %v249 = vld [vmem:[%s212] sm:$0xff]
        %v250 = vld [vmem:[%s212 + $0x8] sm:$0xff]
        %v251 = vld [vmem:[#allocation6] sm:$0xff]
        %v252 = vld [vmem:[#allocation6 + $0x8] sm:$0xff]
        %vm253 = vcmask 130048
        %v255 = vsel %vm253, %v251, 0
        %v258 = vsel %vm253, %v252, 0
        %260 = vmatprep.subr.mxu0 0.0
        %261 = vmatpush1.msra.mxu0 %v249
        %262 = vmatprep.subr.mxu0 0.0
        %263 = vmatpush1.msra.mxu0 %v250
        %264 = vmatprep.subr.mxu0 0.0
        %265 = vmatpush1.msra.mxu0 0.0
        %266 = vmatprep.subr.mxu0 0.0
        %267 = vmatpush1.msra.mxu0 0.0
        %268 = vmatprep.subr.mxu0 0.0
        %269 = vmatpush1.msra.mxu0 0.0
        %270 = vmatprep.subr.mxu0 0.0
        %271 = vmatpush1.msra.mxu0 0.0
        %272 = vmatprep.subr.mxu0 0.0
        %273 = vmatpush1.msra.mxu0 0.0
        %274 = vmatprep.subr.mxu0 0.0
        %275 = vmatpush1.msra.mxu0 0.0
        %276 = vmatprep.subr.mxu0 0.0
        %277 = vmatpush1.msra.mxu0 0.0
        %278 = vmatprep.subr.mxu0 0.0
        %279 = vmatpush1.msra.mxu0 0.0
        %280 = vmatprep.subr.mxu0 0.0
        %281 = vmatpush1.msra.mxu0 0.0
        %282 = vmatprep.subr.mxu0 0.0
        %283 = vmatpush1.msra.mxu0 0.0
        %284 = vmatprep.subr.mxu0 0.0
        %285 = vmatpush1.msra.mxu0 0.0
        %286 = vmatprep.subr.mxu0 0.0
        %287 = vmatpush1.msra.mxu0 0.0
        %288 = vmatprep.subr.mxu0 0.0
        %289 = vmatpush1.msra.mxu0 0.0
        %290 = vmatprep.subr.mxu0 0.0
        %291 = vmatpush1.msra.mxu0 0.0
        %292 = vmatprep.subr.mxu0 0.0
        %293 = vmatpush1.msra.mxu0 0.0
        %294 = vmatprep.subr.mxu0 0.0
        %295 = vmatpush1.msra.mxu0 0.0
        %296 = vmatprep.subr.mxu0 0.0
        %297 = vmatpush1.msra.mxu0 0.0
        %298 = vmatprep.subr.mxu0 0.0
        %299 = vmatpush1.msra.mxu0 0.0
        %300 = vmatprep.subr.mxu0 0.0
        %301 = vmatpush1.msra.mxu0 0.0
        %302 = vmatprep.subr.mxu0 0.0
        %303 = vmatpush1.msra.mxu0 0.0
        %304 = vmatprep.subr.mxu0 0.0
        %305 = vmatpush1.msra.mxu0 0.0
        %306 = vmatprep.subr.mxu0 0.0
        %307 = vmatpush1.msra.mxu0 0.0
        %308 = vmatprep.subr.mxu0 0.0
        %309 = vmatpush1.msra.mxu0 0.0
        %310 = vmatprep.subr.mxu0 0.0
        %311 = vmatpush1.msra.mxu0 0.0
        %312 = vmatprep.subr.mxu0 0.0
        %313 = vmatpush1.msra.mxu0 0.0
        %314 = vmatprep.subr.mxu0 0.0
        %315 = vmatpush1.msra.mxu0 0.0
        %316 = vmatprep.subr.mxu0 0.0
        %317 = vmatpush1.msra.mxu0 0.0
        %318 = vmatprep.subr.mxu0 0.0
        %319 = vmatpush1.msra.mxu0 0.0
        %320 = vmatprep.subr.mxu0 0.0
        %321 = vmatpush1.msra.mxu0 0.0
        %322 = vmatprep.subr.mxu0 0.0
        %323 = vmatpush1.msra.mxu0 0.0
        %324 = vmatprep.mubr.f32.mxu0 0.0
        %325 = vmatmul.mubr.f32.gmra.mrb[0].mxu0 %v255
        %v326 = vpop.f32.mrb[0].mxu0
        %v327 = vadd.f32 0.0, %v326
        %v328 = vpop.f32.mrb[0].mxu0
        %329 = vmatprep.mubr.f32.mxu0 0.0
        %330 = vmatmul.mubr.f32.gmra.mrb[0].mxu0 %v258
        %v331 = vpop.f32.mrb[0].mxu0
        %v332 = vadd.f32 0.0, %v331
        %v333 = vpop.f32.mrb[0].mxu0
        %334 = vdwg.mxu0
        %335 = vst [vmem:[#allocation2 + $0x8] sm:$0xff] %v327
        %336 = vst [vmem:[#allocation2 + $0x40] sm:$0xff] %v332
        %v337 = vld [vmem:[#allocation6] sm:$0xff]
        %v338 = vld [vmem:[#allocation6 + $0x8] sm:$0xff]
        %v340 = vsel %vm253, %v337, 0
        %v343 = vsel %vm253, %v338, 0
        %345 = vmatprep.subr.mxu0 0.0
        %346 = vmatpush1.msra.mxu0 %v327
        %347 = vmatprep.subr.mxu0 0.0
        %348 = vmatpush1.msra.mxu0 %v332
        %349 = vmatprep.subr.mxu0 0.0
        %350 = vmatpush1.msra.mxu0 0.0
        %351 = vmatprep.subr.mxu0 0.0
        %352 = vmatpush1.msra.mxu0 0.0
        %353 = vmatprep.subr.mxu0 0.0
        %354 = vmatpush1.msra.mxu0 0.0
        %355 = vmatprep.subr.mxu0 0.0
        %356 = vmatpush1.msra.mxu0 0.0
        %357 = vmatprep.subr.mxu0 0.0
        %358 = vmatpush1.msra.mxu0 0.0
        %359 = vmatprep.subr.mxu0 0.0
        %360 = vmatpush1.msra.mxu0 0.0
        %361 = vmatprep.subr.mxu0 0.0
        %362 = vmatpush1.msra.mxu0 0.0
        %363 = vmatprep.subr.mxu0 0.0
        %364 = vmatpush1.msra.mxu0 0.0
        %365 = vmatprep.subr.mxu0 0.0
        %366 = vmatpush1.msra.mxu0 0.0
        %367 = vmatprep.subr.mxu0 0.0
        %368 = vmatpush1.msra.mxu0 0.0
        %369 = vmatprep.subr.mxu0 0.0
        %370 = vmatpush1.msra.mxu0 0.0
        %371 = vmatprep.subr.mxu0 0.0
        %372 = vmatpush1.msra.mxu0 0.0
        %373 = vmatprep.subr.mxu0 0.0
        %374 = vmatpush1.msra.mxu0 0.0
        %375 = vmatprep.subr.mxu0 0.0
        %376 = vmatpush1.msra.mxu0 0.0
        %377 = vmatprep.subr.mxu0 0.0
        %378 = vmatpush1.msra.mxu0 0.0
        %379 = vmatprep.subr.mxu0 0.0
        %380 = vmatpush1.msra.mxu0 0.0
        %381 = vmatprep.subr.mxu0 0.0
        %382 = vmatpush1.msra.mxu0 0.0
        %383 = vmatprep.subr.mxu0 0.0
        %384 = vmatpush1.msra.mxu0 0.0
        %385 = vmatprep.subr.mxu0 0.0
        %386 = vmatpush1.msra.mxu0 0.0
        %387 = vmatprep.subr.mxu0 0.0
        %388 = vmatpush1.msra.mxu0 0.0
        %389 = vmatprep.subr.mxu0 0.0
        %390 = vmatpush1.msra.mxu0 0.0
        %391 = vmatprep.subr.mxu0 0.0
        %392 = vmatpush1.msra.mxu0 0.0
        %393 = vmatprep.subr.mxu0 0.0
        %394 = vmatpush1.msra.mxu0 0.0
        %395 = vmatprep.subr.mxu0 0.0
        %396 = vmatpush1.msra.mxu0 0.0
        %397 = vmatprep.subr.mxu0 0.0
        %398 = vmatpush1.msra.mxu0 0.0
        %399 = vmatprep.subr.mxu0 0.0
        %400 = vmatpush1.msra.mxu0 0.0
        %401 = vmatprep.subr.mxu0 0.0
        %402 = vmatpush1.msra.mxu0 0.0
        %403 = vmatprep.subr.mxu0 0.0
        %404 = vmatpush1.msra.mxu0 0.0
        %405 = vmatprep.subr.mxu0 0.0
        %406 = vmatpush1.msra.mxu0 0.0
        %407 = vmatprep.subr.mxu0 0.0
        %408 = vmatpush1.msra.mxu0 0.0
        %409 = vmatprep.mubr.f32.mxu0 0.0
        %410 = vmatmul.mubr.f32.gmra.mrb[0].mxu0 %v340
        %v411 = vpop.f32.mrb[0].mxu0
        %v412 = vadd.f32 0.0, %v411
        %v413 = vpop.f32.mrb[0].mxu0
        %414 = vmatprep.mubr.f32.mxu0 0.0
        %415 = vmatmul.mubr.f32.gmra.mrb[0].mxu0 %v343
        %v416 = vpop.f32.mrb[0].mxu0
        %v417 = vadd.f32 0.0, %v416
        %v418 = vpop.f32.mrb[0].mxu0
        %419 = vdwg.mxu0
        %420 = vst [vmem:[#allocation2 + $0x10] sm:$0xff] %v412
        %421 = vst [vmem:[#allocation2 + $0x48] sm:$0xff] %v417
        %v422 = vld [vmem:[%s212] sm:$0xff]
        %v423 = vld [vmem:[%s212 + $0x8] sm:$0xff]
        %s424 = scalar_lea.vmem [#allocation6], 16
        %v425 = vld [vmem:[%s424] sm:$0xff]
        %v426 = vld [vmem:[%s424 + $0x8] sm:$0xff]
        %v428 = vsel %vm253, %v425, 0
        %v431 = vsel %vm253, %v426, 0
        %433 = vmatprep.subr.mxu0 0.0
        %434 = vmatpush1.msra.mxu0 %v422
        %435 = vmatprep.subr.mxu0 0.0
        %436 = vmatpush1.msra.mxu0 %v423
        %437 = vmatprep.subr.mxu0 0.0
        %438 = vmatpush1.msra.mxu0 0.0
        %439 = vmatprep.subr.mxu0 0.0
        %440 = vmatpush1.msra.mxu0 0.0
        %441 = vmatprep.subr.mxu0 0.0
        %442 = vmatpush1.msra.mxu0 0.0
        %443 = vmatprep.subr.mxu0 0.0
        %444 = vmatpush1.msra.mxu0 0.0
        %445 = vmatprep.subr.mxu0 0.0
        %446 = vmatpush1.msra.mxu0 0.0
        %447 = vmatprep.subr.mxu0 0.0
        %448 = vmatpush1.msra.mxu0 0.0
        %449 = vmatprep.subr.mxu0 0.0
        %450 = vmatpush1.msra.mxu0 0.0
        %451 = vmatprep.subr.mxu0 0.0
        %452 = vmatpush1.msra.mxu0 0.0
        %453 = vmatprep.subr.mxu0 0.0
        %454 = vmatpush1.msra.mxu0 0.0
        %455 = vmatprep.subr.mxu0 0.0
        %456 = vmatpush1.msra.mxu0 0.0
        %457 = vmatprep.subr.mxu0 0.0
        %458 = vmatpush1.msra.mxu0 0.0
        %459 = vmatprep.subr.mxu0 0.0
        %460 = vmatpush1.msra.mxu0 0.0
        %461 = vmatprep.subr.mxu0 0.0
        %462 = vmatpush1.msra.mxu0 0.0
        %463 = vmatprep.subr.mxu0 0.0
        %464 = vmatpush1.msra.mxu0 0.0
        %465 = vmatprep.subr.mxu0 0.0
        %466 = vmatpush1.msra.mxu0 0.0
        %467 = vmatprep.subr.mxu0 0.0
        %468 = vmatpush1.msra.mxu0 0.0
        %469 = vmatprep.subr.mxu0 0.0
        %470 = vmatpush1.msra.mxu0 0.0
        %471 = vmatprep.subr.mxu0 0.0
        %472 = vmatpush1.msra.mxu0 0.0
        %473 = vmatprep.subr.mxu0 0.0
        %474 = vmatpush1.msra.mxu0 0.0
        %475 = vmatprep.subr.mxu0 0.0
        %476 = vmatpush1.msra.mxu0 0.0
        %477 = vmatprep.subr.mxu0 0.0
        %478 = vmatpush1.msra.mxu0 0.0
        %479 = vmatprep.subr.mxu0 0.0
        %480 = vmatpush1.msra.mxu0 0.0
        %481 = vmatprep.subr.mxu0 0.0
        %482 = vmatpush1.msra.mxu0 0.0
        %483 = vmatprep.subr.mxu0 0.0
        %484 = vmatpush1.msra.mxu0 0.0
        %485 = vmatprep.subr.mxu0 0.0
        %486 = vmatpush1.msra.mxu0 0.0
        %487 = vmatprep.subr.mxu0 0.0
        %488 = vmatpush1.msra.mxu0 0.0
        %489 = vmatprep.subr.mxu0 0.0
        %490 = vmatpush1.msra.mxu0 0.0
        %491 = vmatprep.subr.mxu0 0.0
        %492 = vmatpush1.msra.mxu0 0.0
        %493 = vmatprep.subr.mxu0 0.0
        %494 = vmatpush1.msra.mxu0 0.0
        %495 = vmatprep.subr.mxu0 0.0
        %496 = vmatpush1.msra.mxu0 0.0
        %497 = vmatprep.mubr.f32.mxu0 0.0
        %498 = vmatmul.mubr.f32.gmra.mrb[0].mxu0 %v428
        %v499 = vpop.f32.mrb[0].mxu0
        %v500 = vadd.f32 0.0, %v499
        %v501 = vpop.f32.mrb[0].mxu0
        %502 = vmatprep.mubr.f32.mxu0 0.0
        %503 = vmatmul.mubr.f32.gmra.mrb[0].mxu0 %v431
        %v504 = vpop.f32.mrb[0].mxu0
        %v505 = vadd.f32 0.0, %v504
        %v506 = vpop.f32.mrb[0].mxu0
        %507 = vdwg.mxu0
        %508 = vst [vmem:[#allocation2 + $0x18] sm:$0xff] %v500
        %509 = vst [vmem:[#allocation2 + $0x50] sm:$0xff] %v505
        %v510 = vld [vmem:[%s424] sm:$0xff]
        %v511 = vld [vmem:[%s424 + $0x8] sm:$0xff]
        %v513 = vsel %vm253, %v510, 0
        %v516 = vsel %vm253, %v511, 0
        %518 = vmatprep.subr.mxu0 0.0
        %519 = vmatpush1.msra.mxu0 %v500
        %520 = vmatprep.subr.mxu0 0.0
        %521 = vmatpush1.msra.mxu0 %v505
        %522 = vmatprep.subr.mxu0 0.0
        %523 = vmatpush1.msra.mxu0 0.0
        %524 = vmatprep.subr.mxu0 0.0
        %525 = vmatpush1.msra.mxu0 0.0
        %526 = vmatprep.subr.mxu0 0.0
        %527 = vmatpush1.msra.mxu0 0.0
        %528 = vmatprep.subr.mxu0 0.0
        %529 = vmatpush1.msra.mxu0 0.0
        %530 = vmatprep.subr.mxu0 0.0
        %531 = vmatpush1.msra.mxu0 0.0
        %532 = vmatprep.subr.mxu0 0.0
        %533 = vmatpush1.msra.mxu0 0.0
        %534 = vmatprep.subr.mxu0 0.0
        %535 = vmatpush1.msra.mxu0 0.0
        %536 = vmatprep.subr.mxu0 0.0
        %537 = vmatpush1.msra.mxu0 0.0
        %538 = vmatprep.subr.mxu0 0.0
        %539 = vmatpush1.msra.mxu0 0.0
        %540 = vmatprep.subr.mxu0 0.0
        %541 = vmatpush1.msra.mxu0 0.0
        %542 = vmatprep.subr.mxu0 0.0
        %543 = vmatpush1.msra.mxu0 0.0
        %544 = vmatprep.subr.mxu0 0.0
        %545 = vmatpush1.msra.mxu0 0.0
        %546 = vmatprep.subr.mxu0 0.0
        %547 = vmatpush1.msra.mxu0 0.0
        %548 = vmatprep.subr.mxu0 0.0
        %549 = vmatpush1.msra.mxu0 0.0
        %550 = vmatprep.subr.mxu0 0.0
        %551 = vmatpush1.msra.mxu0 0.0
        %552 = vmatprep.subr.mxu0 0.0
        %553 = vmatpush1.msra.mxu0 0.0
        %554 = vmatprep.subr.mxu0 0.0
        %555 = vmatpush1.msra.mxu0 0.0
        %556 = vmatprep.subr.mxu0 0.0
        %557 = vmatpush1.msra.mxu0 0.0
        %558 = vmatprep.subr.mxu0 0.0
        %559 = vmatpush1.msra.mxu0 0.0
        %560 = vmatprep.subr.mxu0 0.0
        %561 = vmatpush1.msra.mxu0 0.0
        %562 = vmatprep.subr.mxu0 0.0
        %563 = vmatpush1.msra.mxu0 0.0
        %564 = vmatprep.subr.mxu0 0.0
        %565 = vmatpush1.msra.mxu0 0.0
        %566 = vmatprep.subr.mxu0 0.0
        %567 = vmatpush1.msra.mxu0 0.0
        %568 = vmatprep.subr.mxu0 0.0
        %569 = vmatpush1.msra.mxu0 0.0
        %570 = vmatprep.subr.mxu0 0.0
        %571 = vmatpush1.msra.mxu0 0.0
        %572 = vmatprep.subr.mxu0 0.0
        %573 = vmatpush1.msra.mxu0 0.0
        %574 = vmatprep.subr.mxu0 0.0
        %575 = vmatpush1.msra.mxu0 0.0
        %576 = vmatprep.subr.mxu0 0.0
        %577 = vmatpush1.msra.mxu0 0.0
        %578 = vmatprep.subr.mxu0 0.0
        %579 = vmatpush1.msra.mxu0 0.0
        %580 = vmatprep.subr.mxu0 0.0
        %581 = vmatpush1.msra.mxu0 0.0
        %582 = vmatprep.mubr.f32.mxu0 0.0
        %583 = vmatmul.mubr.f32.gmra.mrb[0].mxu0 %v513
        %v584 = vpop.f32.mrb[0].mxu0
        %v585 = vadd.f32 0.0, %v584
        %v586 = vpop.f32.mrb[0].mxu0
        %587 = vmatprep.mubr.f32.mxu0 0.0
        %588 = vmatmul.mubr.f32.gmra.mrb[0].mxu0 %v516
        %v589 = vpop.f32.mrb[0].mxu0
        %v590 = vadd.f32 0.0, %v589
        %v591 = vpop.f32.mrb[0].mxu0
        %592 = vdwg.mxu0
        %593 = vst [vmem:[#allocation2 + $0x20] sm:$0xff] %v585
        %594 = vst [vmem:[#allocation2 + $0x58] sm:$0xff] %v590
        %v595 = vld [vmem:[%s212] sm:$0xff]
        %v596 = vld [vmem:[%s212 + $0x8] sm:$0xff]
        %s597 = scalar_lea.vmem [#allocation6], 32
        %v598 = vld [vmem:[%s597] sm:$0xff]
        %v599 = vld [vmem:[%s597 + $0x8] sm:$0xff]
        %v601 = vsel %vm253, %v598, 0
        %v604 = vsel %vm253, %v599, 0
        %606 = vmatprep.subr.mxu0 0.0
        %607 = vmatpush1.msra.mxu0 %v595
        %608 = vmatprep.subr.mxu0 0.0
        %609 = vmatpush1.msra.mxu0 %v596
        %610 = vmatprep.subr.mxu0 0.0
        %611 = vmatpush1.msra.mxu0 0.0
        %612 = vmatprep.subr.mxu0 0.0
        %613 = vmatpush1.msra.mxu0 0.0
        %614 = vmatprep.subr.mxu0 0.0
        %615 = vmatpush1.msra.mxu0 0.0
        %616 = vmatprep.subr.mxu0 0.0
        %617 = vmatpush1.msra.mxu0 0.0
        %618 = vmatprep.subr.mxu0 0.0
        %619 = vmatpush1.msra.mxu0 0.0
        %620 = vmatprep.subr.mxu0 0.0
        %621 = vmatpush1.msra.mxu0 0.0
        %622 = vmatprep.subr.mxu0 0.0
        %623 = vmatpush1.msra.mxu0 0.0
        %624 = vmatprep.subr.mxu0 0.0
        %625 = vmatpush1.msra.mxu0 0.0
        %626 = vmatprep.subr.mxu0 0.0
        %627 = vmatpush1.msra.mxu0 0.0
        %628 = vmatprep.subr.mxu0 0.0
        %629 = vmatpush1.msra.mxu0 0.0
        %630 = vmatprep.subr.mxu0 0.0
        %631 = vmatpush1.msra.mxu0 0.0
        %632 = vmatprep.subr.mxu0 0.0
        %633 = vmatpush1.msra.mxu0 0.0
        %634 = vmatprep.subr.mxu0 0.0
        %635 = vmatpush1.msra.mxu0 0.0
        %636 = vmatprep.subr.mxu0 0.0
        %637 = vmatpush1.msra.mxu0 0.0
        %638 = vmatprep.subr.mxu0 0.0
        %639 = vmatpush1.msra.mxu0 0.0
        %640 = vmatprep.subr.mxu0 0.0
        %641 = vmatpush1.msra.mxu0 0.0
        %642 = vmatprep.subr.mxu0 0.0
        %643 = vmatpush1.msra.mxu0 0.0
        %644 = vmatprep.subr.mxu0 0.0
        %645 = vmatpush1.msra.mxu0 0.0
        %646 = vmatprep.subr.mxu0 0.0
        %647 = vmatpush1.msra.mxu0 0.0
        %648 = vmatprep.subr.mxu0 0.0
        %649 = vmatpush1.msra.mxu0 0.0
        %650 = vmatprep.subr.mxu0 0.0
        %651 = vmatpush1.msra.mxu0 0.0
        %652 = vmatprep.subr.mxu0 0.0
        %653 = vmatpush1.msra.mxu0 0.0
        %654 = vmatprep.subr.mxu0 0.0
        %655 = vmatpush1.msra.mxu0 0.0
        %656 = vmatprep.subr.mxu0 0.0
        %657 = vmatpush1.msra.mxu0 0.0
        %658 = vmatprep.subr.mxu0 0.0
        %659 = vmatpush1.msra.mxu0 0.0
        %660 = vmatprep.subr.mxu0 0.0
        %661 = vmatpush1.msra.mxu0 0.0
        %662 = vmatprep.subr.mxu0 0.0
        %663 = vmatpush1.msra.mxu0 0.0
        %664 = vmatprep.subr.mxu0 0.0
        %665 = vmatpush1.msra.mxu0 0.0
        %666 = vmatprep.subr.mxu0 0.0
        %667 = vmatpush1.msra.mxu0 0.0
        %668 = vmatprep.subr.mxu0 0.0
        %669 = vmatpush1.msra.mxu0 0.0
        %670 = vmatprep.mubr.f32.mxu0 0.0
        %671 = vmatmul.mubr.f32.gmra.mrb[0].mxu0 %v601
        %v672 = vpop.f32.mrb[0].mxu0
        %v673 = vadd.f32 0.0, %v672
        %v674 = vpop.f32.mrb[0].mxu0
        %675 = vmatprep.mubr.f32.mxu0 0.0
        %676 = vmatmul.mubr.f32.gmra.mrb[0].mxu0 %v604
        %v677 = vpop.f32.mrb[0].mxu0
        %v678 = vadd.f32 0.0, %v677
        %v679 = vpop.f32.mrb[0].mxu0
        %680 = vdwg.mxu0
        %681 = vst [vmem:[#allocation2 + $0x28] sm:$0xff] %v673
        %682 = vst [vmem:[#allocation2 + $0x60] sm:$0xff] %v678
        %v683 = vld [vmem:[%s597] sm:$0xff]
        %v684 = vld [vmem:[%s597 + $0x8] sm:$0xff]
        %v686 = vsel %vm253, %v683, 0
        %v689 = vsel %vm253, %v684, 0
        %691 = vmatprep.subr.mxu0 0.0
        %692 = vmatpush1.msra.mxu0 %v673
        %693 = vmatprep.subr.mxu0 0.0
        %694 = vmatpush1.msra.mxu0 %v678
        %695 = vmatprep.subr.mxu0 0.0
        %696 = vmatpush1.msra.mxu0 0.0
        %697 = vmatprep.subr.mxu0 0.0
        %698 = vmatpush1.msra.mxu0 0.0
        %699 = vmatprep.subr.mxu0 0.0
        %700 = vmatpush1.msra.mxu0 0.0
        %701 = vmatprep.subr.mxu0 0.0
        %702 = vmatpush1.msra.mxu0 0.0
        %703 = vmatprep.subr.mxu0 0.0
        %704 = vmatpush1.msra.mxu0 0.0
        %705 = vmatprep.subr.mxu0 0.0
        %706 = vmatpush1.msra.mxu0 0.0
        %707 = vmatprep.subr.mxu0 0.0
        %708 = vmatpush1.msra.mxu0 0.0
        %709 = vmatprep.subr.mxu0 0.0
        %710 = vmatpush1.msra.mxu0 0.0
        %711 = vmatprep.subr.mxu0 0.0
        %712 = vmatpush1.msra.mxu0 0.0
        %713 = vmatprep.subr.mxu0 0.0
        %714 = vmatpush1.msra.mxu0 0.0
        %715 = vmatprep.subr.mxu0 0.0
        %716 = vmatpush1.msra.mxu0 0.0
        %717 = vmatprep.subr.mxu0 0.0
        %718 = vmatpush1.msra.mxu0 0.0
        %719 = vmatprep.subr.mxu0 0.0
        %720 = vmatpush1.msra.mxu0 0.0
        %721 = vmatprep.subr.mxu0 0.0
        %722 = vmatpush1.msra.mxu0 0.0
        %723 = vmatprep.subr.mxu0 0.0
        %724 = vmatpush1.msra.mxu0 0.0
        %725 = vmatprep.subr.mxu0 0.0
        %726 = vmatpush1.msra.mxu0 0.0
        %727 = vmatprep.subr.mxu0 0.0
        %728 = vmatpush1.msra.mxu0 0.0
        %729 = vmatprep.subr.mxu0 0.0
        %730 = vmatpush1.msra.mxu0 0.0
        %731 = vmatprep.subr.mxu0 0.0
        %732 = vmatpush1.msra.mxu0 0.0
        %733 = vmatprep.subr.mxu0 0.0
        %734 = vmatpush1.msra.mxu0 0.0
        %735 = vmatprep.subr.mxu0 0.0
        %736 = vmatpush1.msra.mxu0 0.0
        %737 = vmatprep.subr.mxu0 0.0
        %738 = vmatpush1.msra.mxu0 0.0
        %739 = vmatprep.subr.mxu0 0.0
        %740 = vmatpush1.msra.mxu0 0.0
        %741 = vmatprep.subr.mxu0 0.0
        %742 = vmatpush1.msra.mxu0 0.0
        %743 = vmatprep.subr.mxu0 0.0
        %744 = vmatpush1.msra.mxu0 0.0
        %745 = vmatprep.subr.mxu0 0.0
        %746 = vmatpush1.msra.mxu0 0.0
        %747 = vmatprep.subr.mxu0 0.0
        %748 = vmatpush1.msra.mxu0 0.0
        %749 = vmatprep.subr.mxu0 0.0
        %750 = vmatpush1.msra.mxu0 0.0
        %751 = vmatprep.subr.mxu0 0.0
        %752 = vmatpush1.msra.mxu0 0.0
        %753 = vmatprep.subr.mxu0 0.0
        %754 = vmatpush1.msra.mxu0 0.0
        %755 = vmatprep.mubr.f32.mxu0 0.0
        %756 = vmatmul.mubr.f32.gmra.mrb[0].mxu0 %v686
        %v757 = vpop.f32.mrb[0].mxu0
        %v758 = vadd.f32 0.0, %v757
        %v759 = vpop.f32.mrb[0].mxu0
        %760 = vmatprep.mubr.f32.mxu0 0.0
        %761 = vmatmul.mubr.f32.gmra.mrb[0].mxu0 %v689
        %v762 = vpop.f32.mrb[0].mxu0
        %v763 = vadd.f32 0.0, %v762
        %v764 = vpop.f32.mrb[0].mxu0
        %765 = vdwg.mxu0
        %766 = vst [vmem:[#allocation2 + $0x30] sm:$0xff] %v758
        %767 = vst [vmem:[#allocation2 + $0x68] sm:$0xff] %v763
        %v768 = vld [vmem:[#allocation2] sm:$0xff]
        %v769 = vld [vmem:[#allocation2 + $0x8] sm:$0xff]
        %v770 = vld [vmem:[#allocation2 + $0x10] sm:$0xff]
        %v771 = vld [vmem:[#allocation2 + $0x18] sm:$0xff]
        %v772 = vld [vmem:[#allocation2 + $0x20] sm:$0xff]
        %v773 = vld [vmem:[#allocation2 + $0x28] sm:$0xff]
        %v774 = vld [vmem:[#allocation2 + $0x30] sm:$0xff]
        %v775 = vld [vmem:[#allocation2 + $0x38] sm:$0xff]
        %v776 = vld [vmem:[#allocation2 + $0x40] sm:$0xff]
        %v777 = vld [vmem:[#allocation2 + $0x48] sm:$0xff]
        %v778 = vld [vmem:[#allocation2 + $0x50] sm:$0xff]
        %v779 = vld [vmem:[#allocation2 + $0x58] sm:$0xff]
        %v780 = vld [vmem:[#allocation2 + $0x60] sm:$0xff]
        %v781 = vld [vmem:[#allocation2 + $0x68] sm:$0xff]
        %v782 = vld [vmem:[#allocation8] sm:$0xff]
        %v783 = vld [vmem:[#allocation8 + $0x8] sm:$0xff]
        %v784 = vld [vmem:[#allocation8 + $0x10] sm:$0xff]
        %v785 = vld [vmem:[#allocation8 + $0x18] sm:$0xff]
        %v786 = vld [vmem:[#allocation8 + $0x20] sm:$0xff]
        %v787 = vld [vmem:[#allocation8 + $0x28] sm:$0xff]
        %v788 = vld [vmem:[#allocation8 + $0x30] sm:$0xff]
        %v789 = vld [vmem:[#allocation8 + $0x38] sm:$0xff]
        %v790 = vld [vmem:[#allocation8 + $0x40] sm:$0xff]
        %v791 = vld [vmem:[#allocation8 + $0x48] sm:$0xff]
        %v792 = vld [vmem:[#allocation8 + $0x50] sm:$0xff]
        %v793 = vld [vmem:[#allocation8 + $0x58] sm:$0xff]
        %v794 = vld [vmem:[#allocation8 + $0x60] sm:$0xff]
        %v795 = vld [vmem:[#allocation8 + $0x68] sm:$0xff]
        %v796 = vld [vmem:[#allocation8 + $0x70] sm:$0xff]
        %v797 = vld [vmem:[#allocation8 + $0x78] sm:$0xff]
        %v798 = vld [vmem:[#allocation8 + $0x80] sm:$0xff]
        %v799 = vld [vmem:[#allocation8 + $0x88] sm:$0xff]
        %v800 = vld [vmem:[#allocation8 + $0x90] sm:$0xff]
        %v801 = vld [vmem:[#allocation8 + $0x98] sm:$0xff]
        %v802 = vld [vmem:[#allocation8 + $0xa0] sm:$0xff]
        %v803 = vld [vmem:[#allocation8 + $0xa8] sm:$0xff]
        %v804 = vld [vmem:[#allocation8 + $0xb0] sm:$0xff]
        %v805 = vld [vmem:[#allocation8 + $0xb8] sm:$0xff]
        %v806 = vld [vmem:[#allocation8 + $0xc0] sm:$0xff]
        %v807 = vld [vmem:[#allocation8 + $0xc8] sm:$0xff]
        %v808 = vld [vmem:[#allocation8 + $0xd0] sm:$0xff]
        %v809 = vld [vmem:[#allocation8 + $0xd8] sm:$0xff]
        %v810 = vld [vmem:[#allocation8 + $0xe0] sm:$0xff]
        %v811 = vld [vmem:[#allocation8 + $0xe8] sm:$0xff]
        %v812 = vld [vmem:[#allocation8 + $0xf0] sm:$0xff]
        %v813 = vld [vmem:[#allocation8 + $0xf8] sm:$0xff]
        %v814 = vld [vmem:[#allocation8 + $0x100] sm:$0xff]
        %v815 = vld [vmem:[#allocation8 + $0x108] sm:$0xff]
        %v816 = vld [vmem:[#allocation8 + $0x110] sm:$0xff]
        %v817 = vld [vmem:[#allocation8 + $0x118] sm:$0xff]
        %v818 = vld [vmem:[#allocation8 + $0x120] sm:$0xff]
        %v819 = vld [vmem:[#allocation8 + $0x128] sm:$0xff]
        %v820 = vld [vmem:[#allocation8 + $0x130] sm:$0xff]
        %v821 = vld [vmem:[#allocation8 + $0x138] sm:$0xff]
        %v822 = vld [vmem:[#allocation8 + $0x140] sm:$0xff]
        %v823 = vld [vmem:[#allocation8 + $0x148] sm:$0xff]
        %v824 = vld [vmem:[#allocation8 + $0x150] sm:$0xff]
        %v825 = vld [vmem:[#allocation8 + $0x158] sm:$0xff]
        %v826 = vld [vmem:[#allocation8 + $0x160] sm:$0xff]
        %v827 = vld [vmem:[#allocation8 + $0x168] sm:$0xff]
        %v828 = vld [vmem:[#allocation8 + $0x170] sm:$0xff]
        %v829 = vld [vmem:[#allocation8 + $0x178] sm:$0xff]
        %v830 = vld [vmem:[#allocation8 + $0x180] sm:$0xff]
        %v831 = vld [vmem:[#allocation8 + $0x188] sm:$0xff]
        %v832 = vld [vmem:[#allocation8 + $0x190] sm:$0xff]
        %v833 = vld [vmem:[#allocation8 + $0x198] sm:$0xff]
        %v834 = vld [vmem:[#allocation8 + $0x1a0] sm:$0xff]
        %v835 = vld [vmem:[#allocation8 + $0x1a8] sm:$0xff]
        %v836 = vld [vmem:[#allocation8 + $0x1b0] sm:$0xff]
        %v837 = vld [vmem:[#allocation8 + $0x1b8] sm:$0xff]
        %v838 = vld [vmem:[#allocation8 + $0x1c0] sm:$0xff]
        %v839 = vld [vmem:[#allocation8 + $0x1c8] sm:$0xff]
        %v840 = vld [vmem:[#allocation8 + $0x1d0] sm:$0xff]
        %v841 = vld [vmem:[#allocation8 + $0x1d8] sm:$0xff]
        %v842 = vld [vmem:[#allocation8 + $0x1e0] sm:$0xff]
        %v843 = vld [vmem:[#allocation8 + $0x1e8] sm:$0xff]
        %v844 = vld [vmem:[#allocation8 + $0x1f0] sm:$0xff]
        %v845 = vld [vmem:[#allocation8 + $0x1f8] sm:$0xff]
        %v846 = vld [vmem:[#allocation8 + $0x200] sm:$0xff]
        %v847 = vld [vmem:[#allocation8 + $0x208] sm:$0xff]
        %v848 = vld [vmem:[#allocation8 + $0x210] sm:$0xff]
        %v849 = vld [vmem:[#allocation8 + $0x218] sm:$0xff]
        %v850 = vld [vmem:[#allocation8 + $0x220] sm:$0xff]
        %v851 = vld [vmem:[#allocation8 + $0x228] sm:$0xff]
        %v852 = vld [vmem:[#allocation8 + $0x230] sm:$0xff]
        %v853 = vld [vmem:[#allocation8 + $0x238] sm:$0xff]
        %v854 = vld [vmem:[#allocation8 + $0x240] sm:$0xff]
        %v855 = vld [vmem:[#allocation8 + $0x248] sm:$0xff]
        %v856 = vld [vmem:[#allocation8 + $0x250] sm:$0xff]
        %v857 = vld [vmem:[#allocation8 + $0x258] sm:$0xff]
        %v858 = vld [vmem:[#allocation8 + $0x260] sm:$0xff]
        %v859 = vld [vmem:[#allocation8 + $0x268] sm:$0xff]
        %v860 = vld [vmem:[#allocation8 + $0x270] sm:$0xff]
        %v861 = vld [vmem:[#allocation8 + $0x278] sm:$0xff]
        %v862 = vld [vmem:[#allocation8 + $0x280] sm:$0xff]
        %v863 = vld [vmem:[#allocation8 + $0x288] sm:$0xff]
        %v864 = vld [vmem:[#allocation8 + $0x290] sm:$0xff]
        %v865 = vld [vmem:[#allocation8 + $0x298] sm:$0xff]
        %v866 = vld [vmem:[#allocation8 + $0x2a0] sm:$0xff]
        %v867 = vld [vmem:[#allocation8 + $0x2a8] sm:$0xff]
        %v868 = vld [vmem:[#allocation8 + $0x2b0] sm:$0xff]
        %v869 = vld [vmem:[#allocation8 + $0x2b8] sm:$0xff]
        %v870 = vld [vmem:[#allocation8 + $0x2c0] sm:$0xff]
        %v871 = vld [vmem:[#allocation8 + $0x2c8] sm:$0xff]
        %v872 = vld [vmem:[#allocation8 + $0x2d0] sm:$0xff]
        %v873 = vld [vmem:[#allocation8 + $0x2d8] sm:$0xff]
        %v874 = vld [vmem:[#allocation8 + $0x2e0] sm:$0xff]
        %v875 = vld [vmem:[#allocation8 + $0x2e8] sm:$0xff]
        %v876 = vld [vmem:[#allocation8 + $0x2f0] sm:$0xff]
        %v877 = vld [vmem:[#allocation8 + $0x2f8] sm:$0xff]
        %v878 = vld [vmem:[#allocation8 + $0x300] sm:$0xff]
        %v879 = vld [vmem:[#allocation8 + $0x308] sm:$0xff]
        %v880 = vld [vmem:[#allocation8 + $0x310] sm:$0xff]
        %v881 = vld [vmem:[#allocation8 + $0x318] sm:$0xff]
        %v882 = vld [vmem:[#allocation8 + $0x320] sm:$0xff]
        %v883 = vld [vmem:[#allocation8 + $0x328] sm:$0xff]
        %v884 = vld [vmem:[#allocation8 + $0x330] sm:$0xff]
        %v885 = vld [vmem:[#allocation8 + $0x338] sm:$0xff]
        %v886 = vld [vmem:[#allocation8 + $0x340] sm:$0xff]
        %v887 = vld [vmem:[#allocation8 + $0x348] sm:$0xff]
        %v888 = vld [vmem:[#allocation8 + $0x350] sm:$0xff]
        %v889 = vld [vmem:[#allocation8 + $0x358] sm:$0xff]
        %v890 = vld [vmem:[#allocation8 + $0x360] sm:$0xff]
        %v891 = vld [vmem:[#allocation8 + $0x368] sm:$0xff]
        %v892 = vld [vmem:[#allocation8 + $0x370] sm:$0xff]
        %v893 = vld [vmem:[#allocation8 + $0x378] sm:$0xff]
        %v894 = vld [vmem:[#allocation8 + $0x380] sm:$0xff]
        %v895 = vld [vmem:[#allocation8 + $0x388] sm:$0xff]
        %v896 = vld [vmem:[#allocation8 + $0x390] sm:$0xff]
        %v897 = vld [vmem:[#allocation8 + $0x398] sm:$0xff]
        %v898 = vld [vmem:[#allocation8 + $0x3a0] sm:$0xff]
        %v899 = vld [vmem:[#allocation8 + $0x3a8] sm:$0xff]
        %v900 = vld [vmem:[#allocation8 + $0x3b0] sm:$0xff]
        %v901 = vld [vmem:[#allocation8 + $0x3b8] sm:$0xff]
        %v902 = vld [vmem:[#allocation8 + $0x3c0] sm:$0xff]
        %v903 = vld [vmem:[#allocation8 + $0x3c8] sm:$0xff]
        %v904 = vld [vmem:[#allocation8 + $0x3d0] sm:$0xff]
        %v905 = vld [vmem:[#allocation8 + $0x3d8] sm:$0xff]
        %v906 = vld [vmem:[#allocation8 + $0x3e0] sm:$0xff]
        %v907 = vld [vmem:[#allocation8 + $0x3e8] sm:$0xff]
        %v908 = vld [vmem:[#allocation8 + $0x3f0] sm:$0xff]
        %v909 = vld [vmem:[#allocation8 + $0x3f8] sm:$0xff]
        %v910 = vld [vmem:[#allocation8 + $0x400] sm:$0xff]
        %v911 = vld [vmem:[#allocation8 + $0x408] sm:$0xff]
        %v912 = vld [vmem:[#allocation8 + $0x410] sm:$0xff]
        %v913 = vld [vmem:[#allocation8 + $0x418] sm:$0xff]
        %v914 = vld [vmem:[#allocation8 + $0x420] sm:$0xff]
        %v915 = vld [vmem:[#allocation8 + $0x428] sm:$0xff]
        %v916 = vld [vmem:[#allocation8 + $0x430] sm:$0xff]
        %v917 = vld [vmem:[#allocation8 + $0x438] sm:$0xff]
        %v918 = vld [vmem:[#allocation8 + $0x440] sm:$0xff]
        %v919 = vld [vmem:[#allocation8 + $0x448] sm:$0xff]
        %v920 = vld [vmem:[#allocation8 + $0x450] sm:$0xff]
        %v921 = vld [vmem:[#allocation8 + $0x458] sm:$0xff]
        %v922 = vld [vmem:[#allocation8 + $0x460] sm:$0xff]
        %v923 = vld [vmem:[#allocation8 + $0x468] sm:$0xff]
        %v924 = vld [vmem:[#allocation8 + $0x470] sm:$0xff]
        %v925 = vld [vmem:[#allocation8 + $0x478] sm:$0xff]
        %v926 = vld [vmem:[#allocation8 + $0x480] sm:$0xff]
        %v927 = vld [vmem:[#allocation8 + $0x488] sm:$0xff]
        %v928 = vld [vmem:[#allocation8 + $0x490] sm:$0xff]
        %v929 = vld [vmem:[#allocation8 + $0x498] sm:$0xff]
        %v930 = vld [vmem:[#allocation8 + $0x4a0] sm:$0xff]
        %v931 = vld [vmem:[#allocation8 + $0x4a8] sm:$0xff]
        %v932 = vld [vmem:[#allocation8 + $0x4b0] sm:$0xff]
        %v933 = vld [vmem:[#allocation8 + $0x4b8] sm:$0xff]
        %v934 = vld [vmem:[#allocation8 + $0x4c0] sm:$0xff]
        %v935 = vld [vmem:[#allocation8 + $0x4c8] sm:$0xff]
        %v936 = vld [vmem:[#allocation8 + $0x4d0] sm:$0xff]
        %v937 = vld [vmem:[#allocation8 + $0x4d8] sm:$0xff]
        %v938 = vld [vmem:[#allocation8 + $0x4e0] sm:$0xff]
        %v939 = vld [vmem:[#allocation8 + $0x4e8] sm:$0xff]
        %v940 = vld [vmem:[#allocation8 + $0x4f0] sm:$0xff]
        %v941 = vld [vmem:[#allocation8 + $0x4f8] sm:$0xff]
        %v942 = vld [vmem:[#allocation8 + $0x500] sm:$0xff]
        %v943 = vld [vmem:[#allocation8 + $0x508] sm:$0xff]
        %v944 = vld [vmem:[#allocation8 + $0x510] sm:$0xff]
        %v945 = vld [vmem:[#allocation8 + $0x518] sm:$0xff]
        %v946 = vld [vmem:[#allocation8 + $0x520] sm:$0xff]
        %v947 = vld [vmem:[#allocation8 + $0x528] sm:$0xff]
        %v948 = vld [vmem:[#allocation8 + $0x530] sm:$0xff]
        %v949 = vld [vmem:[#allocation8 + $0x538] sm:$0xff]
        %v950 = vld [vmem:[#allocation8 + $0x540] sm:$0xff]
        %v951 = vld [vmem:[#allocation8 + $0x548] sm:$0xff]
        %v952 = vld [vmem:[#allocation8 + $0x550] sm:$0xff]
        %v953 = vld [vmem:[#allocation8 + $0x558] sm:$0xff]
        %v954 = vld [vmem:[#allocation8 + $0x560] sm:$0xff]
        %v955 = vld [vmem:[#allocation8 + $0x568] sm:$0xff]
        %v956 = vld [vmem:[#allocation8 + $0x570] sm:$0xff]
        %v957 = vld [vmem:[#allocation8 + $0x578] sm:$0xff]
        %v958 = vld [vmem:[#allocation8 + $0x580] sm:$0xff]
        %v959 = vld [vmem:[#allocation8 + $0x588] sm:$0xff]
        %v960 = vld [vmem:[#allocation8 + $0x590] sm:$0xff]
        %v961 = vld [vmem:[#allocation8 + $0x598] sm:$0xff]
        %v962 = vld [vmem:[#allocation8 + $0x5a0] sm:$0xff]
        %v963 = vld [vmem:[#allocation8 + $0x5a8] sm:$0xff]
        %v964 = vld [vmem:[#allocation8 + $0x5b0] sm:$0xff]
        %v965 = vld [vmem:[#allocation8 + $0x5b8] sm:$0xff]
        %v966 = vld [vmem:[#allocation8 + $0x5c0] sm:$0xff]
        %v967 = vld [vmem:[#allocation8 + $0x5c8] sm:$0xff]
        %v968 = vld [vmem:[#allocation8 + $0x5d0] sm:$0xff]
        %v969 = vld [vmem:[#allocation8 + $0x5d8] sm:$0xff]
        %v970 = vld [vmem:[#allocation8 + $0x5e0] sm:$0xff]
        %v971 = vld [vmem:[#allocation8 + $0x5e8] sm:$0xff]
        %v972 = vld [vmem:[#allocation8 + $0x5f0] sm:$0xff]
        %v973 = vld [vmem:[#allocation8 + $0x5f8] sm:$0xff]
        %v974 = vld [vmem:[#allocation8 + $0x600] sm:$0xff]
        %v975 = vld [vmem:[#allocation8 + $0x608] sm:$0xff]
        %v976 = vld [vmem:[#allocation8 + $0x610] sm:$0xff]
        %v977 = vld [vmem:[#allocation8 + $0x618] sm:$0xff]
        %v978 = vld [vmem:[#allocation8 + $0x620] sm:$0xff]
        %v979 = vld [vmem:[#allocation8 + $0x628] sm:$0xff]
        %v980 = vld [vmem:[#allocation8 + $0x630] sm:$0xff]
        %v981 = vld [vmem:[#allocation8 + $0x638] sm:$0xff]
        %v982 = vld [vmem:[#allocation8 + $0x640] sm:$0xff]
        %v983 = vld [vmem:[#allocation8 + $0x648] sm:$0xff]
        %v984 = vld [vmem:[#allocation8 + $0x650] sm:$0xff]
        %v985 = vld [vmem:[#allocation8 + $0x658] sm:$0xff]
        %v986 = vld [vmem:[#allocation8 + $0x660] sm:$0xff]
        %v987 = vld [vmem:[#allocation8 + $0x668] sm:$0xff]
        %v988 = vld [vmem:[#allocation8 + $0x670] sm:$0xff]
        %v989 = vld [vmem:[#allocation8 + $0x678] sm:$0xff]
        %v990 = vld [vmem:[#allocation8 + $0x680] sm:$0xff]
        %v991 = vld [vmem:[#allocation8 + $0x688] sm:$0xff]
        %v992 = vld [vmem:[#allocation8 + $0x690] sm:$0xff]
        %v993 = vld [vmem:[#allocation8 + $0x698] sm:$0xff]
        %v994 = vld [vmem:[#allocation8 + $0x6a0] sm:$0xff]
        %v995 = vld [vmem:[#allocation8 + $0x6a8] sm:$0xff]
        %v996 = vld [vmem:[#allocation8 + $0x6b0] sm:$0xff]
        %v997 = vld [vmem:[#allocation8 + $0x6b8] sm:$0xff]
        %v998 = vld [vmem:[#allocation8 + $0x6c0] sm:$0xff]
        %v999 = vld [vmem:[#allocation8 + $0x6c8] sm:$0xff]
        %v1000 = vld [vmem:[#allocation8 + $0x6d0] sm:$0xff]
        %v1001 = vld [vmem:[#allocation8 + $0x6d8] sm:$0xff]
        %v1002 = vld [vmem:[#allocation8 + $0x6e0] sm:$0xff]
        %v1003 = vld [vmem:[#allocation8 + $0x6e8] sm:$0xff]
        %v1004 = vld [vmem:[#allocation8 + $0x6f0] sm:$0xff]
        %v1005 = vld [vmem:[#allocation8 + $0x6f8] sm:$0xff]
        %v1006 = vld [vmem:[%s3] sm:$0x3]
        %v1008 = vlaneseq
        %v1009 = vshrl.u32 %v1008, 7
        %v1010 = vsub.s32 0, %v1009
        %v1011 = vrot.slane %v1006, %v1010
        %v1012 = vlaneseq
        %v1013 = vshrl.u32 %v1012, 7
        %v1014 = vsub.s32 1, %v1013
        %v1015 = vrot.slane %v1006, %v1014
        %1018 = vmatprep.subr.mxu0 %v783
        %1019 = vmatpush1.msra.mxu0 %v782
        %1020 = vmatprep.subr.mxu0 %v785
        %1021 = vmatpush1.msra.mxu0 %v784
        %1022 = vmatprep.subr.mxu0 %v787
        %1023 = vmatpush1.msra.mxu0 %v786
        %1024 = vmatprep.subr.mxu0 %v789
        %1025 = vmatpush1.msra.mxu0 %v788
        %1026 = vmatprep.subr.mxu0 %v791
        %1027 = vmatpush1.msra.mxu0 %v790
        %1028 = vmatprep.subr.mxu0 %v793
        %1029 = vmatpush1.msra.mxu0 %v792
        %1030 = vmatprep.subr.mxu0 %v795
        %1031 = vmatpush1.msra.mxu0 %v794
        %1032 = vmatprep.subr.mxu0 %v797
        %1033 = vmatpush1.msra.mxu0 %v796
        %1034 = vmatprep.subr.mxu0 %v799
        %1035 = vmatpush1.msra.mxu0 %v798
        %1036 = vmatprep.subr.mxu0 %v801
        %1037 = vmatpush1.msra.mxu0 %v800
        %1038 = vmatprep.subr.mxu0 %v803
        %1039 = vmatpush1.msra.mxu0 %v802
        %1040 = vmatprep.subr.mxu0 %v805
        %1041 = vmatpush1.msra.mxu0 %v804
        %1042 = vmatprep.subr.mxu0 %v807
        %1043 = vmatpush1.msra.mxu0 %v806
        %1044 = vmatprep.subr.mxu0 %v809
        %1045 = vmatpush1.msra.mxu0 %v808
        %1046 = vmatprep.subr.mxu0 %v811
        %1047 = vmatpush1.msra.mxu0 %v810
        %1048 = vmatprep.subr.mxu0 %v813
        %1049 = vmatpush1.msra.mxu0 %v812
        %1050 = vmatprep.subr.mxu0 %v815
        %1051 = vmatpush1.msra.mxu0 %v814
        %1052 = vmatprep.subr.mxu0 %v817
        %1053 = vmatpush1.msra.mxu0 %v816
        %1054 = vmatprep.subr.mxu0 %v819
        %1055 = vmatpush1.msra.mxu0 %v818
        %1056 = vmatprep.subr.mxu0 %v821
        %1057 = vmatpush1.msra.mxu0 %v820
        %1058 = vmatprep.subr.mxu0 %v823
        %1059 = vmatpush1.msra.mxu0 %v822
        %1060 = vmatprep.subr.mxu0 %v825
        %1061 = vmatpush1.msra.mxu0 %v824
        %1062 = vmatprep.subr.mxu0 %v827
        %1063 = vmatpush1.msra.mxu0 %v826
        %1064 = vmatprep.subr.mxu0 %v829
        %1065 = vmatpush1.msra.mxu0 %v828
        %1066 = vmatprep.subr.mxu0 %v831
        %1067 = vmatpush1.msra.mxu0 %v830
        %1068 = vmatprep.subr.mxu0 %v833
        %1069 = vmatpush1.msra.mxu0 %v832
        %1070 = vmatprep.subr.mxu0 %v835
        %1071 = vmatpush1.msra.mxu0 %v834
        %1072 = vmatprep.subr.mxu0 %v837
        %1073 = vmatpush1.msra.mxu0 %v836
        %1074 = vmatprep.subr.mxu0 %v839
        %1075 = vmatpush1.msra.mxu0 %v838
        %1076 = vmatprep.subr.mxu0 %v841
        %1077 = vmatpush1.msra.mxu0 %v840
        %1078 = vmatprep.subr.mxu0 %v843
        %1079 = vmatpush1.msra.mxu0 %v842
        %1080 = vmatprep.subr.mxu0 %v845
        %1081 = vmatpush1.msra.mxu0 %v844
        %1082 = vmatprep.mubr.f32.mxu0 %v769
        %1083 = vmatmul.mubr.f32.gmra.mrb[0].mxu0 %v768
        %v1084 = vpop.f32.mrb[0].mxu0
        %v1085 = vadd.f32 %v1011, %v1084
        %v1086 = vpop.f32.mrb[0].mxu0
        %v1087 = vadd.f32 %v1015, %v1086
        %1088 = vmatprep.mubr.f32.mxu0 %v776
        %1089 = vmatmul.mubr.f32.gmra.mrb[0].mxu0 %v775
        %v1090 = vpop.f32.mrb[0].mxu0
        %v1091 = vadd.f32 %v1011, %v1090
        %v1092 = vpop.f32.mrb[0].mxu0
        %v1093 = vadd.f32 %v1015, %v1092
        %1094 = vdwg.mxu0
        %1095 = vmatprep.subr.mxu0 %v847
        %1096 = vmatpush1.msra.mxu0 %v846
        %1097 = vmatprep.subr.mxu0 %v849
        %1098 = vmatpush1.msra.mxu0 %v848
        %1099 = vmatprep.subr.mxu0 %v851
        %1100 = vmatpush1.msra.mxu0 %v850
        %1101 = vmatprep.subr.mxu0 %v853
        %1102 = vmatpush1.msra.mxu0 %v852
        %1103 = vmatprep.subr.mxu0 %v855
        %1104 = vmatpush1.msra.mxu0 %v854
        %1105 = vmatprep.subr.mxu0 %v857
        %1106 = vmatpush1.msra.mxu0 %v856
        %1107 = vmatprep.subr.mxu0 %v859
        %1108 = vmatpush1.msra.mxu0 %v858
        %1109 = vmatprep.subr.mxu0 %v861
        %1110 = vmatpush1.msra.mxu0 %v860
        %1111 = vmatprep.subr.mxu0 %v863
        %1112 = vmatpush1.msra.mxu0 %v862
        %1113 = vmatprep.subr.mxu0 %v865
        %1114 = vmatpush1.msra.mxu0 %v864
        %1115 = vmatprep.subr.mxu0 %v867
        %1116 = vmatpush1.msra.mxu0 %v866
        %1117 = vmatprep.subr.mxu0 %v869
        %1118 = vmatpush1.msra.mxu0 %v868
        %1119 = vmatprep.subr.mxu0 %v871
        %1120 = vmatpush1.msra.mxu0 %v870
        %1121 = vmatprep.subr.mxu0 %v873
        %1122 = vmatpush1.msra.mxu0 %v872
        %1123 = vmatprep.subr.mxu0 %v875
        %1124 = vmatpush1.msra.mxu0 %v874
        %1125 = vmatprep.subr.mxu0 %v877
        %1126 = vmatpush1.msra.mxu0 %v876
        %1127 = vmatprep.subr.mxu0 %v879
        %1128 = vmatpush1.msra.mxu0 %v878
        %1129 = vmatprep.subr.mxu0 %v881
        %1130 = vmatpush1.msra.mxu0 %v880
        %1131 = vmatprep.subr.mxu0 %v883
        %1132 = vmatpush1.msra.mxu0 %v882
        %1133 = vmatprep.subr.mxu0 %v885
        %1134 = vmatpush1.msra.mxu0 %v884
        %1135 = vmatprep.subr.mxu0 %v887
        %1136 = vmatpush1.msra.mxu0 %v886
        %1137 = vmatprep.subr.mxu0 %v889
        %1138 = vmatpush1.msra.mxu0 %v888
        %1139 = vmatprep.subr.mxu0 %v891
        %1140 = vmatpush1.msra.mxu0 %v890
        %1141 = vmatprep.subr.mxu0 %v893
        %1142 = vmatpush1.msra.mxu0 %v892
        %1143 = vmatprep.subr.mxu0 %v895
        %1144 = vmatpush1.msra.mxu0 %v894
        %1145 = vmatprep.subr.mxu0 %v897
        %1146 = vmatpush1.msra.mxu0 %v896
        %1147 = vmatprep.subr.mxu0 %v899
        %1148 = vmatpush1.msra.mxu0 %v898
        %1149 = vmatprep.subr.mxu0 %v901
        %1150 = vmatpush1.msra.mxu0 %v900
        %1151 = vmatprep.subr.mxu0 %v903
        %1152 = vmatpush1.msra.mxu0 %v902
        %1153 = vmatprep.subr.mxu0 %v905
        %1154 = vmatpush1.msra.mxu0 %v904
        %1155 = vmatprep.subr.mxu0 %v907
        %1156 = vmatpush1.msra.mxu0 %v906
        %1157 = vmatprep.subr.mxu0 %v909
        %1158 = vmatpush1.msra.mxu0 %v908
        %1159 = vmatprep.mubr.f32.mxu0 %v771
        %1160 = vmatmul.mubr.f32.gmra.mrb[0].mxu0 %v770
        %v1161 = vpop.f32.mrb[0].mxu0
        %v1162 = vadd.f32 %v1085, %v1161
        %v1163 = vpop.f32.mrb[0].mxu0
        %v1164 = vadd.f32 %v1087, %v1163
        %1165 = vmatprep.mubr.f32.mxu0 %v778
        %1166 = vmatmul.mubr.f32.gmra.mrb[0].mxu0 %v777
        %v1167 = vpop.f32.mrb[0].mxu0
        %v1168 = vadd.f32 %v1091, %v1167
        %v1169 = vpop.f32.mrb[0].mxu0
        %v1170 = vadd.f32 %v1093, %v1169
        %1171 = vdwg.mxu0
        %1172 = vmatprep.subr.mxu0 %v911
        %1173 = vmatpush1.msra.mxu0 %v910
        %1174 = vmatprep.subr.mxu0 %v913
        %1175 = vmatpush1.msra.mxu0 %v912
        %1176 = vmatprep.subr.mxu0 %v915
        %1177 = vmatpush1.msra.mxu0 %v914
        %1178 = vmatprep.subr.mxu0 %v917
        %1179 = vmatpush1.msra.mxu0 %v916
        %1180 = vmatprep.subr.mxu0 %v919
        %1181 = vmatpush1.msra.mxu0 %v918
        %1182 = vmatprep.subr.mxu0 %v921
        %1183 = vmatpush1.msra.mxu0 %v920
        %1184 = vmatprep.subr.mxu0 %v923
        %1185 = vmatpush1.msra.mxu0 %v922
        %1186 = vmatprep.subr.mxu0 %v925
        %1187 = vmatpush1.msra.mxu0 %v924
        %1188 = vmatprep.subr.mxu0 %v927
        %1189 = vmatpush1.msra.mxu0 %v926
        %1190 = vmatprep.subr.mxu0 %v929
        %1191 = vmatpush1.msra.mxu0 %v928
        %1192 = vmatprep.subr.mxu0 %v931
        %1193 = vmatpush1.msra.mxu0 %v930
        %1194 = vmatprep.subr.mxu0 %v933
        %1195 = vmatpush1.msra.mxu0 %v932
        %1196 = vmatprep.subr.mxu0 %v935
        %1197 = vmatpush1.msra.mxu0 %v934
        %1198 = vmatprep.subr.mxu0 %v937
        %1199 = vmatpush1.msra.mxu0 %v936
        %1200 = vmatprep.subr.mxu0 %v939
        %1201 = vmatpush1.msra.mxu0 %v938
        %1202 = vmatprep.subr.mxu0 %v941
        %1203 = vmatpush1.msra.mxu0 %v940
        %1204 = vmatprep.subr.mxu0 %v943
        %1205 = vmatpush1.msra.mxu0 %v942
        %1206 = vmatprep.subr.mxu0 %v945
        %1207 = vmatpush1.msra.mxu0 %v944
        %1208 = vmatprep.subr.mxu0 %v947
        %1209 = vmatpush1.msra.mxu0 %v946
        %1210 = vmatprep.subr.mxu0 %v949
        %1211 = vmatpush1.msra.mxu0 %v948
        %1212 = vmatprep.subr.mxu0 %v951
        %1213 = vmatpush1.msra.mxu0 %v950
        %1214 = vmatprep.subr.mxu0 %v953
        %1215 = vmatpush1.msra.mxu0 %v952
        %1216 = vmatprep.subr.mxu0 %v955
        %1217 = vmatpush1.msra.mxu0 %v954
        %1218 = vmatprep.subr.mxu0 %v957
        %1219 = vmatpush1.msra.mxu0 %v956
        %1220 = vmatprep.subr.mxu0 %v959
        %1221 = vmatpush1.msra.mxu0 %v958
        %1222 = vmatprep.subr.mxu0 %v961
        %1223 = vmatpush1.msra.mxu0 %v960
        %1224 = vmatprep.subr.mxu0 %v963
        %1225 = vmatpush1.msra.mxu0 %v962
        %1226 = vmatprep.subr.mxu0 %v965
        %1227 = vmatpush1.msra.mxu0 %v964
        %1228 = vmatprep.subr.mxu0 %v967
        %1229 = vmatpush1.msra.mxu0 %v966
        %1230 = vmatprep.subr.mxu0 %v969
        %1231 = vmatpush1.msra.mxu0 %v968
        %1232 = vmatprep.subr.mxu0 %v971
        %1233 = vmatpush1.msra.mxu0 %v970
        %1234 = vmatprep.subr.mxu0 %v973
        %1235 = vmatpush1.msra.mxu0 %v972
        %1236 = vmatprep.mubr.f32.mxu0 %v773
        %1237 = vmatmul.mubr.f32.gmra.mrb[0].mxu0 %v772
        %v1238 = vpop.f32.mrb[0].mxu0
        %v1239 = vadd.f32 %v1162, %v1238
        %v1240 = vpop.f32.mrb[0].mxu0
        %v1241 = vadd.f32 %v1164, %v1240
        %1242 = vmatprep.mubr.f32.mxu0 %v780
        %1243 = vmatmul.mubr.f32.gmra.mrb[0].mxu0 %v779
        %v1244 = vpop.f32.mrb[0].mxu0
        %v1245 = vadd.f32 %v1168, %v1244
        %v1246 = vpop.f32.mrb[0].mxu0
        %v1247 = vadd.f32 %v1170, %v1246
        %1248 = vdwg.mxu0
        %1249 = vmatprep.subr.mxu0 %v975
        %1250 = vmatpush1.msra.mxu0 %v974
        %1251 = vmatprep.subr.mxu0 %v977
        %1252 = vmatpush1.msra.mxu0 %v976
        %1253 = vmatprep.subr.mxu0 %v979
        %1254 = vmatpush1.msra.mxu0 %v978
        %1255 = vmatprep.subr.mxu0 %v981
        %1256 = vmatpush1.msra.mxu0 %v980
        %1257 = vmatprep.subr.mxu0 %v983
        %1258 = vmatpush1.msra.mxu0 %v982
        %1259 = vmatprep.subr.mxu0 %v985
        %1260 = vmatpush1.msra.mxu0 %v984
        %1261 = vmatprep.subr.mxu0 %v987
        %1262 = vmatpush1.msra.mxu0 %v986
        %1263 = vmatprep.subr.mxu0 %v989
        %1264 = vmatpush1.msra.mxu0 %v988
        %1265 = vmatprep.subr.mxu0 %v991
        %1266 = vmatpush1.msra.mxu0 %v990
        %1267 = vmatprep.subr.mxu0 %v993
        %1268 = vmatpush1.msra.mxu0 %v992
        %1269 = vmatprep.subr.mxu0 %v995
        %1270 = vmatpush1.msra.mxu0 %v994
        %1271 = vmatprep.subr.mxu0 %v997
        %1272 = vmatpush1.msra.mxu0 %v996
        %1273 = vmatprep.subr.mxu0 %v999
        %1274 = vmatpush1.msra.mxu0 %v998
        %1275 = vmatprep.subr.mxu0 %v1001
        %1276 = vmatpush1.msra.mxu0 %v1000
        %1277 = vmatprep.subr.mxu0 %v1003
        %1278 = vmatpush1.msra.mxu0 %v1002
        %1279 = vmatprep.subr.mxu0 %v1005
        %1280 = vmatpush1.msra.mxu0 %v1004
        %1281 = vmatprep.subr.mxu0 0.0
        %1282 = vmatpush1.msra.mxu0 0.0
        %1283 = vmatprep.subr.mxu0 0.0
        %1284 = vmatpush1.msra.mxu0 0.0
        %1285 = vmatprep.subr.mxu0 0.0
        %1286 = vmatpush1.msra.mxu0 0.0
        %1287 = vmatprep.subr.mxu0 0.0
        %1288 = vmatpush1.msra.mxu0 0.0
        %1289 = vmatprep.subr.mxu0 0.0
        %1290 = vmatpush1.msra.mxu0 0.0
        %1291 = vmatprep.subr.mxu0 0.0
        %1292 = vmatpush1.msra.mxu0 0.0
        %1293 = vmatprep.subr.mxu0 0.0
        %1294 = vmatpush1.msra.mxu0 0.0
        %1295 = vmatprep.subr.mxu0 0.0
        %1296 = vmatpush1.msra.mxu0 0.0
        %1297 = vmatprep.subr.mxu0 0.0
        %1298 = vmatpush1.msra.mxu0 0.0
        %1299 = vmatprep.subr.mxu0 0.0
        %1300 = vmatpush1.msra.mxu0 0.0
        %1301 = vmatprep.subr.mxu0 0.0
        %1302 = vmatpush1.msra.mxu0 0.0
        %1303 = vmatprep.subr.mxu0 0.0
        %1304 = vmatpush1.msra.mxu0 0.0
        %1305 = vmatprep.subr.mxu0 0.0
        %1306 = vmatpush1.msra.mxu0 0.0
        %1307 = vmatprep.subr.mxu0 0.0
        %1308 = vmatpush1.msra.mxu0 0.0
        %1309 = vmatprep.subr.mxu0 0.0
        %1310 = vmatpush1.msra.mxu0 0.0
        %1311 = vmatprep.subr.mxu0 0.0
        %1312 = vmatpush1.msra.mxu0 0.0
        %1313 = vmatprep.mubr.f32.mxu0 0.0
        %1314 = vmatmul.mubr.f32.gmra.mrb[0].mxu0 %v774
        %v1315 = vpop.f32.mrb[0].mxu0
        %v1316 = vadd.f32 %v1239, %v1315
        %v1317 = vpop.f32.mrb[0].mxu0
        %v1318 = vadd.f32 %v1241, %v1317
        %1319 = vmatprep.mubr.f32.mxu0 0.0
        %1320 = vmatmul.mubr.f32.gmra.mrb[0].mxu0 %v781
        %v1321 = vpop.f32.mrb[0].mxu0
        %v1322 = vadd.f32 %v1245, %v1321
        %v1323 = vpop.f32.mrb[0].mxu0
        %v1324 = vadd.f32 %v1247, %v1323
        %1325 = vdwg.mxu0
        %1326 = vst [vmem:[%s244] sm:$0xff] %v1316
        %1327 = vst [vmem:[%s244 + $0x8] sm:$0xff] %v1318
        %1328 = vst [vmem:[%s244 + $0x10] sm:$0xff] %v1322
        %1329 = vst [vmem:[%s244 + $0x18] sm:$0xff] %v1324
        %s1330 = sand.u32 %s119, 1
        %s1331 = scalar_lea.sflag [#allocation5], %s1330
        %s1332 = sand.u32 %s119, 1
        %s1333 = smul.addr %s1332, 32
        %s1334 = scalar_lea.vmem [#allocation9], %s1333
        // Predicated region
        $region49: #{tpu_custom_call.1} parent=35 // pred_check
          %p1335 = pneg %p129
        $region50: #{tpu_custom_call.1} parent=35 // pred_check_branch
          %1337 = sbr.rel (%p1335) target = $region52
        $region51: #{tpu_custom_call.1} parent=35 // pred_region
          %s1339 = ssub.s32 512, 512
          %1340 = vsyncadd %s1331, %s1339
          %s1341 = smul.addr %s22, 4
          %s1342 = smul.addr %s1341, 128
          %s1343 = scalar_lea.hbm %s4, %s1342
          %s1344 = sshll.u32 %s1334, 4
          %s1345 = int_to_ptr.vmem [resolvable:$true] %s1344
          %1350 = dma.vmem_to_hbm [thread:$0]  %s1345, 512, %s1343, %s1331, 256, 256, 16
        $region52: #{tpu_custom_call.1} parent=35 // pred_fallthru
          _
      $region36: #{tpu_custom_call.1} parent=5 // pred_fallthru
        _
      %p1351 = scmp.le.s32.totalorder 2, %s17
      // Predicated region
      $region53: #{tpu_custom_call.1} parent=5 // pred_check
        %p1352 = pneg %p1351
      $region54: #{tpu_custom_call.1} parent=5 // pred_check_branch
        %1354 = sbr.rel (%p1352) target = $region56
      $region55: #{tpu_custom_call.1} parent=5 // pred_region
        %s1355 = ssub.s32 %s17, 2
        // Predicated region
        $region57: #{tpu_custom_call.1} parent=55 // pred_check
          %p1356 = pneg %p135
        $region58: #{tpu_custom_call.1} parent=55 // pred_check_branch
          %1358 = sbr.rel (%p1356) target = $region60
        $region59: #{tpu_custom_call.1} parent=55 // pred_region
          %s1359 = sand.u32 %s120, 1
          %s1360 = scalar_lea.sflag [#allocation5], %s1359
          %s1361 = sand.u32 %s120, 1
          %s1362 = smul.addr %s1361, 32
          %s1363 = scalar_lea.vmem [#allocation9], %s1362
          %1364 = dma.done %s1360, 512
        $region60: #{tpu_custom_call.1} parent=55 // pred_fallthru
          _
      $region56: #{tpu_custom_call.1} parent=5 // pred_fallthru
        _
    $region6: #{tpu_custom_call.1} parent=1 // loop_footer
      %s21 = sadd.s32 1, %s17
    $region7: #{tpu_custom_call.1} parent=1 // loop_footer_branch
      %16 = sbr.rel target = $region3
    $region8: #{tpu_custom_call.1} parent=1 // loop_exit
      _
    %1365 = vsyncpa [#allocation4], 1
    %s1366 = scalar_lea.sflag [#allocation4], 1
    %1367 = vsyncpa %s1366, 1
    %1368 = vsyncpa [#allocation7], 1
    %1369 = vsyncpa [#allocation5], 1
    %s1370 = scalar_lea.sflag [#allocation5], 1
    %1371 = vsyncpa %s1370, 1

// kernel: tpu_custom_call.1
$region0: #{tpu_custom_call.1}
  #allocation0 [shape = 'u32[]', space=smem, size = 0x4, offset = 0x4, fixed_abs, tag = 'smem constant byte address 0x4 - core index']
  #allocation1 [shape = 'u32[144,128]{1,0:T(1,128)}', space=vmem, size = 0x12000, scoped, tag = 'internal scratch']
  #allocation2 [shape = 'f32[1,16,896]{2,1,0:T(8,128)}', space=vmem, size = 0xe000, scoped, tag = 'scratch operand']
  %s0 = inlined_call_operand.hbm [shape: f32[2,16,128], index: 0, kind: input, shape index: {}]
  %s1 = inlined_call_operand.hbm [shape: f32[3,16,16], index: 1, kind: input, shape index: {}]
  %s2 = inlined_call_operand.hbm [shape: f32[896,256], index: 2, kind: input, shape index: {}]
  %s3 = inlined_call_operand.vmem [shape: f32[1,256], index: 3, kind: input, shape index: {}]
  %s4 = inlined_call_operand.hbm [shape: f32[2,1,16,256], index: 4, kind: output, shape index: {}]
  %s5 = sld [smem:[#allocation0]]
  $region61: #{tpu_custom_call.1} parent=0
    _
  %s7 = ssub.s32 1, %s5
  %s8 = scalar_select 0, %s7, %s5
  $region1: #{tpu_custom_call.1} parent=0
    #allocation3 [shape = 'u8[16384]{0}', space=vmem, size = 0x4000, scoped, tag = 'input window, operand 0']
    #allocation4 [shape = 's32[2]{0}', space=sflag, size = 0x8, scoped, tag = 'scoped memory for tpu_custom_call.1']
    #allocation5 [shape = 's32[2]{0}', space=sflag, size = 0x8, scoped, tag = 'scoped memory for tpu_custom_call.1']
    #allocation6 [shape = 'u8[24576]{0}', space=vmem, size = 0x6000, scoped, tag = 'input window, operand 1, single buffered']
    #allocation7 [shape = 's32[1]{0}', space=sflag, size = 0x4, scoped, tag = 'scoped memory for tpu_custom_call.1']
    #allocation8 [shape = 'u8[917504]{0}', space=vmem, size = 0xe0000, scoped, tag = 'input window, operand 2, single buffered']
    #allocation9 [shape = 'u8[32768]{0}', space=vmem, size = 0x8000, scoped, tag = 'output window, operand 0']
    %9 = vsyncpa [#allocation4], 0
    %s10 = scalar_lea.sflag [#allocation4], 1
    %11 = vsyncpa %s10, 0
    %12 = vsyncpa [#allocation7], 0
    %13 = vsyncpa [#allocation5], 0
    %s14 = scalar_lea.sflag [#allocation5], 1
    %15 = vsyncpa %s14, 0
    loop: start=0, step=1, limit=4
    $region2: #{tpu_custom_call.1} parent=1 // loop_pre_header
      _
    $region3: #{tpu_custom_call.1} parent=1 // loop_header
      %s17 = sphi 0, %s21
      %p18 = scmp.ge.s32.totalorder %s17, 4
      %s27 = sphi 0, %s29
      %s30 = sphi 0, %s27
      %s31 = sphi 0, %s30
      %s47 = sphi 0, %s31
      %s51 = sphi 0, %s51
      %s53 = sphi 0, %s51
      %s54 = sphi 0, %s53
      %s68 = sphi 0, %s54
      %s72 = sphi 0, %s72
      %s74 = sphi 0, %s72
      %s75 = sphi 0, %s74
      %s89 = sphi 0, %s75
      %s93 = sphi 0, %s93
      %s95 = sphi 0, %s93
      %s96 = sphi 0, %s95
      %s110 = sphi 0, %s96
      %s116 = sphi 0, %s118
      %s119 = sphi 0, %s116
      %s120 = sphi 0, %s119
      %s136 = sphi 0, %s120
    $region4: #{tpu_custom_call.1} parent=1 // loop_header_branch
      %20 = sbr.rel (%p18) target = $region8
    $region5: #{tpu_custom_call.1} parent=1 // loop_body
      %s22 = ssub.s32 %s17, 1
      %s23 = ssub.s32 %s17, 2
      %s24 = sadd.s32 %s17, 1
      %s25 = ssub.s32 %s17, %s24
      %p26 = scmp.eq.s32.totalorder %s25, 0
      %s28 = sadd.s32 %s27, 1
      %s29 = scalar_select %p26, %s27, %s28
      %p32 = pneg %p26
      %p33 = scmp.eq.s32.totalorder %s17, 1
      %p34 = por %p32, %p33
      %p35 = scmp.ne.s32.totalorder %s27, %s30
      %p36 = scmp.eq.s32.totalorder %s17, 0
      %p37 = por %p35, %p36
      %p38 = scmp.ne.s32.totalorder %s27, %s30
      %p39 = scmp.eq.s32.totalorder %s22, 1
      %p40 = por %p38, %p39
      %p41 = scmp.ne.s32.totalorder %s30, %s31
      %p42 = scmp.eq.s32.totalorder %s22, 0
      %p43 = por %p41, %p42
      %p44 = scmp.ne.s32.totalorder %s30, %s31
      %p45 = scmp.eq.s32.totalorder %s23, 1
      %p46 = por %p44, %p45
      %p48 = scmp.ne.s32.totalorder %s31, %s47
      %p49 = scmp.eq.s32.totalorder %s23, 0
      %p50 = por %p48, %p49
      %s52 = sadd.s32 %s51, 1
      %p55 = scmp.eq.s32.totalorder %s17, 1
      %p56 = scmp.ne.s32.totalorder %s51, %s53
      %p57 = scmp.eq.s32.totalorder %s17, 0
      %p58 = por %p56, %p57
      %p59 = scmp.ne.s32.totalorder %s51, %s53
      %p60 = scmp.eq.s32.totalorder %s22, 1
      %p61 = por %p59, %p60
      %p62 = scmp.ne.s32.totalorder %s53, %s54
      %p63 = scmp.eq.s32.totalorder %s22, 0
      %p64 = por %p62, %p63
      %p65 = scmp.ne.s32.totalorder %s53, %s54
      %p66 = scmp.eq.s32.totalorder %s23, 1
      %p67 = por %p65, %p66
      %p69 = scmp.ne.s32.totalorder %s54, %s68
      %p70 = scmp.eq.s32.totalorder %s23, 0
      %p71 = por %p69, %p70
      %s73 = sadd.s32 %s72, 1
      %p76 = scmp.eq.s32.totalorder %s17, 1
      %p77 = scmp.ne.s32.totalorder %s72, %s74
      %p78 = scmp.eq.s32.totalorder %s17, 0
      %p79 = por %p77, %p78
      %p80 = scmp.ne.s32.totalorder %s72, %s74
      %p81 = scmp.eq.s32.totalorder %s22, 1
      %p82 = por %p80, %p81
      %p83 = scmp.ne.s32.totalorder %s74, %s75
      %p84 = scmp.eq.s32.totalorder %s22, 0
      %p85 = por %p83, %p84
      %p86 = scmp.ne.s32.totalorder %s74, %s75
      %p87 = scmp.eq.s32.totalorder %s23, 1
      %p88 = por %p86, %p87
      %p90 = scmp.ne.s32.totalorder %s75, %s89
      %p91 = scmp.eq.s32.totalorder %s23, 0
      %p92 = por %p90, %p91
      %s94 = sadd.s32 %s93, 1
      %p97 = scmp.eq.s32.totalorder %s17, 1
      %p98 = scmp.ne.s32.totalorder %s93, %s95
      %p99 = scmp.eq.s32.totalorder %s17, 0
      %p100 = por %p98, %p99
      %p101 = scmp.ne.s32.totalorder %s93, %s95
      %p102 = scmp.eq.s32.totalorder %s22, 1
      %p103 = por %p101, %p102
      %p104 = scmp.ne.s32.totalorder %s95, %s96
      %p105 = scmp.eq.s32.totalorder %s22, 0
      %p106 = por %p104, %p105
      %p107 = scmp.ne.s32.totalorder %s95, %s96
      %p108 = scmp.eq.s32.totalorder %s23, 1
      %p109 = por %p107, %p108
      %p111 = scmp.ne.s32.totalorder %s96, %s110
      %p112 = scmp.eq.s32.totalorder %s23, 0
      %p113 = por %p111, %p112
      %s114 = ssub.s32 %s17, %s24
      %p115 = scmp.eq.s32.totalorder %s114, 0
      %s117 = sadd.s32 %s116, 1
      %s118 = scalar_select %p115, %s116, %s117
      %p121 = pneg %p115
      %p122 = scmp.eq.s32.totalorder %s17, 1
      %p123 = por %p121, %p122
      %p124 = scmp.ne.s32.totalorder %s116, %s119
      %p125 = scmp.eq.s32.totalorder %s17, 0
      %p126 = por %p124, %p125
      %p127 = scmp.ne.s32.totalorder %s116, %s119
      %p128 = scmp.eq.s32.totalorder %s22, 1
      %p129 = por %p127, %p128
      %p130 = scmp.ne.s32.totalorder %s119, %s120
      %p131 = scmp.eq.s32.totalorder %s22, 0
      %p132 = por %p130, %p131
      %p133 = scmp.ne.s32.totalorder %s119, %s120
      %p134 = scmp.eq.s32.totalorder %s23, 1
      %p135 = por %p133, %p134
      %p137 = scmp.ne.s32.totalorder %s120, %s136
      %p138 = scmp.eq.s32.totalorder %s23, 0
      %p139 = por %p137, %p138
      %p140 = scmp.le.s32.totalorder 1, %s17
      %p141 = scmp.lt.s32.totalorder %s17, 3
      %p142 = pnand %p140, %p141
      %p143 = pneg %p142
      // Predicated region
      $region9: #{tpu_custom_call.1} parent=5 // pred_check
        _
      $region10: #{tpu_custom_call.1} parent=5 // pred_check_branch
        %145 = sbr.rel (%p142) target = $region12
      $region11: #{tpu_custom_call.1} parent=5 // pred_region
        %s146 = ssub.s32 %s17, 1
        // Predicated region
        $region13: #{tpu_custom_call.1} parent=11 // pred_check
          %p147 = pneg %p64
        $region14: #{tpu_custom_call.1} parent=11 // pred_check_branch
          %149 = sbr.rel (%p147) target = $region16
        $region15: #{tpu_custom_call.1} parent=11 // pred_region
          %s151 = ssub.s32 768, 768
          %152 = vsyncadd [#allocation7], %s151
          %s153 = sshll.u32 [#allocation6], 4
          %s154 = int_to_ptr.vmem [resolvable:$true] %s153
          %159 = dma.hbm_to_vmem [thread:$0]  %s1, 768, %s154, [#allocation7], 128, 128, 8
        $region16: #{tpu_custom_call.1} parent=11 // pred_fallthru
          _
        // Predicated region
        $region17: #{tpu_custom_call.1} parent=11 // pred_check
          %p160 = pneg %p85
        $region18: #{tpu_custom_call.1} parent=11 // pred_check_branch
          %162 = sbr.rel (%p160) target = $region20
        $region19: #{tpu_custom_call.1} parent=11 // pred_region
          %s164 = ssub.s32 28672, 28672
          %165 = vsyncadd [#allocation7], %s164
          %s166 = sshll.u32 [#allocation8], 4
          %s167 = int_to_ptr.vmem [resolvable:$true] %s166
          %172 = dma.hbm_to_vmem [thread:$0]  %s2, 28672, %s167, [#allocation7], 256, 256, 16
        $region20: #{tpu_custom_call.1} parent=11 // pred_fallthru
          _
        // Predicated region
        $region21: #{tpu_custom_call.1} parent=11 // pred_check
          %p173 = pneg %p106
        $region22: #{tpu_custom_call.1} parent=11 // pred_check_branch
          %175 = sbr.rel (%p173) target = $region24
        $region23: #{tpu_custom_call.1} parent=11 // pred_region
          _
        $region24: #{tpu_custom_call.1} parent=11 // pred_fallthru
          _
      $region12: #{tpu_custom_call.1} parent=5 // pred_fallthru
        _
      %p176 = scmp.lt.s32.totalorder %s17, 2
      // Predicated region
      $region25: #{tpu_custom_call.1} parent=5 // pred_check
        %p177 = pneg %p176
      $region26: #{tpu_custom_call.1} parent=5 // pred_check_branch
        %179 = sbr.rel (%p177) target = $region28
      $region27: #{tpu_custom_call.1} parent=5 // pred_region
        // Predicated region
        $region29: #{tpu_custom_call.1} parent=27 // pred_check
          %p180 = pneg %p37
        $region30: #{tpu_custom_call.1} parent=27 // pred_check_branch
          %182 = sbr.rel (%p180) target = $region32
        $region31: #{tpu_custom_call.1} parent=27 // pred_region
          %s183 = sand.u32 %s27, 1
          %s184 = scalar_lea.sflag [#allocation4], %s183
          %s185 = sand.u32 %s27, 1
          %s186 = smul.addr %s185, 16
          %s187 = scalar_lea.vmem [#allocation3], %s186
          %s189 = ssub.s32 256, 256
          %190 = vsyncadd %s184, %s189
          %s191 = smul.addr %s17, 2
          %s192 = smul.addr %s191, 128
          %s193 = scalar_lea.hbm %s0, %s192
          %s194 = sshll.u32 %s187, 4
          %s195 = int_to_ptr.vmem [resolvable:$true] %s194
          %200 = dma.hbm_to_vmem [thread:$0]  %s193, 256, %s195, %s184, 128, 128, 8
        $region32: #{tpu_custom_call.1} parent=27 // pred_fallthru
          _
      $region28: #{tpu_custom_call.1} parent=5 // pred_fallthru
        _
      %p201 = scmp.le.s32.totalorder 1, %s17
      %p202 = scmp.lt.s32.totalorder %s17, 3
      %p203 = pnand %p201, %p202
      %p204 = pneg %p203
      // Predicated region
      $region33: #{tpu_custom_call.1} parent=5 // pred_check
        _
      $region34: #{tpu_custom_call.1} parent=5 // pred_check_branch
        %206 = sbr.rel (%p203) target = $region36
      $region35: #{tpu_custom_call.1} parent=5 // pred_region
        %s207 = ssub.s32 %s17, 1
        %s208 = sand.u32 %s30, 1
        %s209 = scalar_lea.sflag [#allocation4], %s208
        %s210 = sand.u32 %s30, 1
        %s211 = smul.addr %s210, 16
        %s212 = scalar_lea.vmem [#allocation3], %s211
        // Predicated region
        $region37: #{tpu_custom_call.1} parent=35 // pred_check
          %p213 = pneg %p43
        $region38: #{tpu_custom_call.1} parent=35 // pred_check_branch
          %215 = sbr.rel (%p213) target = $region40
        $region39: #{tpu_custom_call.1} parent=35 // pred_region
          %216 = dma.done %s209, 256
        $region40: #{tpu_custom_call.1} parent=35 // pred_fallthru
          _
        // Predicated region
        $region41: #{tpu_custom_call.1} parent=35 // pred_check
          %p217 = pneg %p64
        $region42: #{tpu_custom_call.1} parent=35 // pred_check_branch
          %219 = sbr.rel (%p217) target = $region44
        $region43: #{tpu_custom_call.1} parent=35 // pred_region
          %220 = dma.done [#allocation7], 768
        $region44: #{tpu_custom_call.1} parent=35 // pred_fallthru
          _
        // Predicated region
        $region45: #{tpu_custom_call.1} parent=35 // pred_check
          %p221 = pneg %p85
        $region46: #{tpu_custom_call.1} parent=35 // pred_check_branch
          %223 = sbr.rel (%p221) target = $region48
        $region47: #{tpu_custom_call.1} parent=35 // pred_region
          %224 = dma.done [#allocation7], 28672
        $region48: #{tpu_custom_call.1} parent=35 // pred_fallthru
          _
        %s225 = sand.u32 %s30, 1
        %s226 = scalar_lea.sflag [#allocation4], %s225
        %s227 = sand.u32 %s30, 1
        %s228 = smul.addr %s227, 16
        %s229 = scalar_lea.vmem [#allocation3], %s228
        %p230 = pneg %p43
        %p231 = pneg %p40
        %p232 = pneg %p64
        %p233 = pneg %p61
        %p234 = pneg %p85
        %p235 = pneg %p82
        %p236 = pneg %p106
        %p237 = pneg %p103
        %p238 = pneg %p132
        %p239 = pneg %p129
        %s240 = sand.u32 %s119, 1
        %s241 = scalar_lea.sflag [#allocation5], %s240
        %s242 = sand.u32 %s119, 1
        %s243 = smul.addr %s242, 32
        %s244 = scalar_lea.vmem [#allocation9], %s243
        %v245 = vld [vmem:[%s212] sm:$0xff]
        %v246 = vld [vmem:[%s212 + $0x8] sm:$0xff]
        %247 = vst [vmem:[#allocation2] sm:$0xff] %v245
        %248 = vst [vmem:[#allocation2 + $0x38] sm:$0xff] %v246
        %v249 = vld [vmem:[%s212] sm:$0xff]
        %v250 = vld [vmem:[%s212 + $0x8] sm:$0xff]
        %v251 = vld [vmem:[#allocation6] sm:$0xff]
        %v252 = vld [vmem:[#allocation6 + $0x8] sm:$0xff]
        %vm253 = vcmask 130048
        %v255 = vsel %vm253, %v251, 0
        %v258 = vsel %vm253, %v252, 0
        %260 = vmatprep.subr.mxu0 0.0
        %261 = vmatpush1.msra.mxu0 %v249
        %262 = vmatprep.subr.mxu0 0.0
        %263 = vmatpush1.msra.mxu0 %v250
        %264 = vmatprep.subr.mxu0 0.0
        %265 = vmatpush1.msra.mxu0 0.0
        %266 = vmatprep.subr.mxu0 0.0
        %267 = vmatpush1.msra.mxu0 0.0
        %268 = vmatprep.subr.mxu0 0.0
        %269 = vmatpush1.msra.mxu0 0.0
        %270 = vmatprep.subr.mxu0 0.0
        %271 = vmatpush1.msra.mxu0 0.0
        %272 = vmatprep.subr.mxu0 0.0
        %273 = vmatpush1.msra.mxu0 0.0
        %274 = vmatprep.subr.mxu0 0.0
        %275 = vmatpush1.msra.mxu0 0.0
        %276 = vmatprep.subr.mxu0 0.0
        %277 = vmatpush1.msra.mxu0 0.0
        %278 = vmatprep.subr.mxu0 0.0
        %279 = vmatpush1.msra.mxu0 0.0
        %280 = vmatprep.subr.mxu0 0.0
        %281 = vmatpush1.msra.mxu0 0.0
        %282 = vmatprep.subr.mxu0 0.0
        %283 = vmatpush1.msra.mxu0 0.0
        %284 = vmatprep.subr.mxu0 0.0
        %285 = vmatpush1.msra.mxu0 0.0
        %286 = vmatprep.subr.mxu0 0.0
        %287 = vmatpush1.msra.mxu0 0.0
        %288 = vmatprep.subr.mxu0 0.0
        %289 = vmatpush1.msra.mxu0 0.0
        %290 = vmatprep.subr.mxu0 0.0
        %291 = vmatpush1.msra.mxu0 0.0
        %292 = vmatprep.subr.mxu0 0.0
        %293 = vmatpush1.msra.mxu0 0.0
        %294 = vmatprep.subr.mxu0 0.0
        %295 = vmatpush1.msra.mxu0 0.0
        %296 = vmatprep.subr.mxu0 0.0
        %297 = vmatpush1.msra.mxu0 0.0
        %298 = vmatprep.subr.mxu0 0.0
        %299 = vmatpush1.msra.mxu0 0.0
        %300 = vmatprep.subr.mxu0 0.0
        %301 = vmatpush1.msra.mxu0 0.0
        %302 = vmatprep.subr.mxu0 0.0
        %303 = vmatpush1.msra.mxu0 0.0
        %304 = vmatprep.subr.mxu0 0.0
        %305 = vmatpush1.msra.mxu0 0.0
        %306 = vmatprep.subr.mxu0 0.0
        %307 = vmatpush1.msra.mxu0 0.0
        %308 = vmatprep.subr.mxu0 0.0
        %309 = vmatpush1.msra.mxu0 0.0
        %310 = vmatprep.subr.mxu0 0.0
        %311 = vmatpush1.msra.mxu0 0.0
        %312 = vmatprep.subr.mxu0 0.0
        %313 = vmatpush1.msra.mxu0 0.0
        %314 = vmatprep.subr.mxu0 0.0
        %315 = vmatpush1.msra.mxu0 0.0
        %316 = vmatprep.subr.mxu0 0.0
        %317 = vmatpush1.msra.mxu0 0.0
        %318 = vmatprep.subr.mxu0 0.0
        %319 = vmatpush1.msra.mxu0 0.0
        %320 = vmatprep.subr.mxu0 0.0
        %321 = vmatpush1.msra.mxu0 0.0
        %322 = vmatprep.subr.mxu0 0.0
        %323 = vmatpush1.msra.mxu0 0.0
        %324 = vmatprep.mubr.f32.mxu0 0.0
        %325 = vmatmul.mubr.f32.gmra.mrb[0].mxu0 %v255
        %v326 = vpop.f32.mrb[0].mxu0
        %v327 = vadd.f32 0.0, %v326
        %v328 = vpop.f32.mrb[0].mxu0
        %329 = vmatprep.mubr.f32.mxu0 0.0
        %330 = vmatmul.mubr.f32.gmra.mrb[0].mxu0 %v258
        %v331 = vpop.f32.mrb[0].mxu0
        %v332 = vadd.f32 0.0, %v331
        %v333 = vpop.f32.mrb[0].mxu0
        %334 = vdwg.mxu0
        %335 = vst [vmem:[#allocation2 + $0x8] sm:$0xff] %v327
        %336 = vst [vmem:[#allocation2 + $0x40] sm:$0xff] %v332
        %v337 = vld [vmem:[#allocation6] sm:$0xff]
        %v338 = vld [vmem:[#allocation6 + $0x8] sm:$0xff]
        %v340 = vsel %vm253, %v337, 0
        %v343 = vsel %vm253, %v338, 0
        %345 = vmatprep.subr.mxu0 0.0
        %346 = vmatpush1.msra.mxu0 %v327
        %347 = vmatprep.subr.mxu0 0.0
        %348 = vmatpush1.msra.mxu0 %v332
        %349 = vmatprep.subr.mxu0 0.0
        %350 = vmatpush1.msra.mxu0 0.0
        %351 = vmatprep.subr.mxu0 0.0
        %352 = vmatpush1.msra.mxu0 0.0
        %353 = vmatprep.subr.mxu0 0.0
        %354 = vmatpush1.msra.mxu0 0.0
        %355 = vmatprep.subr.mxu0 0.0
        %356 = vmatpush1.msra.mxu0 0.0
        %357 = vmatprep.subr.mxu0 0.0
        %358 = vmatpush1.msra.mxu0 0.0
        %359 = vmatprep.subr.mxu0 0.0
        %360 = vmatpush1.msra.mxu0 0.0
        %361 = vmatprep.subr.mxu0 0.0
        %362 = vmatpush1.msra.mxu0 0.0
        %363 = vmatprep.subr.mxu0 0.0
        %364 = vmatpush1.msra.mxu0 0.0
        %365 = vmatprep.subr.mxu0 0.0
        %366 = vmatpush1.msra.mxu0 0.0
        %367 = vmatprep.subr.mxu0 0.0
        %368 = vmatpush1.msra.mxu0 0.0
        %369 = vmatprep.subr.mxu0 0.0
        %370 = vmatpush1.msra.mxu0 0.0
        %371 = vmatprep.subr.mxu0 0.0
        %372 = vmatpush1.msra.mxu0 0.0
        %373 = vmatprep.subr.mxu0 0.0
        %374 = vmatpush1.msra.mxu0 0.0
        %375 = vmatprep.subr.mxu0 0.0
        %376 = vmatpush1.msra.mxu0 0.0
        %377 = vmatprep.subr.mxu0 0.0
        %378 = vmatpush1.msra.mxu0 0.0
        %379 = vmatprep.subr.mxu0 0.0
        %380 = vmatpush1.msra.mxu0 0.0
        %381 = vmatprep.subr.mxu0 0.0
        %382 = vmatpush1.msra.mxu0 0.0
        %383 = vmatprep.subr.mxu0 0.0
        %384 = vmatpush1.msra.mxu0 0.0
        %385 = vmatprep.subr.mxu0 0.0
        %386 = vmatpush1.msra.mxu0 0.0
        %387 = vmatprep.subr.mxu0 0.0
        %388 = vmatpush1.msra.mxu0 0.0
        %389 = vmatprep.subr.mxu0 0.0
        %390 = vmatpush1.msra.mxu0 0.0
        %391 = vmatprep.subr.mxu0 0.0
        %392 = vmatpush1.msra.mxu0 0.0
        %393 = vmatprep.subr.mxu0 0.0
        %394 = vmatpush1.msra.mxu0 0.0
        %395 = vmatprep.subr.mxu0 0.0
        %396 = vmatpush1.msra.mxu0 0.0
        %397 = vmatprep.subr.mxu0 0.0
        %398 = vmatpush1.msra.mxu0 0.0
        %399 = vmatprep.subr.mxu0 0.0
        %400 = vmatpush1.msra.mxu0 0.0
        %401 = vmatprep.subr.mxu0 0.0
        %402 = vmatpush1.msra.mxu0 0.0
        %403 = vmatprep.subr.mxu0 0.0
        %404 = vmatpush1.msra.mxu0 0.0
        %405 = vmatprep.subr.mxu0 0.0
        %406 = vmatpush1.msra.mxu0 0.0
        %407 = vmatprep.subr.mxu0 0.0
        %408 = vmatpush1.msra.mxu0 0.0
        %409 = vmatprep.mubr.f32.mxu0 0.0
        %410 = vmatmul.mubr.f32.gmra.mrb[0].mxu0 %v340
        %v411 = vpop.f32.mrb[0].mxu0
        %v412 = vadd.f32 0.0, %v411
        %v413 = vpop.f32.mrb[0].mxu0
        %414 = vmatprep.mubr.f32.mxu0 0.0
        %415 = vmatmul.mubr.f32.gmra.mrb[0].mxu0 %v343
        %v416 = vpop.f32.mrb[0].mxu0
        %v417 = vadd.f32 0.0, %v416
        %v418 = vpop.f32.mrb[0].mxu0
        %419 = vdwg.mxu0
        %420 = vst [vmem:[#allocation2 + $0x10] sm:$0xff] %v412
        %421 = vst [vmem:[#allocation2 + $0x48] sm:$0xff] %v417
        %v422 = vld [vmem:[%s212] sm:$0xff]
        %v423 = vld [vmem:[%s212 + $0x8] sm:$0xff]
        %s424 = scalar_lea.vmem [#allocation6], 16
        %v425 = vld [vmem:[%s424] sm:$0xff]
        %v426 = vld [vmem:[%s424 + $0x8] sm:$0xff]
        %v428 = vsel %vm253, %v425, 0
        %v431 = vsel %vm253, %v426, 0
        %433 = vmatprep.subr.mxu0 0.0
        %434 = vmatpush1.msra.mxu0 %v422
        %435 = vmatprep.subr.mxu0 0.0
        %436 = vmatpush1.msra.mxu0 %v423
        %437 = vmatprep.subr.mxu0 0.0
        %438 = vmatpush1.msra.mxu0 0.0
        %439 = vmatprep.subr.mxu0 0.0
        %440 = vmatpush1.msra.mxu0 0.0
        %441 = vmatprep.subr.mxu0 0.0
        %442 = vmatpush1.msra.mxu0 0.0
        %443 = vmatprep.subr.mxu0 0.0
        %444 = vmatpush1.msra.mxu0 0.0
        %445 = vmatprep.subr.mxu0 0.0
        %446 = vmatpush1.msra.mxu0 0.0
        %447 = vmatprep.subr.mxu0 0.0
        %448 = vmatpush1.msra.mxu0 0.0
        %449 = vmatprep.subr.mxu0 0.0
        %450 = vmatpush1.msra.mxu0 0.0
        %451 = vmatprep.subr.mxu0 0.0
        %452 = vmatpush1.msra.mxu0 0.0
        %453 = vmatprep.subr.mxu0 0.0
        %454 = vmatpush1.msra.mxu0 0.0
        %455 = vmatprep.subr.mxu0 0.0
        %456 = vmatpush1.msra.mxu0 0.0
        %457 = vmatprep.subr.mxu0 0.0
        %458 = vmatpush1.msra.mxu0 0.0
        %459 = vmatprep.subr.mxu0 0.0
        %460 = vmatpush1.msra.mxu0 0.0
        %461 = vmatprep.subr.mxu0 0.0
        %462 = vmatpush1.msra.mxu0 0.0
        %463 = vmatprep.subr.mxu0 0.0
        %464 = vmatpush1.msra.mxu0 0.0
        %465 = vmatprep.subr.mxu0 0.0
        %466 = vmatpush1.msra.mxu0 0.0
        %467 = vmatprep.subr.mxu0 0.0
        %468 = vmatpush1.msra.mxu0 0.0
        %469 = vmatprep.subr.mxu0 0.0
        %470 = vmatpush1.msra.mxu0 0.0
        %471 = vmatprep.subr.mxu0 0.0
        %472 = vmatpush1.msra.mxu0 0.0
        %473 = vmatprep.subr.mxu0 0.0
        %474 = vmatpush1.msra.mxu0 0.0
        %475 = vmatprep.subr.mxu0 0.0
        %476 = vmatpush1.msra.mxu0 0.0
        %477 = vmatprep.subr.mxu0 0.0
        %478 = vmatpush1.msra.mxu0 0.0
        %479 = vmatprep.subr.mxu0 0.0
        %480 = vmatpush1.msra.mxu0 0.0
        %481 = vmatprep.subr.mxu0 0.0
        %482 = vmatpush1.msra.mxu0 0.0
        %483 = vmatprep.subr.mxu0 0.0
        %484 = vmatpush1.msra.mxu0 0.0
        %485 = vmatprep.subr.mxu0 0.0
        %486 = vmatpush1.msra.mxu0 0.0
        %487 = vmatprep.subr.mxu0 0.0
        %488 = vmatpush1.msra.mxu0 0.0
        %489 = vmatprep.subr.mxu0 0.0
        %490 = vmatpush1.msra.mxu0 0.0
        %491 = vmatprep.subr.mxu0 0.0
        %492 = vmatpush1.msra.mxu0 0.0
        %493 = vmatprep.subr.mxu0 0.0
        %494 = vmatpush1.msra.mxu0 0.0
        %495 = vmatprep.subr.mxu0 0.0
        %496 = vmatpush1.msra.mxu0 0.0
        %497 = vmatprep.mubr.f32.mxu0 0.0
        %498 = vmatmul.mubr.f32.gmra.mrb[0].mxu0 %v428
        %v499 = vpop.f32.mrb[0].mxu0
        %v500 = vadd.f32 0.0, %v499
        %v501 = vpop.f32.mrb[0].mxu0
        %502 = vmatprep.mubr.f32.mxu0 0.0
        %503 = vmatmul.mubr.f32.gmra.mrb[0].mxu0 %v431
        %v504 = vpop.f32.mrb[0].mxu0
        %v505 = vadd.f32 0.0, %v504
        %v506 = vpop.f32.mrb[0].mxu0
        %507 = vdwg.mxu0
        %508 = vst [vmem:[#allocation2 + $0x18] sm:$0xff] %v500
        %509 = vst [vmem:[#allocation2 + $0x50] sm:$0xff] %v505
        %v510 = vld [vmem:[%s424] sm:$0xff]
        %v511 = vld [vmem:[%s424 + $0x8] sm:$0xff]
        %v513 = vsel %vm253, %v510, 0
        %v516 = vsel %vm253, %v511, 0
        %518 = vmatprep.subr.mxu0 0.0
        %519 = vmatpush1.msra.mxu0 %v500
        %520 = vmatprep.subr.mxu0 0.0
        %521 = vmatpush1.msra.mxu0 %v505
        %522 = vmatprep.subr.mxu0 0.0
        %523 = vmatpush1.msra.mxu0 0.0
        %524 = vmatprep.subr.mxu0 0.0
        %525 = vmatpush1.msra.mxu0 0.0
        %526 = vmatprep.subr.mxu0 0.0
        %527 = vmatpush1.msra.mxu0 0.0
        %528 = vmatprep.subr.mxu0 0.0
        %529 = vmatpush1.msra.mxu0 0.0
        %530 = vmatprep.subr.mxu0 0.0
        %531 = vmatpush1.msra.mxu0 0.0
        %532 = vmatprep.subr.mxu0 0.0
        %533 = vmatpush1.msra.mxu0 0.0
        %534 = vmatprep.subr.mxu0 0.0
        %535 = vmatpush1.msra.mxu0 0.0
        %536 = vmatprep.subr.mxu0 0.0
        %537 = vmatpush1.msra.mxu0 0.0
        %538 = vmatprep.subr.mxu0 0.0
        %539 = vmatpush1.msra.mxu0 0.0
        %540 = vmatprep.subr.mxu0 0.0
        %541 = vmatpush1.msra.mxu0 0.0
        %542 = vmatprep.subr.mxu0 0.0
        %543 = vmatpush1.msra.mxu0 0.0
        %544 = vmatprep.subr.mxu0 0.0
        %545 = vmatpush1.msra.mxu0 0.0
        %546 = vmatprep.subr.mxu0 0.0
        %547 = vmatpush1.msra.mxu0 0.0
        %548 = vmatprep.subr.mxu0 0.0
        %549 = vmatpush1.msra.mxu0 0.0
        %550 = vmatprep.subr.mxu0 0.0
        %551 = vmatpush1.msra.mxu0 0.0
        %552 = vmatprep.subr.mxu0 0.0
        %553 = vmatpush1.msra.mxu0 0.0
        %554 = vmatprep.subr.mxu0 0.0
        %555 = vmatpush1.msra.mxu0 0.0
        %556 = vmatprep.subr.mxu0 0.0
        %557 = vmatpush1.msra.mxu0 0.0
        %558 = vmatprep.subr.mxu0 0.0
        %559 = vmatpush1.msra.mxu0 0.0
        %560 = vmatprep.subr.mxu0 0.0
        %561 = vmatpush1.msra.mxu0 0.0
        %562 = vmatprep.subr.mxu0 0.0
        %563 = vmatpush1.msra.mxu0 0.0
        %564 = vmatprep.subr.mxu0 0.0
        %565 = vmatpush1.msra.mxu0 0.0
        %566 = vmatprep.subr.mxu0 0.0
        %567 = vmatpush1.msra.mxu0 0.0
        %568 = vmatprep.subr.mxu0 0.0
        %569 = vmatpush1.msra.mxu0 0.0
        %570 = vmatprep.subr.mxu0 0.0
        %571 = vmatpush1.msra.mxu0 0.0
        %572 = vmatprep.subr.mxu0 0.0
        %573 = vmatpush1.msra.mxu0 0.0
        %574 = vmatprep.subr.mxu0 0.0
        %575 = vmatpush1.msra.mxu0 0.0
        %576 = vmatprep.subr.mxu0 0.0
        %577 = vmatpush1.msra.mxu0 0.0
        %578 = vmatprep.subr.mxu0 0.0
        %579 = vmatpush1.msra.mxu0 0.0
        %580 = vmatprep.subr.mxu0 0.0
        %581 = vmatpush1.msra.mxu0 0.0
        %582 = vmatprep.mubr.f32.mxu0 0.0
        %583 = vmatmul.mubr.f32.gmra.mrb[0].mxu0 %v513
        %v584 = vpop.f32.mrb[0].mxu0
        %v585 = vadd.f32 0.0, %v584
        %v586 = vpop.f32.mrb[0].mxu0
        %587 = vmatprep.mubr.f32.mxu0 0.0
        %588 = vmatmul.mubr.f32.gmra.mrb[0].mxu0 %v516
        %v589 = vpop.f32.mrb[0].mxu0
        %v590 = vadd.f32 0.0, %v589
        %v591 = vpop.f32.mrb[0].mxu0
        %592 = vdwg.mxu0
        %593 = vst [vmem:[#allocation2 + $0x20] sm:$0xff] %v585
        %594 = vst [vmem:[#allocation2 + $0x58] sm:$0xff] %v590
        %v595 = vld [vmem:[%s212] sm:$0xff]
        %v596 = vld [vmem:[%s212 + $0x8] sm:$0xff]
        %s597 = scalar_lea.vmem [#allocation6], 32
        %v598 = vld [vmem:[%s597] sm:$0xff]
        %v599 = vld [vmem:[%s597 + $0x8] sm:$0xff]
        %v601 = vsel %vm253, %v598, 0
        %v604 = vsel %vm253, %v599, 0
        %606 = vmatprep.subr.mxu0 0.0
        %607 = vmatpush1.msra.mxu0 %v595
        %608 = vmatprep.subr.mxu0 0.0
        %609 = vmatpush1.msra.mxu0 %v596
        %610 = vmatprep.subr.mxu0 0.0
        %611 = vmatpush1.msra.mxu0 0.0
        %612 = vmatprep.subr.mxu0 0.0
        %613 = vmatpush1.msra.mxu0 0.0
        %614 = vmatprep.subr.mxu0 0.0
        %615 = vmatpush1.msra.mxu0 0.0
        %616 = vmatprep.subr.mxu0 0.0
        %617 = vmatpush1.msra.mxu0 0.0
        %618 = vmatprep.subr.mxu0 0.0
        %619 = vmatpush1.msra.mxu0 0.0
        %620 = vmatprep.subr.mxu0 0.0
        %621 = vmatpush1.msra.mxu0 0.0
        %622 = vmatprep.subr.mxu0 0.0
        %623 = vmatpush1.msra.mxu0 0.0
        %624 = vmatprep.subr.mxu0 0.0
        %625 = vmatpush1.msra.mxu0 0.0
        %626 = vmatprep.subr.mxu0 0.0
        %627 = vmatpush1.msra.mxu0 0.0
        %628 = vmatprep.subr.mxu0 0.0
        %629 = vmatpush1.msra.mxu0 0.0
        %630 = vmatprep.subr.mxu0 0.0
        %631 = vmatpush1.msra.mxu0 0.0
        %632 = vmatprep.subr.mxu0 0.0
        %633 = vmatpush1.msra.mxu0 0.0
        %634 = vmatprep.subr.mxu0 0.0
        %635 = vmatpush1.msra.mxu0 0.0
        %636 = vmatprep.subr.mxu0 0.0
        %637 = vmatpush1.msra.mxu0 0.0
        %638 = vmatprep.subr.mxu0 0.0
        %639 = vmatpush1.msra.mxu0 0.0
        %640 = vmatprep.subr.mxu0 0.0
        %641 = vmatpush1.msra.mxu0 0.0
        %642 = vmatprep.subr.mxu0 0.0
        %643 = vmatpush1.msra.mxu0 0.0
        %644 = vmatprep.subr.mxu0 0.0
        %645 = vmatpush1.msra.mxu0 0.0
        %646 = vmatprep.subr.mxu0 0.0
        %647 = vmatpush1.msra.mxu0 0.0
        %648 = vmatprep.subr.mxu0 0.0
        %649 = vmatpush1.msra.mxu0 0.0
        %650 = vmatprep.subr.mxu0 0.0
        %651 = vmatpush1.msra.mxu0 0.0
        %652 = vmatprep.subr.mxu0 0.0
        %653 = vmatpush1.msra.mxu0 0.0
        %654 = vmatprep.subr.mxu0 0.0
        %655 = vmatpush1.msra.mxu0 0.0
        %656 = vmatprep.subr.mxu0 0.0
        %657 = vmatpush1.msra.mxu0 0.0
        %658 = vmatprep.subr.mxu0 0.0
        %659 = vmatpush1.msra.mxu0 0.0
        %660 = vmatprep.subr.mxu0 0.0
        %661 = vmatpush1.msra.mxu0 0.0
        %662 = vmatprep.subr.mxu0 0.0
        %663 = vmatpush1.msra.mxu0 0.0
        %664 = vmatprep.subr.mxu0 0.0
        %665 = vmatpush1.msra.mxu0 0.0
        %666 = vmatprep.subr.mxu0 0.0
        %667 = vmatpush1.msra.mxu0 0.0
        %668 = vmatprep.subr.mxu0 0.0
        %669 = vmatpush1.msra.mxu0 0.0
        %670 = vmatprep.mubr.f32.mxu0 0.0
        %671 = vmatmul.mubr.f32.gmra.mrb[0].mxu0 %v601
        %v672 = vpop.f32.mrb[0].mxu0
        %v673 = vadd.f32 0.0, %v672
        %v674 = vpop.f32.mrb[0].mxu0
        %675 = vmatprep.mubr.f32.mxu0 0.0
        %676 = vmatmul.mubr.f32.gmra.mrb[0].mxu0 %v604
        %v677 = vpop.f32.mrb[0].mxu0
        %v678 = vadd.f32 0.0, %v677
        %v679 = vpop.f32.mrb[0].mxu0
        %680 = vdwg.mxu0
        %681 = vst [vmem:[#allocation2 + $0x28] sm:$0xff] %v673
        %682 = vst [vmem:[#allocation2 + $0x60] sm:$0xff] %v678
        %v683 = vld [vmem:[%s597] sm:$0xff]
        %v684 = vld [vmem:[%s597 + $0x8] sm:$0xff]
        %v686 = vsel %vm253, %v683, 0
        %v689 = vsel %vm253, %v684, 0
        %691 = vmatprep.subr.mxu0 0.0
        %692 = vmatpush1.msra.mxu0 %v673
        %693 = vmatprep.subr.mxu0 0.0
        %694 = vmatpush1.msra.mxu0 %v678
        %695 = vmatprep.subr.mxu0 0.0
        %696 = vmatpush1.msra.mxu0 0.0
        %697 = vmatprep.subr.mxu0 0.0
        %698 = vmatpush1.msra.mxu0 0.0
        %699 = vmatprep.subr.mxu0 0.0
        %700 = vmatpush1.msra.mxu0 0.0
        %701 = vmatprep.subr.mxu0 0.0
        %702 = vmatpush1.msra.mxu0 0.0
        %703 = vmatprep.subr.mxu0 0.0
        %704 = vmatpush1.msra.mxu0 0.0
        %705 = vmatprep.subr.mxu0 0.0
        %706 = vmatpush1.msra.mxu0 0.0
        %707 = vmatprep.subr.mxu0 0.0
        %708 = vmatpush1.msra.mxu0 0.0
        %709 = vmatprep.subr.mxu0 0.0
        %710 = vmatpush1.msra.mxu0 0.0
        %711 = vmatprep.subr.mxu0 0.0
        %712 = vmatpush1.msra.mxu0 0.0
        %713 = vmatprep.subr.mxu0 0.0
        %714 = vmatpush1.msra.mxu0 0.0
        %715 = vmatprep.subr.mxu0 0.0
        %716 = vmatpush1.msra.mxu0 0.0
        %717 = vmatprep.subr.mxu0 0.0
        %718 = vmatpush1.msra.mxu0 0.0
        %719 = vmatprep.subr.mxu0 0.0
        %720 = vmatpush1.msra.mxu0 0.0
        %721 = vmatprep.subr.mxu0 0.0
        %722 = vmatpush1.msra.mxu0 0.0
        %723 = vmatprep.subr.mxu0 0.0
        %724 = vmatpush1.msra.mxu0 0.0
        %725 = vmatprep.subr.mxu0 0.0
        %726 = vmatpush1.msra.mxu0 0.0
        %727 = vmatprep.subr.mxu0 0.0
        %728 = vmatpush1.msra.mxu0 0.0
        %729 = vmatprep.subr.mxu0 0.0
        %730 = vmatpush1.msra.mxu0 0.0
        %731 = vmatprep.subr.mxu0 0.0
        %732 = vmatpush1.msra.mxu0 0.0
        %733 = vmatprep.subr.mxu0 0.0
        %734 = vmatpush1.msra.mxu0 0.0
        %735 = vmatprep.subr.mxu0 0.0
        %736 = vmatpush1.msra.mxu0 0.0
        %737 = vmatprep.subr.mxu0 0.0
        %738 = vmatpush1.msra.mxu0 0.0
        %739 = vmatprep.subr.mxu0 0.0
        %740 = vmatpush1.msra.mxu0 0.0
        %741 = vmatprep.subr.mxu0 0.0
        %742 = vmatpush1.msra.mxu0 0.0
        %743 = vmatprep.subr.mxu0 0.0
        %744 = vmatpush1.msra.mxu0 0.0
        %745 = vmatprep.subr.mxu0 0.0
        %746 = vmatpush1.msra.mxu0 0.0
        %747 = vmatprep.subr.mxu0 0.0
        %748 = vmatpush1.msra.mxu0 0.0
        %749 = vmatprep.subr.mxu0 0.0
        %750 = vmatpush1.msra.mxu0 0.0
        %751 = vmatprep.subr.mxu0 0.0
        %752 = vmatpush1.msra.mxu0 0.0
        %753 = vmatprep.subr.mxu0 0.0
        %754 = vmatpush1.msra.mxu0 0.0
        %755 = vmatprep.mubr.f32.mxu0 0.0
        %756 = vmatmul.mubr.f32.gmra.mrb[0].mxu0 %v686
        %v757 = vpop.f32.mrb[0].mxu0
        %v758 = vadd.f32 0.0, %v757
        %v759 = vpop.f32.mrb[0].mxu0
        %760 = vmatprep.mubr.f32.mxu0 0.0
        %761 = vmatmul.mubr.f32.gmra.mrb[0].mxu0 %v689
        %v762 = vpop.f32.mrb[0].mxu0
        %v763 = vadd.f32 0.0, %v762
        %v764 = vpop.f32.mrb[0].mxu0
        %765 = vdwg.mxu0
        %766 = vst [vmem:[#allocation2 + $0x30] sm:$0xff] %v758
        %767 = vst [vmem:[#allocation2 + $0x68] sm:$0xff] %v763
        %v768 = vld [vmem:[#allocation2] sm:$0xff]
        %v769 = vld [vmem:[#allocation2 + $0x8] sm:$0xff]
        %v770 = vld [vmem:[#allocation2 + $0x10] sm:$0xff]
        %v771 = vld [vmem:[#allocation2 + $0x18] sm:$0xff]
        %v772 = vld [vmem:[#allocation2 + $0x20] sm:$0xff]
        %v773 = vld [vmem:[#allocation2 + $0x28] sm:$0xff]
        %v774 = vld [vmem:[#allocation2 + $0x30] sm:$0xff]
        %v775 = vld [vmem:[#allocation2 + $0x38] sm:$0xff]
        %v776 = vld [vmem:[#allocation2 + $0x40] sm:$0xff]
        %v777 = vld [vmem:[#allocation2 + $0x48] sm:$0xff]
        %v778 = vld [vmem:[#allocation2 + $0x50] sm:$0xff]
        %v779 = vld [vmem:[#allocation2 + $0x58] sm:$0xff]
        %v780 = vld [vmem:[#allocation2 + $0x60] sm:$0xff]
        %v781 = vld [vmem:[#allocation2 + $0x68] sm:$0xff]
        %v782 = vld [vmem:[#allocation8] sm:$0xff]
        %v783 = vld [vmem:[#allocation8 + $0x8] sm:$0xff]
        %v784 = vld [vmem:[#allocation8 + $0x10] sm:$0xff]
        %v785 = vld [vmem:[#allocation8 + $0x18] sm:$0xff]
        %v786 = vld [vmem:[#allocation8 + $0x20] sm:$0xff]
        %v787 = vld [vmem:[#allocation8 + $0x28] sm:$0xff]
        %v788 = vld [vmem:[#allocation8 + $0x30] sm:$0xff]
        %v789 = vld [vmem:[#allocation8 + $0x38] sm:$0xff]
        %v790 = vld [vmem:[#allocation8 + $0x40] sm:$0xff]
        %v791 = vld [vmem:[#allocation8 + $0x48] sm:$0xff]
        %v792 = vld [vmem:[#allocation8 + $0x50] sm:$0xff]
        %v793 = vld [vmem:[#allocation8 + $0x58] sm:$0xff]
        %v794 = vld [vmem:[#allocation8 + $0x60] sm:$0xff]
        %v795 = vld [vmem:[#allocation8 + $0x68] sm:$0xff]
        %v796 = vld [vmem:[#allocation8 + $0x70] sm:$0xff]
        %v797 = vld [vmem:[#allocation8 + $0x78] sm:$0xff]
        %v798 = vld [vmem:[#allocation8 + $0x80] sm:$0xff]
        %v799 = vld [vmem:[#allocation8 + $0x88] sm:$0xff]
        %v800 = vld [vmem:[#allocation8 + $0x90] sm:$0xff]
        %v801 = vld [vmem:[#allocation8 + $0x98] sm:$0xff]
        %v802 = vld [vmem:[#allocation8 + $0xa0] sm:$0xff]
        %v803 = vld [vmem:[#allocation8 + $0xa8] sm:$0xff]
        %v804 = vld [vmem:[#allocation8 + $0xb0] sm:$0xff]
        %v805 = vld [vmem:[#allocation8 + $0xb8] sm:$0xff]
        %v806 = vld [vmem:[#allocation8 + $0xc0] sm:$0xff]
        %v807 = vld [vmem:[#allocation8 + $0xc8] sm:$0xff]
        %v808 = vld [vmem:[#allocation8 + $0xd0] sm:$0xff]
        %v809 = vld [vmem:[#allocation8 + $0xd8] sm:$0xff]
        %v810 = vld [vmem:[#allocation8 + $0xe0] sm:$0xff]
        %v811 = vld [vmem:[#allocation8 + $0xe8] sm:$0xff]
        %v812 = vld [vmem:[#allocation8 + $0xf0] sm:$0xff]
        %v813 = vld [vmem:[#allocation8 + $0xf8] sm:$0xff]
        %v814 = vld [vmem:[#allocation8 + $0x100] sm:$0xff]
        %v815 = vld [vmem:[#allocation8 + $0x108] sm:$0xff]
        %v816 = vld [vmem:[#allocation8 + $0x110] sm:$0xff]
        %v817 = vld [vmem:[#allocation8 + $0x118] sm:$0xff]
        %v818 = vld [vmem:[#allocation8 + $0x120] sm:$0xff]
        %v819 = vld [vmem:[#allocation8 + $0x128] sm:$0xff]
        %v820 = vld [vmem:[#allocation8 + $0x130] sm:$0xff]
        %v821 = vld [vmem:[#allocation8 + $0x138] sm:$0xff]
        %v822 = vld [vmem:[#allocation8 + $0x140] sm:$0xff]
        %v823 = vld [vmem:[#allocation8 + $0x148] sm:$0xff]
        %v824 = vld [vmem:[#allocation8 + $0x150] sm:$0xff]
        %v825 = vld [vmem:[#allocation8 + $0x158] sm:$0xff]
        %v826 = vld [vmem:[#allocation8 + $0x160] sm:$0xff]
        %v827 = vld [vmem:[#allocation8 + $0x168] sm:$0xff]
        %v828 = vld [vmem:[#allocation8 + $0x170] sm:$0xff]
        %v829 = vld [vmem:[#allocation8 + $0x178] sm:$0xff]
        %v830 = vld [vmem:[#allocation8 + $0x180] sm:$0xff]
        %v831 = vld [vmem:[#allocation8 + $0x188] sm:$0xff]
        %v832 = vld [vmem:[#allocation8 + $0x190] sm:$0xff]
        %v833 = vld [vmem:[#allocation8 + $0x198] sm:$0xff]
        %v834 = vld [vmem:[#allocation8 + $0x1a0] sm:$0xff]
        %v835 = vld [vmem:[#allocation8 + $0x1a8] sm:$0xff]
        %v836 = vld [vmem:[#allocation8 + $0x1b0] sm:$0xff]
        %v837 = vld [vmem:[#allocation8 + $0x1b8] sm:$0xff]
        %v838 = vld [vmem:[#allocation8 + $0x1c0] sm:$0xff]
        %v839 = vld [vmem:[#allocation8 + $0x1c8] sm:$0xff]
        %v840 = vld [vmem:[#allocation8 + $0x1d0] sm:$0xff]
        %v841 = vld [vmem:[#allocation8 + $0x1d8] sm:$0xff]
        %v842 = vld [vmem:[#allocation8 + $0x1e0] sm:$0xff]
        %v843 = vld [vmem:[#allocation8 + $0x1e8] sm:$0xff]
        %v844 = vld [vmem:[#allocation8 + $0x1f0] sm:$0xff]
        %v845 = vld [vmem:[#allocation8 + $0x1f8] sm:$0xff]
        %v846 = vld [vmem:[#allocation8 + $0x200] sm:$0xff]
        %v847 = vld [vmem:[#allocation8 + $0x208] sm:$0xff]
        %v848 = vld [vmem:[#allocation8 + $0x210] sm:$0xff]
        %v849 = vld [vmem:[#allocation8 + $0x218] sm:$0xff]
        %v850 = vld [vmem:[#allocation8 + $0x220] sm:$0xff]
        %v851 = vld [vmem:[#allocation8 + $0x228] sm:$0xff]
        %v852 = vld [vmem:[#allocation8 + $0x230] sm:$0xff]
        %v853 = vld [vmem:[#allocation8 + $0x238] sm:$0xff]
        %v854 = vld [vmem:[#allocation8 + $0x240] sm:$0xff]
        %v855 = vld [vmem:[#allocation8 + $0x248] sm:$0xff]
        %v856 = vld [vmem:[#allocation8 + $0x250] sm:$0xff]
        %v857 = vld [vmem:[#allocation8 + $0x258] sm:$0xff]
        %v858 = vld [vmem:[#allocation8 + $0x260] sm:$0xff]
        %v859 = vld [vmem:[#allocation8 + $0x268] sm:$0xff]
        %v860 = vld [vmem:[#allocation8 + $0x270] sm:$0xff]
        %v861 = vld [vmem:[#allocation8 + $0x278] sm:$0xff]
        %v862 = vld [vmem:[#allocation8 + $0x280] sm:$0xff]
        %v863 = vld [vmem:[#allocation8 + $0x288] sm:$0xff]
        %v864 = vld [vmem:[#allocation8 + $0x290] sm:$0xff]
        %v865 = vld [vmem:[#allocation8 + $0x298] sm:$0xff]
        %v866 = vld [vmem:[#allocation8 + $0x2a0] sm:$0xff]
        %v867 = vld [vmem:[#allocation8 + $0x2a8] sm:$0xff]
        %v868 = vld [vmem:[#allocation8 + $0x2b0] sm:$0xff]
        %v869 = vld [vmem:[#allocation8 + $0x2b8] sm:$0xff]
        %v870 = vld [vmem:[#allocation8 + $0x2c0] sm:$0xff]
        %v871 = vld [vmem:[#allocation8 + $0x2c8] sm:$0xff]
        %v872 = vld [vmem:[#allocation8 + $0x2d0] sm:$0xff]
        %v873 = vld [vmem:[#allocation8 + $0x2d8] sm:$0xff]
        %v874 = vld [vmem:[#allocation8 + $0x2e0] sm:$0xff]
        %v875 = vld [vmem:[#allocation8 + $0x2e8] sm:$0xff]
        %v876 = vld [vmem:[#allocation8 + $0x2f0] sm:$0xff]
        %v877 = vld [vmem:[#allocation8 + $0x2f8] sm:$0xff]
        %v878 = vld [vmem:[#allocation8 + $0x300] sm:$0xff]
        %v879 = vld [vmem:[#allocation8 + $0x308] sm:$0xff]
        %v880 = vld [vmem:[#allocation8 + $0x310] sm:$0xff]
        %v881 = vld [vmem:[#allocation8 + $0x318] sm:$0xff]
        %v882 = vld [vmem:[#allocation8 + $0x320] sm:$0xff]
        %v883 = vld [vmem:[#allocation8 + $0x328] sm:$0xff]
        %v884 = vld [vmem:[#allocation8 + $0x330] sm:$0xff]
        %v885 = vld [vmem:[#allocation8 + $0x338] sm:$0xff]
        %v886 = vld [vmem:[#allocation8 + $0x340] sm:$0xff]
        %v887 = vld [vmem:[#allocation8 + $0x348] sm:$0xff]
        %v888 = vld [vmem:[#allocation8 + $0x350] sm:$0xff]
        %v889 = vld [vmem:[#allocation8 + $0x358] sm:$0xff]
        %v890 = vld [vmem:[#allocation8 + $0x360] sm:$0xff]
        %v891 = vld [vmem:[#allocation8 + $0x368] sm:$0xff]
        %v892 = vld [vmem:[#allocation8 + $0x370] sm:$0xff]
        %v893 = vld [vmem:[#allocation8 + $0x378] sm:$0xff]
        %v894 = vld [vmem:[#allocation8 + $0x380] sm:$0xff]
        %v895 = vld [vmem:[#allocation8 + $0x388] sm:$0xff]
        %v896 = vld [vmem:[#allocation8 + $0x390] sm:$0xff]
        %v897 = vld [vmem:[#allocation8 + $0x398] sm:$0xff]
        %v898 = vld [vmem:[#allocation8 + $0x3a0] sm:$0xff]
        %v899 = vld [vmem:[#allocation8 + $0x3a8] sm:$0xff]
        %v900 = vld [vmem:[#allocation8 + $0x3b0] sm:$0xff]
        %v901 = vld [vmem:[#allocation8 + $0x3b8] sm:$0xff]
        %v902 = vld [vmem:[#allocation8 + $0x3c0] sm:$0xff]
        %v903 = vld [vmem:[#allocation8 + $0x3c8] sm:$0xff]
        %v904 = vld [vmem:[#allocation8 + $0x3d0] sm:$0xff]
        %v905 = vld [vmem:[#allocation8 + $0x3d8] sm:$0xff]
        %v906 = vld [vmem:[#allocation8 + $0x3e0] sm:$0xff]
        %v907 = vld [vmem:[#allocation8 + $0x3e8] sm:$0xff]
        %v908 = vld [vmem:[#allocation8 + $0x3f0] sm:$0xff]
        %v909 = vld [vmem:[#allocation8 + $0x3f8] sm:$0xff]
        %v910 = vld [vmem:[#allocation8 + $0x400] sm:$0xff]
        %v911 = vld [vmem:[#allocation8 + $0x408] sm:$0xff]
        %v912 = vld [vmem:[#allocation8 + $0x410] sm:$0xff]
        %v913 = vld [vmem:[#allocation8 + $0x418] sm:$0xff]
        %v914 = vld [vmem:[#allocation8 + $0x420] sm:$0xff]
        %v915 = vld [vmem:[#allocation8 + $0x428] sm:$0xff]
        %v916 = vld [vmem:[#allocation8 + $0x430] sm:$0xff]
        %v917 = vld [vmem:[#allocation8 + $0x438] sm:$0xff]
        %v918 = vld [vmem:[#allocation8 + $0x440] sm:$0xff]
        %v919 = vld [vmem:[#allocation8 + $0x448] sm:$0xff]
        %v920 = vld [vmem:[#allocation8 + $0x450] sm:$0xff]
        %v921 = vld [vmem:[#allocation8 + $0x458] sm:$0xff]
        %v922 = vld [vmem:[#allocation8 + $0x460] sm:$0xff]
        %v923 = vld [vmem:[#allocation8 + $0x468] sm:$0xff]
        %v924 = vld [vmem:[#allocation8 + $0x470] sm:$0xff]
        %v925 = vld [vmem:[#allocation8 + $0x478] sm:$0xff]
        %v926 = vld [vmem:[#allocation8 + $0x480] sm:$0xff]
        %v927 = vld [vmem:[#allocation8 + $0x488] sm:$0xff]
        %v928 = vld [vmem:[#allocation8 + $0x490] sm:$0xff]
        %v929 = vld [vmem:[#allocation8 + $0x498] sm:$0xff]
        %v930 = vld [vmem:[#allocation8 + $0x4a0] sm:$0xff]
        %v931 = vld [vmem:[#allocation8 + $0x4a8] sm:$0xff]
        %v932 = vld [vmem:[#allocation8 + $0x4b0] sm:$0xff]
        %v933 = vld [vmem:[#allocation8 + $0x4b8] sm:$0xff]
        %v934 = vld [vmem:[#allocation8 + $0x4c0] sm:$0xff]
        %v935 = vld [vmem:[#allocation8 + $0x4c8] sm:$0xff]
        %v936 = vld [vmem:[#allocation8 + $0x4d0] sm:$0xff]
        %v937 = vld [vmem:[#allocation8 + $0x4d8] sm:$0xff]
        %v938 = vld [vmem:[#allocation8 + $0x4e0] sm:$0xff]
        %v939 = vld [vmem:[#allocation8 + $0x4e8] sm:$0xff]
        %v940 = vld [vmem:[#allocation8 + $0x4f0] sm:$0xff]
        %v941 = vld [vmem:[#allocation8 + $0x4f8] sm:$0xff]
        %v942 = vld [vmem:[#allocation8 + $0x500] sm:$0xff]
        %v943 = vld [vmem:[#allocation8 + $0x508] sm:$0xff]
        %v944 = vld [vmem:[#allocation8 + $0x510] sm:$0xff]
        %v945 = vld [vmem:[#allocation8 + $0x518] sm:$0xff]
        %v946 = vld [vmem:[#allocation8 + $0x520] sm:$0xff]
        %v947 = vld [vmem:[#allocation8 + $0x528] sm:$0xff]
        %v948 = vld [vmem:[#allocation8 + $0x530] sm:$0xff]
        %v949 = vld [vmem:[#allocation8 + $0x538] sm:$0xff]
        %v950 = vld [vmem:[#allocation8 + $0x540] sm:$0xff]
        %v951 = vld [vmem:[#allocation8 + $0x548] sm:$0xff]
        %v952 = vld [vmem:[#allocation8 + $0x550] sm:$0xff]
        %v953 = vld [vmem:[#allocation8 + $0x558] sm:$0xff]
        %v954 = vld [vmem:[#allocation8 + $0x560] sm:$0xff]
        %v955 = vld [vmem:[#allocation8 + $0x568] sm:$0xff]
        %v956 = vld [vmem:[#allocation8 + $0x570] sm:$0xff]
        %v957 = vld [vmem:[#allocation8 + $0x578] sm:$0xff]
        %v958 = vld [vmem:[#allocation8 + $0x580] sm:$0xff]
        %v959 = vld [vmem:[#allocation8 + $0x588] sm:$0xff]
        %v960 = vld [vmem:[#allocation8 + $0x590] sm:$0xff]
        %v961 = vld [vmem:[#allocation8 + $0x598] sm:$0xff]
        %v962 = vld [vmem:[#allocation8 + $0x5a0] sm:$0xff]
        %v963 = vld [vmem:[#allocation8 + $0x5a8] sm:$0xff]
        %v964 = vld [vmem:[#allocation8 + $0x5b0] sm:$0xff]
        %v965 = vld [vmem:[#allocation8 + $0x5b8] sm:$0xff]
        %v966 = vld [vmem:[#allocation8 + $0x5c0] sm:$0xff]
        %v967 = vld [vmem:[#allocation8 + $0x5c8] sm:$0xff]
        %v968 = vld [vmem:[#allocation8 + $0x5d0] sm:$0xff]
        %v969 = vld [vmem:[#allocation8 + $0x5d8] sm:$0xff]
        %v970 = vld [vmem:[#allocation8 + $0x5e0] sm:$0xff]
        %v971 = vld [vmem:[#allocation8 + $0x5e8] sm:$0xff]
        %v972 = vld [vmem:[#allocation8 + $0x5f0] sm:$0xff]
        %v973 = vld [vmem:[#allocation8 + $0x5f8] sm:$0xff]
        %v974 = vld [vmem:[#allocation8 + $0x600] sm:$0xff]
        %v975 = vld [vmem:[#allocation8 + $0x608] sm:$0xff]
        %v976 = vld [vmem:[#allocation8 + $0x610] sm:$0xff]
        %v977 = vld [vmem:[#allocation8 + $0x618] sm:$0xff]
        %v978 = vld [vmem:[#allocation8 + $0x620] sm:$0xff]
        %v979 = vld [vmem:[#allocation8 + $0x628] sm:$0xff]
        %v980 = vld [vmem:[#allocation8 + $0x630] sm:$0xff]
        %v981 = vld [vmem:[#allocation8 + $0x638] sm:$0xff]
        %v982 = vld [vmem:[#allocation8 + $0x640] sm:$0xff]
        %v983 = vld [vmem:[#allocation8 + $0x648] sm:$0xff]
        %v984 = vld [vmem:[#allocation8 + $0x650] sm:$0xff]
        %v985 = vld [vmem:[#allocation8 + $0x658] sm:$0xff]
        %v986 = vld [vmem:[#allocation8 + $0x660] sm:$0xff]
        %v987 = vld [vmem:[#allocation8 + $0x668] sm:$0xff]
        %v988 = vld [vmem:[#allocation8 + $0x670] sm:$0xff]
        %v989 = vld [vmem:[#allocation8 + $0x678] sm:$0xff]
        %v990 = vld [vmem:[#allocation8 + $0x680] sm:$0xff]
        %v991 = vld [vmem:[#allocation8 + $0x688] sm:$0xff]
        %v992 = vld [vmem:[#allocation8 + $0x690] sm:$0xff]
        %v993 = vld [vmem:[#allocation8 + $0x698] sm:$0xff]
        %v994 = vld [vmem:[#allocation8 + $0x6a0] sm:$0xff]
        %v995 = vld [vmem:[#allocation8 + $0x6a8] sm:$0xff]
        %v996 = vld [vmem:[#allocation8 + $0x6b0] sm:$0xff]
        %v997 = vld [vmem:[#allocation8 + $0x6b8] sm:$0xff]
        %v998 = vld [vmem:[#allocation8 + $0x6c0] sm:$0xff]
        %v999 = vld [vmem:[#allocation8 + $0x6c8] sm:$0xff]
        %v1000 = vld [vmem:[#allocation8 + $0x6d0] sm:$0xff]
        %v1001 = vld [vmem:[#allocation8 + $0x6d8] sm:$0xff]
        %v1002 = vld [vmem:[#allocation8 + $0x6e0] sm:$0xff]
        %v1003 = vld [vmem:[#allocation8 + $0x6e8] sm:$0xff]
        %v1004 = vld [vmem:[#allocation8 + $0x6f0] sm:$0xff]
        %v1005 = vld [vmem:[#allocation8 + $0x6f8] sm:$0xff]
        %v1006 = vld [vmem:[%s3] sm:$0x3]
        %v1008 = vlaneseq
        %v1009 = vshrl.u32 %v1008, 7
        %v1010 = vsub.s32 0, %v1009
        %v1011 = vrot.slane %v1006, %v1010
        %v1012 = vlaneseq
        %v1013 = vshrl.u32 %v1012, 7
        %v1014 = vsub.s32 1, %v1013
        %v1015 = vrot.slane %v1006, %v1014
        %1018 = vmatprep.subr.mxu0 %v783
        %1019 = vmatpush1.msra.mxu0 %v782
        %1020 = vmatprep.subr.mxu0 %v785
        %1021 = vmatpush1.msra.mxu0 %v784
        %1022 = vmatprep.subr.mxu0 %v787
        %1023 = vmatpush1.msra.mxu0 %v786
        %1024 = vmatprep.subr.mxu0 %v789
        %1025 = vmatpush1.msra.mxu0 %v788
        %1026 = vmatprep.subr.mxu0 %v791
        %1027 = vmatpush1.msra.mxu0 %v790
        %1028 = vmatprep.subr.mxu0 %v793
        %1029 = vmatpush1.msra.mxu0 %v792
        %1030 = vmatprep.subr.mxu0 %v795
        %1031 = vmatpush1.msra.mxu0 %v794
        %1032 = vmatprep.subr.mxu0 %v797
        %1033 = vmatpush1.msra.mxu0 %v796
        %1034 = vmatprep.subr.mxu0 %v799
        %1035 = vmatpush1.msra.mxu0 %v798
        %1036 = vmatprep.subr.mxu0 %v801
        %1037 = vmatpush1.msra.mxu0 %v800
        %1038 = vmatprep.subr.mxu0 %v803
        %1039 = vmatpush1.msra.mxu0 %v802
        %1040 = vmatprep.subr.mxu0 %v805
        %1041 = vmatpush1.msra.mxu0 %v804
        %1042 = vmatprep.subr.mxu0 %v807
        %1043 = vmatpush1.msra.mxu0 %v806
        %1044 = vmatprep.subr.mxu0 %v809
        %1045 = vmatpush1.msra.mxu0 %v808
        %1046 = vmatprep.subr.mxu0 %v811
        %1047 = vmatpush1.msra.mxu0 %v810
        %1048 = vmatprep.subr.mxu0 %v813
        %1049 = vmatpush1.msra.mxu0 %v812
        %1050 = vmatprep.subr.mxu0 %v815
        %1051 = vmatpush1.msra.mxu0 %v814
        %1052 = vmatprep.subr.mxu0 %v817
        %1053 = vmatpush1.msra.mxu0 %v816
        %1054 = vmatprep.subr.mxu0 %v819
        %1055 = vmatpush1.msra.mxu0 %v818
        %1056 = vmatprep.subr.mxu0 %v821
        %1057 = vmatpush1.msra.mxu0 %v820
        %1058 = vmatprep.subr.mxu0 %v823
        %1059 = vmatpush1.msra.mxu0 %v822
        %1060 = vmatprep.subr.mxu0 %v825
        %1061 = vmatpush1.msra.mxu0 %v824
        %1062 = vmatprep.subr.mxu0 %v827
        %1063 = vmatpush1.msra.mxu0 %v826
        %1064 = vmatprep.subr.mxu0 %v829
        %1065 = vmatpush1.msra.mxu0 %v828
        %1066 = vmatprep.subr.mxu0 %v831
        %1067 = vmatpush1.msra.mxu0 %v830
        %1068 = vmatprep.subr.mxu0 %v833
        %1069 = vmatpush1.msra.mxu0 %v832
        %1070 = vmatprep.subr.mxu0 %v835
        %1071 = vmatpush1.msra.mxu0 %v834
        %1072 = vmatprep.subr.mxu0 %v837
        %1073 = vmatpush1.msra.mxu0 %v836
        %1074 = vmatprep.subr.mxu0 %v839
        %1075 = vmatpush1.msra.mxu0 %v838
        %1076 = vmatprep.subr.mxu0 %v841
        %1077 = vmatpush1.msra.mxu0 %v840
        %1078 = vmatprep.subr.mxu0 %v843
        %1079 = vmatpush1.msra.mxu0 %v842
        %1080 = vmatprep.subr.mxu0 %v845
        %1081 = vmatpush1.msra.mxu0 %v844
        %1082 = vmatprep.mubr.f32.mxu0 %v769
        %1083 = vmatmul.mubr.f32.gmra.mrb[0].mxu0 %v768
        %v1084 = vpop.f32.mrb[0].mxu0
        %v1085 = vadd.f32 %v1011, %v1084
        %v1086 = vpop.f32.mrb[0].mxu0
        %v1087 = vadd.f32 %v1015, %v1086
        %1088 = vmatprep.mubr.f32.mxu0 %v776
        %1089 = vmatmul.mubr.f32.gmra.mrb[0].mxu0 %v775
        %v1090 = vpop.f32.mrb[0].mxu0
        %v1091 = vadd.f32 %v1011, %v1090
        %v1092 = vpop.f32.mrb[0].mxu0
        %v1093 = vadd.f32 %v1015, %v1092
        %1094 = vdwg.mxu0
        %1095 = vmatprep.subr.mxu0 %v847
        %1096 = vmatpush1.msra.mxu0 %v846
        %1097 = vmatprep.subr.mxu0 %v849
        %1098 = vmatpush1.msra.mxu0 %v848
        %1099 = vmatprep.subr.mxu0 %v851
        %1100 = vmatpush1.msra.mxu0 %v850
        %1101 = vmatprep.subr.mxu0 %v853
        %1102 = vmatpush1.msra.mxu0 %v852
        %1103 = vmatprep.subr.mxu0 %v855
        %1104 = vmatpush1.msra.mxu0 %v854
        %1105 = vmatprep.subr.mxu0 %v857
        %1106 = vmatpush1.msra.mxu0 %v856
        %1107 = vmatprep.subr.mxu0 %v859
        %1108 = vmatpush1.msra.mxu0 %v858
        %1109 = vmatprep.subr.mxu0 %v861
        %1110 = vmatpush1.msra.mxu0 %v860
        %1111 = vmatprep.subr.mxu0 %v863
        %1112 = vmatpush1.msra.mxu0 %v862
        %1113 = vmatprep.subr.mxu0 %v865
        %1114 = vmatpush1.msra.mxu0 %v864
        %1115 = vmatprep.subr.mxu0 %v867
        %1116 = vmatpush1.msra.mxu0 %v866
        %1117 = vmatprep.subr.mxu0 %v869
        %1118 = vmatpush1.msra.mxu0 %v868
        %1119 = vmatprep.subr.mxu0 %v871
        %1120 = vmatpush1.msra.mxu0 %v870
        %1121 = vmatprep.subr.mxu0 %v873
        %1122 = vmatpush1.msra.mxu0 %v872
        %1123 = vmatprep.subr.mxu0 %v875
        %1124 = vmatpush1.msra.mxu0 %v874
        %1125 = vmatprep.subr.mxu0 %v877
        %1126 = vmatpush1.msra.mxu0 %v876
        %1127 = vmatprep.subr.mxu0 %v879
        %1128 = vmatpush1.msra.mxu0 %v878
        %1129 = vmatprep.subr.mxu0 %v881
        %1130 = vmatpush1.msra.mxu0 %v880
        %1131 = vmatprep.subr.mxu0 %v883
        %1132 = vmatpush1.msra.mxu0 %v882
        %1133 = vmatprep.subr.mxu0 %v885
        %1134 = vmatpush1.msra.mxu0 %v884
        %1135 = vmatprep.subr.mxu0 %v887
        %1136 = vmatpush1.msra.mxu0 %v886
        %1137 = vmatprep.subr.mxu0 %v889
        %1138 = vmatpush1.msra.mxu0 %v888
        %1139 = vmatprep.subr.mxu0 %v891
        %1140 = vmatpush1.msra.mxu0 %v890
        %1141 = vmatprep.subr.mxu0 %v893
        %1142 = vmatpush1.msra.mxu0 %v892
        %1143 = vmatprep.subr.mxu0 %v895
        %1144 = vmatpush1.msra.mxu0 %v894
        %1145 = vmatprep.subr.mxu0 %v897
        %1146 = vmatpush1.msra.mxu0 %v896
        %1147 = vmatprep.subr.mxu0 %v899
        %1148 = vmatpush1.msra.mxu0 %v898
        %1149 = vmatprep.subr.mxu0 %v901
        %1150 = vmatpush1.msra.mxu0 %v900
        %1151 = vmatprep.subr.mxu0 %v903
        %1152 = vmatpush1.msra.mxu0 %v902
        %1153 = vmatprep.subr.mxu0 %v905
        %1154 = vmatpush1.msra.mxu0 %v904
        %1155 = vmatprep.subr.mxu0 %v907
        %1156 = vmatpush1.msra.mxu0 %v906
        %1157 = vmatprep.subr.mxu0 %v909
        %1158 = vmatpush1.msra.mxu0 %v908
        %1159 = vmatprep.mubr.f32.mxu0 %v771
        %1160 = vmatmul.mubr.f32.gmra.mrb[0].mxu0 %v770
        %v1161 = vpop.f32.mrb[0].mxu0
        %v1162 = vadd.f32 %v1085, %v1161
        %v1163 = vpop.f32.mrb[0].mxu0
        %v1164 = vadd.f32 %v1087, %v1163
        %1165 = vmatprep.mubr.f32.mxu0 %v778
        %1166 = vmatmul.mubr.f32.gmra.mrb[0].mxu0 %v777
        %v1167 = vpop.f32.mrb[0].mxu0
        %v1168 = vadd.f32 %v1091, %v1167
        %v1169 = vpop.f32.mrb[0].mxu0
        %v1170 = vadd.f32 %v1093, %v1169
        %1171 = vdwg.mxu0
        %1172 = vmatprep.subr.mxu0 %v911
        %1173 = vmatpush1.msra.mxu0 %v910
        %1174 = vmatprep.subr.mxu0 %v913
        %1175 = vmatpush1.msra.mxu0 %v912
        %1176 = vmatprep.subr.mxu0 %v915
        %1177 = vmatpush1.msra.mxu0 %v914
        %1178 = vmatprep.subr.mxu0 %v917
        %1179 = vmatpush1.msra.mxu0 %v916
        %1180 = vmatprep.subr.mxu0 %v919
        %1181 = vmatpush1.msra.mxu0 %v918
        %1182 = vmatprep.subr.mxu0 %v921
        %1183 = vmatpush1.msra.mxu0 %v920
        %1184 = vmatprep.subr.mxu0 %v923
        %1185 = vmatpush1.msra.mxu0 %v922
        %1186 = vmatprep.subr.mxu0 %v925
        %1187 = vmatpush1.msra.mxu0 %v924
        %1188 = vmatprep.subr.mxu0 %v927
        %1189 = vmatpush1.msra.mxu0 %v926
        %1190 = vmatprep.subr.mxu0 %v929
        %1191 = vmatpush1.msra.mxu0 %v928
        %1192 = vmatprep.subr.mxu0 %v931
        %1193 = vmatpush1.msra.mxu0 %v930
        %1194 = vmatprep.subr.mxu0 %v933
        %1195 = vmatpush1.msra.mxu0 %v932
        %1196 = vmatprep.subr.mxu0 %v935
        %1197 = vmatpush1.msra.mxu0 %v934
        %1198 = vmatprep.subr.mxu0 %v937
        %1199 = vmatpush1.msra.mxu0 %v936
        %1200 = vmatprep.subr.mxu0 %v939
        %1201 = vmatpush1.msra.mxu0 %v938
        %1202 = vmatprep.subr.mxu0 %v941
        %1203 = vmatpush1.msra.mxu0 %v940
        %1204 = vmatprep.subr.mxu0 %v943
        %1205 = vmatpush1.msra.mxu0 %v942
        %1206 = vmatprep.subr.mxu0 %v945
        %1207 = vmatpush1.msra.mxu0 %v944
        %1208 = vmatprep.subr.mxu0 %v947
        %1209 = vmatpush1.msra.mxu0 %v946
        %1210 = vmatprep.subr.mxu0 %v949
        %1211 = vmatpush1.msra.mxu0 %v948
        %1212 = vmatprep.subr.mxu0 %v951
        %1213 = vmatpush1.msra.mxu0 %v950
        %1214 = vmatprep.subr.mxu0 %v953
        %1215 = vmatpush1.msra.mxu0 %v952
        %1216 = vmatprep.subr.mxu0 %v955
        %1217 = vmatpush1.msra.mxu0 %v954
        %1218 = vmatprep.subr.mxu0 %v957
        %1219 = vmatpush1.msra.mxu0 %v956
        %1220 = vmatprep.subr.mxu0 %v959
        %1221 = vmatpush1.msra.mxu0 %v958
        %1222 = vmatprep.subr.mxu0 %v961
        %1223 = vmatpush1.msra.mxu0 %v960
        %1224 = vmatprep.subr.mxu0 %v963
        %1225 = vmatpush1.msra.mxu0 %v962
        %1226 = vmatprep.subr.mxu0 %v965
        %1227 = vmatpush1.msra.mxu0 %v964
        %1228 = vmatprep.subr.mxu0 %v967
        %1229 = vmatpush1.msra.mxu0 %v966
        %1230 = vmatprep.subr.mxu0 %v969
        %1231 = vmatpush1.msra.mxu0 %v968
        %1232 = vmatprep.subr.mxu0 %v971
        %1233 = vmatpush1.msra.mxu0 %v970
        %1234 = vmatprep.subr.mxu0 %v973
        %1235 = vmatpush1.msra.mxu0 %v972
        %1236 = vmatprep.mubr.f32.mxu0 %v773
        %1237 = vmatmul.mubr.f32.gmra.mrb[0].mxu0 %v772
        %v1238 = vpop.f32.mrb[0].mxu0
        %v1239 = vadd.f32 %v1162, %v1238
        %v1240 = vpop.f32.mrb[0].mxu0
        %v1241 = vadd.f32 %v1164, %v1240
        %1242 = vmatprep.mubr.f32.mxu0 %v780
        %1243 = vmatmul.mubr.f32.gmra.mrb[0].mxu0 %v779
        %v1244 = vpop.f32.mrb[0].mxu0
        %v1245 = vadd.f32 %v1168, %v1244
        %v1246 = vpop.f32.mrb[0].mxu0
        %v1247 = vadd.f32 %v1170, %v1246
        %1248 = vdwg.mxu0
        %1249 = vmatprep.subr.mxu0 %v975
        %1250 = vmatpush1.msra.mxu0 %v974
        %1251 = vmatprep.subr.mxu0 %v977
        %1252 = vmatpush1.msra.mxu0 %v976
        %1253 = vmatprep.subr.mxu0 %v979
        %1254 = vmatpush1.msra.mxu0 %v978
        %1255 = vmatprep.subr.mxu0 %v981
        %1256 = vmatpush1.msra.mxu0 %v980
        %1257 = vmatprep.subr.mxu0 %v983
        %1258 = vmatpush1.msra.mxu0 %v982
        %1259 = vmatprep.subr.mxu0 %v985
        %1260 = vmatpush1.msra.mxu0 %v984
        %1261 = vmatprep.subr.mxu0 %v987
        %1262 = vmatpush1.msra.mxu0 %v986
        %1263 = vmatprep.subr.mxu0 %v989
        %1264 = vmatpush1.msra.mxu0 %v988
        %1265 = vmatprep.subr.mxu0 %v991
        %1266 = vmatpush1.msra.mxu0 %v990
        %1267 = vmatprep.subr.mxu0 %v993
        %1268 = vmatpush1.msra.mxu0 %v992
        %1269 = vmatprep.subr.mxu0 %v995
        %1270 = vmatpush1.msra.mxu0 %v994
        %1271 = vmatprep.subr.mxu0 %v997
        %1272 = vmatpush1.msra.mxu0 %v996
        %1273 = vmatprep.subr.mxu0 %v999
        %1274 = vmatpush1.msra.mxu0 %v998
        %1275 = vmatprep.subr.mxu0 %v1001
        %1276 = vmatpush1.msra.mxu0 %v1000
        %1277 = vmatprep.subr.mxu0 %v1003
        %1278 = vmatpush1.msra.mxu0 %v1002
        %1279 = vmatprep.subr.mxu0 %v1005
        %1280 = vmatpush1.msra.mxu0 %v1004
        %1281 = vmatprep.subr.mxu0 0.0
        %1282 = vmatpush1.msra.mxu0 0.0
        %1283 = vmatprep.subr.mxu0 0.0
        %1284 = vmatpush1.msra.mxu0 0.0
        %1285 = vmatprep.subr.mxu0 0.0
        %1286 = vmatpush1.msra.mxu0 0.0
        %1287 = vmatprep.subr.mxu0 0.0
        %1288 = vmatpush1.msra.mxu0 0.0
        %1289 = vmatprep.subr.mxu0 0.0
        %1290 = vmatpush1.msra.mxu0 0.0
        %1291 = vmatprep.subr.mxu0 0.0
        %1292 = vmatpush1.msra.mxu0 0.0
        %1293 = vmatprep.subr.mxu0 0.0
        %1294 = vmatpush1.msra.mxu0 0.0
        %1295 = vmatprep.subr.mxu0 0.0
        %1296 = vmatpush1.msra.mxu0 0.0
        %1297 = vmatprep.subr.mxu0 0.0
        %1298 = vmatpush1.msra.mxu0 0.0
        %1299 = vmatprep.subr.mxu0 0.0
        %1300 = vmatpush1.msra.mxu0 0.0
        %1301 = vmatprep.subr.mxu0 0.0
        %1302 = vmatpush1.msra.mxu0 0.0
        %1303 = vmatprep.subr.mxu0 0.0
        %1304 = vmatpush1.msra.mxu0 0.0
        %1305 = vmatprep.subr.mxu0 0.0
        %1306 = vmatpush1.msra.mxu0 0.0
        %1307 = vmatprep.subr.mxu0 0.0
        %1308 = vmatpush1.msra.mxu0 0.0
        %1309 = vmatprep.subr.mxu0 0.0
        %1310 = vmatpush1.msra.mxu0 0.0
        %1311 = vmatprep.subr.mxu0 0.0
        %1312 = vmatpush1.msra.mxu0 0.0
        %1313 = vmatprep.mubr.f32.mxu0 0.0
        %1314 = vmatmul.mubr.f32.gmra.mrb[0].mxu0 %v774
        %v1315 = vpop.f32.mrb[0].mxu0
        %v1316 = vadd.f32 %v1239, %v1315
        %v1317 = vpop.f32.mrb[0].mxu0
        %v1318 = vadd.f32 %v1241, %v1317
        %1319 = vmatprep.mubr.f32.mxu0 0.0
        %1320 = vmatmul.mubr.f32.gmra.mrb[0].mxu0 %v781
        %v1321 = vpop.f32.mrb[0].mxu0
        %v1322 = vadd.f32 %v1245, %v1321
        %v1323 = vpop.f32.mrb[0].mxu0
        %v1324 = vadd.f32 %v1247, %v1323
        %1325 = vdwg.mxu0
        %1326 = vst [vmem:[%s244] sm:$0xff] %v1316
        %1327 = vst [vmem:[%s244 + $0x8] sm:$0xff] %v1318
        %1328 = vst [vmem:[%s244 + $0x10] sm:$0xff] %v1322
        %1329 = vst [vmem:[%s244 + $0x18] sm:$0xff] %v1324
        %s1330 = sand.u32 %s119, 1
        %s1331 = scalar_lea.sflag [#allocation5], %s1330
        %s1332 = sand.u32 %s119, 1
        %s1333 = smul.addr %s1332, 32
        %s1334 = scalar_lea.vmem [#allocation9], %s1333
        // Predicated region
        $region49: #{tpu_custom_call.1} parent=35 // pred_check
          %p1335 = pneg %p129
        $region50: #{tpu_custom_call.1} parent=35 // pred_check_branch
          %1337 = sbr.rel (%p1335) target = $region52
        $region51: #{tpu_custom_call.1} parent=35 // pred_region
          %s1339 = ssub.s32 512, 512
          %1340 = vsyncadd %s1331, %s1339
          %s1341 = smul.addr %s22, 4
          %s1342 = smul.addr %s1341, 128
          %s1343 = scalar_lea.hbm %s4, %s1342
          %s1344 = sshll.u32 %s1334, 4
          %s1345 = int_to_ptr.vmem [resolvable:$true] %s1344
          %1350 = dma.vmem_to_hbm [thread:$0]  %s1345, 512, %s1343, %s1331, 256, 256, 16
        $region52: #{tpu_custom_call.1} parent=35 // pred_fallthru
          _
      $region36: #{tpu_custom_call.1} parent=5 // pred_fallthru
        _
      %p1351 = scmp.le.s32.totalorder 2, %s17
      // Predicated region
      $region53: #{tpu_custom_call.1} parent=5 // pred_check
        %p1352 = pneg %p1351
      $region54: #{tpu_custom_call.1} parent=5 // pred_check_branch
        %1354 = sbr.rel (%p1352) target = $region56
      $region55: #{tpu_custom_call.1} parent=5 // pred_region
        %s1355 = ssub.s32 %s17, 2
        // Predicated region
        $region57: #{tpu_custom_call.1} parent=55 // pred_check
          %p1356 = pneg %p135
        $region58: #{tpu_custom_call.1} parent=55 // pred_check_branch
          %1358 = sbr.rel (%p1356) target = $region60
        $region59: #{tpu_custom_call.1} parent=55 // pred_region
          %s1359 = sand.u32 %s120, 1
          %s1360 = scalar_lea.sflag [#allocation5], %s1359
          %s1361 = sand.u32 %s120, 1
          %s1362 = smul.addr %s1361, 32
          %s1363 = scalar_lea.vmem [#allocation9], %s1362
          %1364 = dma.done %s1360, 512
        $region60: #{tpu_custom_call.1} parent=55 // pred_fallthru
          _
      $region56: #{tpu_custom_call.1} parent=5 // pred_fallthru
        _
    $region6: #{tpu_custom_call.1} parent=1 // loop_footer
      %s21 = sadd.s32 1, %s17
    $region7: #{tpu_custom_call.1} parent=1 // loop_footer_branch
      %16 = sbr.rel target = $region3
    $region8: #{tpu_custom_call.1} parent=1 // loop_exit
      _
    %1365 = vsyncpa [#allocation4], 1
    %s1366 = scalar_lea.sflag [#allocation4], 1
    %1367 = vsyncpa %s1366, 1
    %1368 = vsyncpa [#allocation7], 1
    %1369 = vsyncpa [#allocation5], 1
    %s1370 = scalar_lea.sflag [#allocation5], 1
    %1371 = vsyncpa %s1370, 1

</llo_original>
